<compile_context>
chip_gen: v7x
topology: tpu7x:2x2x1
jax: 0.10.0
libtpu: 0.0.40
codegen_flags: <defaults>
</compile_context>

<pallas_src>
import functools

import jax
import jax.numpy as jnp
import numpy as np
from jax import lax
from jax.experimental import pallas as pl
from jax.experimental.pallas import tpu as pltpu


def pixel_encoder_kernel(obs_ref, w1_ref, b1_ref, w2_ref, b2_ref,
                         wfc_ref, bfc_ref, lnw_ref, lnb_ref, out_ref,
                         *, TB, H1, H2, NF, F):
    # obs_ref: (TB, S, S, 4*C) int8 (pixel - 128), s2d layout.  1/255 is folded
    # into w1 and the +128 offset into b1, so a single cheap VPU cast (hidden
    # under the matmuls) is all the pre-processing needed.
    x = obs_ref[...].astype(jnp.float32)

    # ---- conv1: original stride-2 3x3 conv == stride-1 2x2 conv on s2d ----
    # Single im2col matmul: concat the 4 taps along lanes -> K = 4 * 4C.
    taps1 = [x[:, bh:bh + H1, bw:bw + H1, :]
             for bh in range(2) for bw in range(2)]
    slab1 = jnp.concatenate(taps1, axis=-1)              # (TB, H1, H1, 16C)
    K1 = slab1.shape[-1]
    h1 = jnp.dot(slab1.reshape(TB * H1 * H1, K1), w1_ref[...],
                 preferred_element_type=jnp.float32)
    h1 = jnp.maximum(h1 + b1_ref[...], 0.0).reshape(TB, H1, H1, NF)

    # ---- conv2: stride-1 3x3 conv, single im2col matmul (K = 9*NF) ----
    taps2 = [h1[:, kh:kh + H2, kw:kw + H2, :]
             for kh in range(3) for kw in range(3)]
    slab2 = jnp.concatenate(taps2, axis=-1)              # (TB, H2, H2, 9*NF)
    K2 = slab2.shape[-1]
    h2 = jnp.dot(slab2.reshape(TB * H2 * H2, K2), w2_ref[...],
                 preferred_element_type=jnp.float32)
    h2 = jnp.maximum(h2 + b2_ref[...], 0.0).reshape(TB, H2, H2, NF)

    # ---- fc: single matmul over K = H2*H2*NF ----
    # Build a lane-dense (TB, H2*H2*NF) row per batch element ordered
    # (ph, pw, n) via minor-dim concats (matches the permuted fc weight;
    # avoids a minor-dim-changing reshape of activations in-kernel).
    rows = jnp.concatenate([h2[:, :, pw, :] for pw in range(H2)], axis=-1)
    fc_in = jnp.concatenate([rows[:, ph, :] for ph in range(H2)], axis=-1)
    hfc = jnp.dot(fc_in, wfc_ref[...],
                  preferred_element_type=jnp.float32) + bfc_ref[...]

    # ---- LayerNorm (biased var, eps=1e-5, affine) + tanh ----
    mu = jnp.mean(hfc, axis=-1, keepdims=True)
    var = jnp.mean((hfc - mu) ** 2, axis=-1, keepdims=True)
    hn = (hfc - mu) * lax.rsqrt(var + 1e-5)
    hn = hn * lnw_ref[...] + lnb_ref[...]
    out_ref[...] = jnp.tanh(hn)                          # (TB, F)


def prepare_params(params):
    """One-time, init-side rearrangement of PyTorch-layout parameters into the
    kernel's layouts (hoisted out of the per-call jit path)."""
    (w1_t, b1, w2_t, b2, wfc_t, bfc, ln_w, ln_b) = [np.asarray(p, np.float32)
                                                    for p in params]
    NF, C = w1_t.shape[0], w1_t.shape[1]
    F = wfc_t.shape[0]
    H2 = int(round((wfc_t.shape[1] // NF) ** 0.5))

    # conv1 (NF, C, 3, 3) -> s2d 2x2 taps over 4C channels -> (4*4C, NF),
    # with the 1/255 input normalization folded into the weight.
    w1_hwio = np.transpose(w1_t, (2, 3, 1, 0))           # (3, 3, C, NF)
    w1_s2d = np.zeros((2, 2, 2, 2, C, NF), np.float32)   # (bh, bw, ph, pw, c, f)
    for kh in range(3):
        for kw in range(3):
            w1_s2d[kh // 2, kw // 2, kh % 2, kw % 2] = w1_hwio[kh, kw]
    w1_k = (w1_s2d.reshape(4 * 4 * C, NF) / 255.0).astype(np.float32)

    # Kernel consumes (pixel - 128) int8; fold the +128 offset through conv1:
    # b1' = b1 + (128/255) * sum_{c,kh,kw} w1.
    b1_eff = b1 + (128.0 / 255.0) * w1_t.sum(axis=(1, 2, 3))

    # conv2 (NF, NF, 3, 3) -> (9*NF, NF), row index = (kh*3+kw)*NF + n_in.
    w2_k = np.transpose(w2_t, (2, 3, 1, 0)).reshape(9 * NF, NF)

    # fc (F, NF*H2*H2), torch NCHW flatten order (n, ph, pw) -> kernel order
    # (ph, pw, n): (H2*H2*NF, F).
    wfc_k = np.transpose(wfc_t.reshape(F, NF, H2, H2), (2, 3, 1, 0))
    wfc_k = np.ascontiguousarray(wfc_k).reshape(H2 * H2 * NF, F)

    return (jnp.asarray(w1_k), jnp.asarray(b1_eff.reshape(1, NF)),
            jnp.asarray(w2_k), jnp.asarray(b2.reshape(1, NF)),
            jnp.asarray(wfc_k), jnp.asarray(bfc.reshape(1, F)),
            jnp.asarray(ln_w.reshape(1, F)), jnp.asarray(ln_b.reshape(1, F)))


def _pick_tb(B, per_example_bytes, budget_bytes):
    """Batch tile: prefer exactly 2 grid steps (both v7x TensorCores busy) when
    the batch allows an 8-aligned split, else one step; fall back to smaller
    8-aligned divisors only if VMEM would overflow."""
    cands = []
    if B % 2 == 0 and (B // 2) % 8 == 0:
        cands.append(B // 2)
    cands.append(B)
    for d in (256, 128, 64, 32, 16, 8):
        if d < B and B % d == 0:
            cands.append(d)
    for tb in cands:
        if tb * per_example_bytes <= budget_bytes:
            return tb
    return min(cands)


def pixel_encoder_forward(obs_nchw_u8, prepared):
    (w1_k, b1_k, w2_k, b2_k, wfc_k, bfc_k, lnw_k, lnb_k) = prepared
    B, C, H, W = obs_nchw_u8.shape
    NF = w2_k.shape[1]
    F = wfc_k.shape[1]
    H1 = (H - 3) // 2 + 1
    H2 = H1 - 2
    S = H // 2

    # ---- layout / dtype glue (XLA, 1 byte per pixel): center to int8 and
    # space-to-depth.  Running this relayout on 8-bit data keeps pre-kernel
    # HBM traffic at 1/4 of the previous f32 relayout.
    x = (obs_nchw_u8.astype(jnp.int32) - 128).astype(jnp.int8)
    x = jnp.transpose(x, (0, 2, 3, 1))                              # NHWC
    x = x.reshape(B, S, 2, W // 2, 2, C)
    x = jnp.transpose(x, (0, 1, 3, 2, 4, 5)).reshape(B, S, W // 2, 4 * C)

    # ---- per-generation VMEM budget (v7x has 64 MiB vs 128 MiB v5e/v6e) ----
    try:
        info = pltpu.get_tpu_info()
        vmem_cap = int(getattr(info, "vmem_capacity_bytes", 64 * 1024 * 1024))
    except Exception:
        vmem_cap = 64 * 1024 * 1024
    vmem_limit = int(min(vmem_cap // 2, 96 * 1024 * 1024))

    K1, K2, P = 16 * C, 9 * NF, H2 * H2
    per_ex_f32 = (2 * S * S * 4 * C                 # obs block (i8 in, f32 cast)
                  + 2 * H1 * H1 * (K1 + NF)         # slab1 + h1
                  + 2 * H2 * H2 * (K2 + NF)         # slab2 + h2
                  + 2 * P * NF + 4 * F)             # fc_in + epilogue temps
    per_ex_bytes = 4 * per_ex_f32 * 2               # 2x fudge: padding/copies
    TB = _pick_tb(B, per_ex_bytes, vmem_limit // 2)

    flops = 2 * B * (H1 * H1 * K1 * NF + H2 * H2 * K2 * NF + P * NF * F)
    weight_bytes = 4 * int(w1_k.size + w2_k.size + wfc_k.size + b1_k.size
                           + b2_k.size + bfc_k.size + lnw_k.size + lnb_k.size)
    cost = pl.CostEstimate(flops=flops,
                           transcendentals=B * (F + 1),
                           bytes_accessed=B * S * S * 4 * C + weight_bytes
                           + B * F * 4)

    kernel = functools.partial(pixel_encoder_kernel,
                               TB=TB, H1=H1, H2=H2, NF=NF, F=F)
    vmem = pl.BlockSpec(memory_space=pltpu.MemorySpace.VMEM)
    out = pl.pallas_call(
        kernel,
        grid=(B // TB,),
        out_shape=jax.ShapeDtypeStruct((B, F), jnp.float32),
        in_specs=[pl.BlockSpec((TB, S, W // 2, 4 * C),
                               lambda b: (b, 0, 0, 0))] + [vmem] * 8,
        out_specs=pl.BlockSpec((TB, F), lambda b: (b, 0)),
        compiler_params=pltpu.CompilerParams(
            dimension_semantics=("parallel",),
            vmem_limit_bytes=vmem_limit),
        cost_estimate=cost,
    )(x, w1_k, b1_k, w2_k, b2_k, wfc_k, bfc_k, lnw_k, lnb_k)
    return out


def pixel_encoder_reference(obs_nchw_f32, params):
    """Pure-JAX reference mirroring the PyTorch forward (NCHW, f32 pixels)."""
    (w1_t, b1, w2_t, b2, wfc_t, bfc, ln_w, ln_b) = params
    B = obs_nchw_f32.shape[0]
    dn = ('NCHW', 'OIHW', 'NCHW')
    x = obs_nchw_f32 / 255.0
    y = lax.conv_general_dilated(x, w1_t, (2, 2), 'VALID',
                                 dimension_numbers=dn,
                                 precision=lax.Precision.HIGHEST)
    y = jnp.maximum(y + b1[None, :, None, None], 0.0)
    y = lax.conv_general_dilated(y, w2_t, (1, 1), 'VALID',
                                 dimension_numbers=dn,
                                 precision=lax.Precision.HIGHEST)
    y = jnp.maximum(y + b2[None, :, None, None], 0.0)
    h = y.reshape(B, -1)                       # NCHW flatten, like torch .view
    hfc = h @ wfc_t.T + bfc
    mu = jnp.mean(hfc, axis=-1, keepdims=True)
    var = jnp.mean((hfc - mu) ** 2, axis=-1, keepdims=True)
    hn = (hfc - mu) / jnp.sqrt(var + 1e-5) * ln_w + ln_b
    return jnp.tanh(hn)


if __name__ == "__main__":
    # Small shapes: batch=2, obs channels=4, spatial=16x16, num_filters=8,
    # feature_dim=32, num_layers=2 (conv1 stride 2, conv2 stride 1).
    B, C, H, W = 2, 4, 16, 16
    NF, F = 8, 32
    H1 = (H - 3) // 2 + 1      # 7
    H2 = H1 - 2                # 5  (out_dim for this small input)

    key = jax.random.PRNGKey(0)
    ks = jax.random.split(key, 9)
    w1_t = 0.1 * jax.random.normal(ks[0], (NF, C, 3, 3), jnp.float32)
    b1 = 0.1 * jax.random.normal(ks[1], (NF,), jnp.float32)
    w2_t = 0.1 * jax.random.normal(ks[2], (NF, NF, 3, 3), jnp.float32)
    b2 = 0.1 * jax.random.normal(ks[3], (NF,), jnp.float32)
    wfc_t = 0.05 * jax.random.normal(ks[4], (F, NF * H2 * H2), jnp.float32)
    bfc = 0.1 * jax.random.normal(ks[5], (F,), jnp.float32)
    ln_w = 1.0 + 0.1 * jax.random.normal(ks[6], (F,), jnp.float32)
    ln_b = 0.1 * jax.random.normal(ks[7], (F,), jnp.float32)
    # uint8 pixel observation, as a PixelEncoder would receive it.
    obs = jax.random.randint(ks[8], (B, C, H, W), 0, 256,
                             dtype=jnp.int32).astype(jnp.uint8)
    params = (w1_t, b1, w2_t, b2, wfc_t, bfc, ln_w, ln_b)

    # TODO(synk): reparameterize(), copy_conv_weights_from()/tie_weights and
    # the logging dict (self.outputs / log()) are training/bookkeeping
    # utilities with no forward-pass compute; only forward() (output_logits=
    # False, i.e. with tanh) is implemented here.

    prepared = prepare_params(params)          # one-time, init-side
    fwd = jax.jit(pixel_encoder_forward)
    out = jax.block_until_ready(fwd(obs, prepared))

    ref = pixel_encoder_reference(obs.astype(jnp.float32), params)
    assert out.shape == (B, F), out.shape
    max_err = float(jnp.max(jnp.abs(out - ref)))
    assert jnp.allclose(out, ref, atol=1e-3, rtol=1e-3), max_err
    print("KERNEL_OK")
</pallas_src>

<mosaic_0001>
module attributes {stable_mosaic.version = 11 : i64} {
  func.func @pixel_encoder_kernel(%arg0: i32, %arg1: memref<2x8x8x16xi8, #tpu.memory_space<vmem>>, %arg2: memref<64x8xf32, #tpu.memory_space<vmem>>, %arg3: memref<1x8xf32, #tpu.memory_space<vmem>>, %arg4: memref<72x8xf32, #tpu.memory_space<vmem>>, %arg5: memref<1x8xf32, #tpu.memory_space<vmem>>, %arg6: memref<200x32xf32, #tpu.memory_space<vmem>>, %arg7: memref<1x32xf32, #tpu.memory_space<vmem>>, %arg8: memref<1x32xf32, #tpu.memory_space<vmem>>, %arg9: memref<1x32xf32, #tpu.memory_space<vmem>>, %arg10: memref<2x32xf32, #tpu.memory_space<vmem>>) attributes {dimension_semantics = [#tpu.dimension_semantics<parallel>], iteration_bounds = array<i64: 1>, scalar_prefetch = 0 : i64, scratch_operands = 0 : i64, tpu.core_type = #tpu.core_type<tc>, window_params = [{transform_indices = @transform_0, window_bounds = array<i64: 2, 8, 8, 16>}, {pipeline_mode = #tpu.pipeline_mode<synchronous>, transform_indices = @transform_1, window_bounds = array<i64: 64, 8>}, {pipeline_mode = #tpu.pipeline_mode<synchronous>, transform_indices = @transform_2, window_bounds = array<i64: 1, 8>}, {pipeline_mode = #tpu.pipeline_mode<synchronous>, transform_indices = @transform_3, window_bounds = array<i64: 72, 8>}, {pipeline_mode = #tpu.pipeline_mode<synchronous>, transform_indices = @transform_4, window_bounds = array<i64: 1, 8>}, {pipeline_mode = #tpu.pipeline_mode<synchronous>, transform_indices = @transform_5, window_bounds = array<i64: 200, 32>}, {pipeline_mode = #tpu.pipeline_mode<synchronous>, transform_indices = @transform_6, window_bounds = array<i64: 1, 32>}, {pipeline_mode = #tpu.pipeline_mode<synchronous>, transform_indices = @transform_7, window_bounds = array<i64: 1, 32>}, {pipeline_mode = #tpu.pipeline_mode<synchronous>, transform_indices = @transform_8, window_bounds = array<i64: 1, 32>}, {transform_indices = @transform_9, window_bounds = array<i64: 2, 32>}]} {
    %c0 = arith.constant 0 : index
    %c0_0 = arith.constant 0 : index
    %c0_1 = arith.constant 0 : index
    %c0_2 = arith.constant 0 : index
    %0 = vector.load %arg1[%c0, %c0_0, %c0_1, %c0_2] : memref<2x8x8x16xi8, #tpu.memory_space<vmem>>, vector<2x8x8x16xi8>
    %1 = arith.sitofp %0 : vector<2x8x8x16xi8> to vector<2x8x8x16xf32>
    %2 = vector.extract_strided_slice %1 {offsets = [0, 0, 0, 0], sizes = [2, 7, 7, 16], strides = [1, 1, 1, 1]} : vector<2x8x8x16xf32> to vector<2x7x7x16xf32>
    %3 = vector.extract_strided_slice %1 {offsets = [0, 0, 1, 0], sizes = [2, 7, 7, 16], strides = [1, 1, 1, 1]} : vector<2x8x8x16xf32> to vector<2x7x7x16xf32>
    %4 = vector.extract_strided_slice %1 {offsets = [0, 1, 0, 0], sizes = [2, 7, 7, 16], strides = [1, 1, 1, 1]} : vector<2x8x8x16xf32> to vector<2x7x7x16xf32>
    %5 = vector.extract_strided_slice %1 {offsets = [0, 1, 1, 0], sizes = [2, 7, 7, 16], strides = [1, 1, 1, 1]} : vector<2x8x8x16xf32> to vector<2x7x7x16xf32>
    %6 = tpu.concatenate %2, %3, %4, %5 in 3 : vector<2x7x7x16xf32>, vector<2x7x7x16xf32>, vector<2x7x7x16xf32>, vector<2x7x7x16xf32> -> vector<2x7x7x64xf32>
    %7 = vector.shape_cast %6 : vector<2x7x7x64xf32> to vector<98x64xf32>
    %c0_3 = arith.constant 0 : index
    %c0_4 = arith.constant 0 : index
    %8 = vector.load %arg2[%c0_3, %c0_4] : memref<64x8xf32, #tpu.memory_space<vmem>>, vector<64x8xf32>
    %cst = arith.constant dense<0.000000e+00> : vector<98x8xf32>
    %9 = tpu.matmul %7, %8, %cst {dimension_numbers = #tpu.dot_dimension_numbers<[1], [0], [0], [1], [0, 0, 1, 1], [], []>} : vector<98x64xf32>, vector<64x8xf32>, vector<98x8xf32> -> vector<98x8xf32>
    %c0_5 = arith.constant 0 : index
    %c0_6 = arith.constant 0 : index
    %10 = vector.load %arg3[%c0_5, %c0_6] : memref<1x8xf32, #tpu.memory_space<vmem>>, vector<1x8xf32>
    %11 = vector.broadcast %10 : vector<1x8xf32> to vector<98x8xf32>
    %12 = arith.addf %9, %11 : vector<98x8xf32>
    %cst_7 = arith.constant 0.000000e+00 : f32
    %13 = vector.broadcast %cst_7 : f32 to vector<98x8xf32>
    %14 = arith.maximumf %12, %13 : vector<98x8xf32>
    %15 = vector.shape_cast %14 : vector<98x8xf32> to vector<2x7x7x8xf32>
    %16 = vector.extract_strided_slice %15 {offsets = [0, 0, 0, 0], sizes = [2, 5, 5, 8], strides = [1, 1, 1, 1]} : vector<2x7x7x8xf32> to vector<2x5x5x8xf32>
    %17 = vector.extract_strided_slice %15 {offsets = [0, 0, 1, 0], sizes = [2, 5, 5, 8], strides = [1, 1, 1, 1]} : vector<2x7x7x8xf32> to vector<2x5x5x8xf32>
    %18 = vector.extract_strided_slice %15 {offsets = [0, 0, 2, 0], sizes = [2, 5, 5, 8], strides = [1, 1, 1, 1]} : vector<2x7x7x8xf32> to vector<2x5x5x8xf32>
    %19 = vector.extract_strided_slice %15 {offsets = [0, 1, 0, 0], sizes = [2, 5, 5, 8], strides = [1, 1, 1, 1]} : vector<2x7x7x8xf32> to vector<2x5x5x8xf32>
    %20 = vector.extract_strided_slice %15 {offsets = [0, 1, 1, 0], sizes = [2, 5, 5, 8], strides = [1, 1, 1, 1]} : vector<2x7x7x8xf32> to vector<2x5x5x8xf32>
    %21 = vector.extract_strided_slice %15 {offsets = [0, 1, 2, 0], sizes = [2, 5, 5, 8], strides = [1, 1, 1, 1]} : vector<2x7x7x8xf32> to vector<2x5x5x8xf32>
    %22 = vector.extract_strided_slice %15 {offsets = [0, 2, 0, 0], sizes = [2, 5, 5, 8], strides = [1, 1, 1, 1]} : vector<2x7x7x8xf32> to vector<2x5x5x8xf32>
    %23 = vector.extract_strided_slice %15 {offsets = [0, 2, 1, 0], sizes = [2, 5, 5, 8], strides = [1, 1, 1, 1]} : vector<2x7x7x8xf32> to vector<2x5x5x8xf32>
    %24 = vector.extract_strided_slice %15 {offsets = [0, 2, 2, 0], sizes = [2, 5, 5, 8], strides = [1, 1, 1, 1]} : vector<2x7x7x8xf32> to vector<2x5x5x8xf32>
    %25 = tpu.concatenate %16, %17, %18, %19, %20, %21, %22, %23, %24 in 3 : vector<2x5x5x8xf32>, vector<2x5x5x8xf32>, vector<2x5x5x8xf32>, vector<2x5x5x8xf32>, vector<2x5x5x8xf32>, vector<2x5x5x8xf32>, vector<2x5x5x8xf32>, vector<2x5x5x8xf32>, vector<2x5x5x8xf32> -> vector<2x5x5x72xf32>
    %26 = vector.shape_cast %25 : vector<2x5x5x72xf32> to vector<50x72xf32>
    %c0_8 = arith.constant 0 : index
    %c0_9 = arith.constant 0 : index
    %27 = vector.load %arg4[%c0_8, %c0_9] : memref<72x8xf32, #tpu.memory_space<vmem>>, vector<72x8xf32>
    %cst_10 = arith.constant dense<0.000000e+00> : vector<50x8xf32>
    %28 = tpu.matmul %26, %27, %cst_10 {dimension_numbers = #tpu.dot_dimension_numbers<[1], [0], [0], [1], [0, 0, 1, 1], [], []>} : vector<50x72xf32>, vector<72x8xf32>, vector<50x8xf32> -> vector<50x8xf32>
    %c0_11 = arith.constant 0 : index
    %c0_12 = arith.constant 0 : index
    %29 = vector.load %arg5[%c0_11, %c0_12] : memref<1x8xf32, #tpu.memory_space<vmem>>, vector<1x8xf32>
    %30 = vector.broadcast %29 : vector<1x8xf32> to vector<50x8xf32>
    %31 = arith.addf %28, %30 : vector<50x8xf32>
    %cst_13 = arith.constant 0.000000e+00 : f32
    %32 = vector.broadcast %cst_13 : f32 to vector<50x8xf32>
    %33 = arith.maximumf %31, %32 : vector<50x8xf32>
    %34 = vector.shape_cast %33 : vector<50x8xf32> to vector<2x5x5x8xf32>
    %35 = vector.extract_strided_slice %34 {offsets = [0, 0, 0, 0], sizes = [2, 5, 1, 8], strides = [1, 1, 1, 1]} : vector<2x5x5x8xf32> to vector<2x5x1x8xf32>
    %36 = vector.shape_cast %35 : vector<2x5x1x8xf32> to vector<2x5x8xf32>
    %37 = vector.extract_strided_slice %34 {offsets = [0, 0, 1, 0], sizes = [2, 5, 1, 8], strides = [1, 1, 1, 1]} : vector<2x5x5x8xf32> to vector<2x5x1x8xf32>
    %38 = vector.shape_cast %37 : vector<2x5x1x8xf32> to vector<2x5x8xf32>
    %39 = vector.extract_strided_slice %34 {offsets = [0, 0, 2, 0], sizes = [2, 5, 1, 8], strides = [1, 1, 1, 1]} : vector<2x5x5x8xf32> to vector<2x5x1x8xf32>
    %40 = vector.shape_cast %39 : vector<2x5x1x8xf32> to vector<2x5x8xf32>
    %41 = vector.extract_strided_slice %34 {offsets = [0, 0, 3, 0], sizes = [2, 5, 1, 8], strides = [1, 1, 1, 1]} : vector<2x5x5x8xf32> to vector<2x5x1x8xf32>
    %42 = vector.shape_cast %41 : vector<2x5x1x8xf32> to vector<2x5x8xf32>
    %43 = vector.extract_strided_slice %34 {offsets = [0, 0, 4, 0], sizes = [2, 5, 1, 8], strides = [1, 1, 1, 1]} : vector<2x5x5x8xf32> to vector<2x5x1x8xf32>
    %44 = vector.shape_cast %43 : vector<2x5x1x8xf32> to vector<2x5x8xf32>
    %45 = tpu.concatenate %36, %38, %40, %42, %44 in 2 : vector<2x5x8xf32>, vector<2x5x8xf32>, vector<2x5x8xf32>, vector<2x5x8xf32>, vector<2x5x8xf32> -> vector<2x5x40xf32>
    %46 = vector.extract_strided_slice %45 {offsets = [0, 0, 0], sizes = [2, 1, 40], strides = [1, 1, 1]} : vector<2x5x40xf32> to vector<2x1x40xf32>
    %47 = vector.shape_cast %46 : vector<2x1x40xf32> to vector<2x40xf32>
    %48 = vector.extract_strided_slice %45 {offsets = [0, 1, 0], sizes = [2, 1, 40], strides = [1, 1, 1]} : vector<2x5x40xf32> to vector<2x1x40xf32>
    %49 = vector.shape_cast %48 : vector<2x1x40xf32> to vector<2x40xf32>
    %50 = vector.extract_strided_slice %45 {offsets = [0, 2, 0], sizes = [2, 1, 40], strides = [1, 1, 1]} : vector<2x5x40xf32> to vector<2x1x40xf32>
    %51 = vector.shape_cast %50 : vector<2x1x40xf32> to vector<2x40xf32>
    %52 = vector.extract_strided_slice %45 {offsets = [0, 3, 0], sizes = [2, 1, 40], strides = [1, 1, 1]} : vector<2x5x40xf32> to vector<2x1x40xf32>
    %53 = vector.shape_cast %52 : vector<2x1x40xf32> to vector<2x40xf32>
    %54 = vector.extract_strided_slice %45 {offsets = [0, 4, 0], sizes = [2, 1, 40], strides = [1, 1, 1]} : vector<2x5x40xf32> to vector<2x1x40xf32>
    %55 = vector.shape_cast %54 : vector<2x1x40xf32> to vector<2x40xf32>
    %56 = tpu.concatenate %47, %49, %51, %53, %55 in 1 : vector<2x40xf32>, vector<2x40xf32>, vector<2x40xf32>, vector<2x40xf32>, vector<2x40xf32> -> vector<2x200xf32>
    %c0_14 = arith.constant 0 : index
    %c0_15 = arith.constant 0 : index
    %57 = vector.load %arg6[%c0_14, %c0_15] : memref<200x32xf32, #tpu.memory_space<vmem>>, vector<200x32xf32>
    %cst_16 = arith.constant dense<0.000000e+00> : vector<2x32xf32>
    %58 = tpu.matmul %56, %57, %cst_16 {dimension_numbers = #tpu.dot_dimension_numbers<[1], [0], [0], [1], [0, 0, 1, 1], [], []>} : vector<2x200xf32>, vector<200x32xf32>, vector<2x32xf32> -> vector<2x32xf32>
    %c0_17 = arith.constant 0 : index
    %c0_18 = arith.constant 0 : index
    %59 = vector.load %arg7[%c0_17, %c0_18] : memref<1x32xf32, #tpu.memory_space<vmem>>, vector<1x32xf32>
    %60 = vector.broadcast %59 : vector<1x32xf32> to vector<2x32xf32>
    %61 = arith.addf %58, %60 : vector<2x32xf32>
    %cst_19 = arith.constant dense<0.000000e+00> : vector<2xf32>
    %62 = vector.multi_reduction <add>, %61, %cst_19 [1] : vector<2x32xf32> to vector<2xf32>
    %63 = vector.shape_cast %62 : vector<2xf32> to vector<2x1xf32>
    %cst_20 = arith.constant 3.200000e+01 : f32
    %64 = vector.broadcast %cst_20 : f32 to vector<2x1xf32>
    %65 = arith.divf %63, %64 : vector<2x1xf32>
    %66 = vector.broadcast %65 : vector<2x1xf32> to vector<2x32xf32>
    %67 = arith.subf %61, %66 : vector<2x32xf32>
    %68 = arith.mulf %67, %67 : vector<2x32xf32>
    %cst_21 = arith.constant dense<0.000000e+00> : vector<2xf32>
    %69 = vector.multi_reduction <add>, %68, %cst_21 [1] : vector<2x32xf32> to vector<2xf32>
    %70 = vector.shape_cast %69 : vector<2xf32> to vector<2x1xf32>
    %cst_22 = arith.constant 3.200000e+01 : f32
    %71 = vector.broadcast %cst_22 : f32 to vector<2x1xf32>
    %72 = arith.divf %70, %71 : vector<2x1xf32>
    %73 = vector.broadcast %65 : vector<2x1xf32> to vector<2x32xf32>
    %74 = arith.subf %61, %73 : vector<2x32xf32>
    %cst_23 = arith.constant 9.99999974E-6 : f32
    %75 = vector.broadcast %cst_23 : f32 to vector<2x1xf32>
    %76 = arith.addf %72, %75 : vector<2x1xf32>
    %77 = math.rsqrt %76 : vector<2x1xf32>
    %78 = vector.broadcast %77 : vector<2x1xf32> to vector<2x32xf32>
    %79 = arith.mulf %74, %78 : vector<2x32xf32>
    %c0_24 = arith.constant 0 : index
    %c0_25 = arith.constant 0 : index
    %80 = vector.load %arg8[%c0_24, %c0_25] : memref<1x32xf32, #tpu.memory_space<vmem>>, vector<1x32xf32>
    %81 = vector.broadcast %80 : vector<1x32xf32> to vector<2x32xf32>
    %82 = arith.mulf %79, %81 : vector<2x32xf32>
    %c0_26 = arith.constant 0 : index
    %c0_27 = arith.constant 0 : index
    %83 = vector.load %arg9[%c0_26, %c0_27] : memref<1x32xf32, #tpu.memory_space<vmem>>, vector<1x32xf32>
    %84 = vector.broadcast %83 : vector<1x32xf32> to vector<2x32xf32>
    %85 = arith.addf %82, %84 : vector<2x32xf32>
    %86 = math.tanh %85 : vector<2x32xf32>
    %c0_28 = arith.constant 0 : index
    %c0_29 = arith.constant 0 : index
    %87 = vector.load %arg10[%c0_28, %c0_29] : memref<2x32xf32, #tpu.memory_space<vmem>>, vector<2x32xf32>
    tpu.vector_store %arg10[%c0_28, %c0_29], %86 {strides = array<i32>} : memref<2x32xf32, #tpu.memory_space<vmem>>, vector<2x32xf32>,
    return
  }
  func.func @transform_0(%arg0: i32) -> (i32, i32, i32, i32) {
    %c0_i32 = arith.constant 0 : i32
    %c0_i32_0 = arith.constant 0 : i32
    %c0_i32_1 = arith.constant 0 : i32
    %c0_i32_2 = arith.constant 0 : i32
    return %arg0, %c0_i32, %c0_i32_0, %c0_i32_1 : i32, i32, i32, i32
  }
  func.func @transform_1(%arg0: i32) -> (i32, i32) {
    %c0_i32 = arith.constant 0 : i32
    %c0_i32_0 = arith.constant 0 : i32
    %c0_i32_1 = arith.constant 0 : i32
    return %c0_i32, %c0_i32_0 : i32, i32
  }
  func.func @transform_2(%arg0: i32) -> (i32, i32) {
    %c0_i32 = arith.constant 0 : i32
    %c0_i32_0 = arith.constant 0 : i32
    %c0_i32_1 = arith.constant 0 : i32
    return %c0_i32, %c0_i32_0 : i32, i32
  }
  func.func @transform_3(%arg0: i32) -> (i32, i32) {
    %c0_i32 = arith.constant 0 : i32
    %c0_i32_0 = arith.constant 0 : i32
    %c0_i32_1 = arith.constant 0 : i32
    return %c0_i32, %c0_i32_0 : i32, i32
  }
  func.func @transform_4(%arg0: i32) -> (i32, i32) {
    %c0_i32 = arith.constant 0 : i32
    %c0_i32_0 = arith.constant 0 : i32
    %c0_i32_1 = arith.constant 0 : i32
    return %c0_i32, %c0_i32_0 : i32, i32
  }
  func.func @transform_5(%arg0: i32) -> (i32, i32) {
    %c0_i32 = arith.constant 0 : i32
    %c0_i32_0 = arith.constant 0 : i32
    %c0_i32_1 = arith.constant 0 : i32
    return %c0_i32, %c0_i32_0 : i32, i32
  }
  func.func @transform_6(%arg0: i32) -> (i32, i32) {
    %c0_i32 = arith.constant 0 : i32
    %c0_i32_0 = arith.constant 0 : i32
    %c0_i32_1 = arith.constant 0 : i32
    return %c0_i32, %c0_i32_0 : i32, i32
  }
  func.func @transform_7(%arg0: i32) -> (i32, i32) {
    %c0_i32 = arith.constant 0 : i32
    %c0_i32_0 = arith.constant 0 : i32
    %c0_i32_1 = arith.constant 0 : i32
    return %c0_i32, %c0_i32_0 : i32, i32
  }
  func.func @transform_8(%arg0: i32) -> (i32, i32) {
    %c0_i32 = arith.constant 0 : i32
    %c0_i32_0 = arith.constant 0 : i32
    %c0_i32_1 = arith.constant 0 : i32
    return %c0_i32, %c0_i32_0 : i32, i32
  }
  func.func @transform_9(%arg0: i32) -> (i32, i32) {
    %c0_i32 = arith.constant 0 : i32
    %c0_i32_0 = arith.constant 0 : i32
    return %arg0, %c0_i32 : i32, i32
  }
}

</mosaic_0001>

<llo_original>
// kernel: pixel_encoder_forward.1
$region0: #{pixel_encoder_forward.1}
  #allocation0 [shape = 'u32[]', space=smem, size = 0x4, offset = 0x4, fixed_abs, tag = 'smem constant byte address 0x4 - core index']
  #allocation1 [shape = 'u32[144,128]{1,0:T(1,128)}', space=vmem, size = 0x12000, scoped, tag = 'internal scratch']
  %s0 = inlined_call_operand.vmem [shape: s8[2,8,8,16], index: 0, kind: input, shape index: {}]
  %s1 = inlined_call_operand.vmem [shape: f32[64,8], index: 1, kind: input, shape index: {}]
  %s2 = inlined_call_operand.vmem [shape: f32[1,8], index: 2, kind: input, shape index: {}]
  %s3 = inlined_call_operand.vmem [shape: f32[72,8], index: 3, kind: input, shape index: {}]
  %s4 = inlined_call_operand.vmem [shape: f32[1,8], index: 4, kind: input, shape index: {}]
  %s5 = inlined_call_operand.vmem [shape: f32[200,32], index: 5, kind: input, shape index: {}]
  %s6 = inlined_call_operand.vmem [shape: f32[1,32], index: 6, kind: input, shape index: {}]
  %s7 = inlined_call_operand.vmem [shape: f32[1,32], index: 7, kind: input, shape index: {}]
  %s8 = inlined_call_operand.vmem [shape: f32[1,32], index: 8, kind: input, shape index: {}]
  %s9 = inlined_call_operand.hbm [shape: f32[2,32], index: 9, kind: output, shape index: {}]
  %s10 = sld [smem:[#allocation0]]
  $region46: #{pixel_encoder_forward.1} parent=0
    _
  %s12 = ssub.s32 1, %s10
  %s13 = scalar_select 0, %s12, %s10
  $region1: #{pixel_encoder_forward.1} parent=0
    #allocation2 [shape = 'u8[1024]{0}', space=vmem, size = 0x400, scoped, tag = 'output window, operand 0, single buffered']
    #allocation3 [shape = 's32[1]{0}', space=sflag, size = 0x4, scoped, tag = 'scoped memory for pixel_encoder_forward.1']
    %14 = vsyncpa [#allocation3], 0
    // Predicated region
    $region2: #{pixel_encoder_forward.1} parent=1 // pred_check
      _
    $region3: #{pixel_encoder_forward.1} parent=1 // pred_check_branch
      %16 = sbr.rel (0) target = $region5
    $region4: #{pixel_encoder_forward.1} parent=1 // pred_region
      _
    $region5: #{pixel_encoder_forward.1} parent=1 // pred_fallthru
      _
    // Predicated region
    $region6: #{pixel_encoder_forward.1} parent=1 // pred_check
      _
    $region7: #{pixel_encoder_forward.1} parent=1 // pred_check_branch
      %18 = sbr.rel (0) target = $region9
    $region8: #{pixel_encoder_forward.1} parent=1 // pred_region
      _
    $region9: #{pixel_encoder_forward.1} parent=1 // pred_fallthru
      _
    // Predicated region
    $region10: #{pixel_encoder_forward.1} parent=1 // pred_check
      _
    $region11: #{pixel_encoder_forward.1} parent=1 // pred_check_branch
      %20 = sbr.rel (0) target = $region13
    $region12: #{pixel_encoder_forward.1} parent=1 // pred_region
      _
    $region13: #{pixel_encoder_forward.1} parent=1 // pred_fallthru
      _
    // Predicated region
    $region14: #{pixel_encoder_forward.1} parent=1 // pred_check
      _
    $region15: #{pixel_encoder_forward.1} parent=1 // pred_check_branch
      %22 = sbr.rel (0) target = $region17
    $region16: #{pixel_encoder_forward.1} parent=1 // pred_region
      _
    $region17: #{pixel_encoder_forward.1} parent=1 // pred_fallthru
      _
    // Predicated region
    $region18: #{pixel_encoder_forward.1} parent=1 // pred_check
      _
    $region19: #{pixel_encoder_forward.1} parent=1 // pred_check_branch
      %24 = sbr.rel (0) target = $region21
    $region20: #{pixel_encoder_forward.1} parent=1 // pred_region
      _
    $region21: #{pixel_encoder_forward.1} parent=1 // pred_fallthru
      _
    // Predicated region
    $region22: #{pixel_encoder_forward.1} parent=1 // pred_check
      _
    $region23: #{pixel_encoder_forward.1} parent=1 // pred_check_branch
      %26 = sbr.rel (0) target = $region25
    $region24: #{pixel_encoder_forward.1} parent=1 // pred_region
      _
    $region25: #{pixel_encoder_forward.1} parent=1 // pred_fallthru
      _
    // Predicated region
    $region26: #{pixel_encoder_forward.1} parent=1 // pred_check
      _
    $region27: #{pixel_encoder_forward.1} parent=1 // pred_check_branch
      %28 = sbr.rel (0) target = $region29
    $region28: #{pixel_encoder_forward.1} parent=1 // pred_region
      _
    $region29: #{pixel_encoder_forward.1} parent=1 // pred_fallthru
      _
    // Predicated region
    $region30: #{pixel_encoder_forward.1} parent=1 // pred_check
      _
    $region31: #{pixel_encoder_forward.1} parent=1 // pred_check_branch
      %30 = sbr.rel (0) target = $region33
    $region32: #{pixel_encoder_forward.1} parent=1 // pred_region
      _
    $region33: #{pixel_encoder_forward.1} parent=1 // pred_fallthru
      _
    // Predicated region
    $region34: #{pixel_encoder_forward.1} parent=1 // pred_check
      _
    $region35: #{pixel_encoder_forward.1} parent=1 // pred_check_branch
      %32 = sbr.rel (0) target = $region37
    $region36: #{pixel_encoder_forward.1} parent=1 // pred_region
      _
    $region37: #{pixel_encoder_forward.1} parent=1 // pred_fallthru
      _
    %v33 = vld [vmem:[%s0] sm:$0x3]
    %v34 = vld [vmem:[%s0 + $0x2] sm:$0x3]
    %v35 = vld [vmem:[%s0 + $0x4] sm:$0x3]
    %v36 = vld [vmem:[%s0 + $0x6] sm:$0x3]
    %v37 = vld [vmem:[%s0 + $0x8] sm:$0x3]
    %v38 = vld [vmem:[%s0 + $0xa] sm:$0x3]
    %v39 = vld [vmem:[%s0 + $0xc] sm:$0x3]
    %v40 = vld [vmem:[%s0 + $0xe] sm:$0x3]
    %v41 = vld [vmem:[%s0 + $0x10] sm:$0x3]
    %v42 = vld [vmem:[%s0 + $0x12] sm:$0x3]
    %v43 = vld [vmem:[%s0 + $0x14] sm:$0x3]
    %v44 = vld [vmem:[%s0 + $0x16] sm:$0x3]
    %v45 = vld [vmem:[%s0 + $0x18] sm:$0x3]
    %v46 = vld [vmem:[%s0 + $0x1a] sm:$0x3]
    %v47 = vld [vmem:[%s0 + $0x1c] sm:$0x3]
    %v48 = vld [vmem:[%s0 + $0x1e] sm:$0x3]
    %v49 = vunpack.c.0.s8 %v33
    %v50 = vunpack.c.0.s8 %v34
    %v51 = vunpack.c.0.s8 %v35
    %v52 = vunpack.c.0.s8 %v36
    %v53 = vunpack.c.0.s8 %v37
    %v54 = vunpack.c.0.s8 %v38
    %v55 = vunpack.c.0.s8 %v39
    %v56 = vunpack.c.0.s8 %v40
    %v57 = vunpack.c.0.s8 %v41
    %v58 = vunpack.c.0.s8 %v42
    %v59 = vunpack.c.0.s8 %v43
    %v60 = vunpack.c.0.s8 %v44
    %v61 = vunpack.c.0.s8 %v45
    %v62 = vunpack.c.0.s8 %v46
    %v63 = vunpack.c.0.s8 %v47
    %v64 = vunpack.c.0.s8 %v48
    %v65 = vcvt.s32.f32 %v49
    %v66 = vcvt.s32.f32 %v50
    %v67 = vcvt.s32.f32 %v51
    %v68 = vcvt.s32.f32 %v52
    %v69 = vcvt.s32.f32 %v53
    %v70 = vcvt.s32.f32 %v54
    %v71 = vcvt.s32.f32 %v55
    %v72 = vcvt.s32.f32 %v56
    %v73 = vcvt.s32.f32 %v57
    %v74 = vcvt.s32.f32 %v58
    %v75 = vcvt.s32.f32 %v59
    %v76 = vcvt.s32.f32 %v60
    %v77 = vcvt.s32.f32 %v61
    %v78 = vcvt.s32.f32 %v62
    %v79 = vcvt.s32.f32 %v63
    %v80 = vcvt.s32.f32 %v64
    %v95 = vrot.slane %v65, 1
    %v96 = vrot.slane %v66, 1
    %v97 = vrot.slane %v67, 1
    %v98 = vrot.slane %v68, 1
    %v99 = vrot.slane %v69, 1
    %v100 = vrot.slane %v70, 1
    %v101 = vrot.slane %v71, 1
    %v102 = vrot.slane %v73, 1
    %v103 = vrot.slane %v74, 1
    %v104 = vrot.slane %v75, 1
    %v105 = vrot.slane %v76, 1
    %v106 = vrot.slane %v77, 1
    %v107 = vrot.slane %v78, 1
    %v108 = vrot.slane %v79, 1
    %109 = vrot.lane.b32.xlu0 %v95, 16
    %v110 = vpop.permute.xlu0 %109
    %111 = vrot.lane.b32.xlu0 %v96, 16
    %v112 = vpop.permute.xlu0 %111
    %113 = vrot.lane.b32.xlu0 %v97, 16
    %v114 = vpop.permute.xlu0 %113
    %115 = vrot.lane.b32.xlu0 %v98, 16
    %v116 = vpop.permute.xlu0 %115
    %117 = vrot.lane.b32.xlu0 %v99, 16
    %v118 = vpop.permute.xlu0 %117
    %119 = vrot.lane.b32.xlu0 %v100, 16
    %v120 = vpop.permute.xlu0 %119
    %121 = vrot.lane.b32.xlu0 %v101, 16
    %v122 = vpop.permute.xlu0 %121
    %123 = vrot.lane.b32.xlu0 %v102, 16
    %v124 = vpop.permute.xlu0 %123
    %125 = vrot.lane.b32.xlu0 %v103, 16
    %v126 = vpop.permute.xlu0 %125
    %127 = vrot.lane.b32.xlu0 %v104, 16
    %v128 = vpop.permute.xlu0 %127
    %129 = vrot.lane.b32.xlu0 %v105, 16
    %v130 = vpop.permute.xlu0 %129
    %131 = vrot.lane.b32.xlu0 %v106, 16
    %v132 = vpop.permute.xlu0 %131
    %133 = vrot.lane.b32.xlu0 %v107, 16
    %v134 = vpop.permute.xlu0 %133
    %135 = vrot.lane.b32.xlu0 %v108, 16
    %v136 = vpop.permute.xlu0 %135
    %153 = vrot.lane.b32.xlu0 %v66, 32
    %v154 = vpop.permute.xlu0 %153
    %155 = vrot.lane.b32.xlu0 %v67, 32
    %v156 = vpop.permute.xlu0 %155
    %157 = vrot.lane.b32.xlu0 %v68, 32
    %v158 = vpop.permute.xlu0 %157
    %159 = vrot.lane.b32.xlu0 %v69, 32
    %v160 = vpop.permute.xlu0 %159
    %161 = vrot.lane.b32.xlu0 %v70, 32
    %v162 = vpop.permute.xlu0 %161
    %163 = vrot.lane.b32.xlu0 %v71, 32
    %v164 = vpop.permute.xlu0 %163
    %165 = vrot.lane.b32.xlu0 %v72, 32
    %v166 = vpop.permute.xlu0 %165
    %167 = vrot.lane.b32.xlu0 %v74, 32
    %v168 = vpop.permute.xlu0 %167
    %169 = vrot.lane.b32.xlu0 %v75, 32
    %v170 = vpop.permute.xlu0 %169
    %171 = vrot.lane.b32.xlu0 %v76, 32
    %v172 = vpop.permute.xlu0 %171
    %173 = vrot.lane.b32.xlu0 %v77, 32
    %v174 = vpop.permute.xlu0 %173
    %175 = vrot.lane.b32.xlu0 %v78, 32
    %v176 = vpop.permute.xlu0 %175
    %177 = vrot.lane.b32.xlu0 %v79, 32
    %v178 = vpop.permute.xlu0 %177
    %179 = vrot.lane.b32.xlu0 %v80, 32
    %v180 = vpop.permute.xlu0 %179
    %v195 = vrot.slane %v72, 1
    %v196 = vrot.slane %v80, 1
    %197 = vrot.lane.b32.xlu0 %v96, 48
    %v198 = vpop.permute.xlu0 %197
    %199 = vrot.lane.b32.xlu0 %v97, 48
    %v200 = vpop.permute.xlu0 %199
    %201 = vrot.lane.b32.xlu0 %v98, 48
    %v202 = vpop.permute.xlu0 %201
    %203 = vrot.lane.b32.xlu0 %v99, 48
    %v204 = vpop.permute.xlu0 %203
    %205 = vrot.lane.b32.xlu0 %v100, 48
    %v206 = vpop.permute.xlu0 %205
    %207 = vrot.lane.b32.xlu0 %v101, 48
    %v208 = vpop.permute.xlu0 %207
    %209 = vrot.lane.b32.xlu0 %v195, 48
    %v210 = vpop.permute.xlu0 %209
    %211 = vrot.lane.b32.xlu0 %v103, 48
    %v212 = vpop.permute.xlu0 %211
    %213 = vrot.lane.b32.xlu0 %v104, 48
    %v214 = vpop.permute.xlu0 %213
    %215 = vrot.lane.b32.xlu0 %v105, 48
    %v216 = vpop.permute.xlu0 %215
    %217 = vrot.lane.b32.xlu0 %v106, 48
    %v218 = vpop.permute.xlu0 %217
    %219 = vrot.lane.b32.xlu0 %v107, 48
    %v220 = vpop.permute.xlu0 %219
    %221 = vrot.lane.b32.xlu0 %v108, 48
    %v222 = vpop.permute.xlu0 %221
    %223 = vrot.lane.b32.xlu0 %v196, 48
    %v224 = vpop.permute.xlu0 %223
    %vm239 = vcmask 130048
    %v240 = vsel %vm239, %v65, %v110
    %v241 = vsel %vm239, %v66, %v112
    %v242 = vsel %vm239, %v67, %v114
    %v243 = vsel %vm239, %v68, %v116
    %v244 = vsel %vm239, %v69, %v118
    %v245 = vsel %vm239, %v70, %v120
    %v246 = vsel %vm239, %v71, %v122
    %v247 = vsel %vm239, %v73, %v124
    %v248 = vsel %vm239, %v74, %v126
    %v249 = vsel %vm239, %v75, %v128
    %v250 = vsel %vm239, %v76, %v130
    %v251 = vsel %vm239, %v77, %v132
    %v252 = vsel %vm239, %v78, %v134
    %v253 = vsel %vm239, %v79, %v136
    %vm254 = vcmask 261120
    %v255 = vsel %vm254, %v240, %v154
    %v256 = vsel %vm254, %v241, %v156
    %v257 = vsel %vm254, %v242, %v158
    %v258 = vsel %vm254, %v243, %v160
    %v259 = vsel %vm254, %v244, %v162
    %v260 = vsel %vm254, %v245, %v164
    %v261 = vsel %vm254, %v246, %v166
    %v262 = vsel %vm254, %v247, %v168
    %v263 = vsel %vm254, %v248, %v170
    %v264 = vsel %vm254, %v249, %v172
    %v265 = vsel %vm254, %v250, %v174
    %v266 = vsel %vm254, %v251, %v176
    %v267 = vsel %vm254, %v252, %v178
    %v268 = vsel %vm254, %v253, %v180
    %vm269 = vcmask 392192
    %v270 = vsel %vm269, %v255, %v198
    %v271 = vsel %vm269, %v256, %v200
    %v272 = vsel %vm269, %v257, %v202
    %v273 = vsel %vm269, %v258, %v204
    %v274 = vsel %vm269, %v259, %v206
    %v275 = vsel %vm269, %v260, %v208
    %v276 = vsel %vm269, %v261, %v210
    %v277 = vsel %vm269, %v262, %v212
    %v278 = vsel %vm269, %v263, %v214
    %v279 = vsel %vm269, %v264, %v216
    %v280 = vsel %vm269, %v265, %v218
    %v281 = vsel %vm269, %v266, %v220
    %v282 = vsel %vm269, %v267, %v222
    %v283 = vsel %vm269, %v268, %v224
    %v298 = vcombine.high %v270, %v270
    %v300 = vunpack.c.l.s4 1966171168
    %v301 = vunpack.c.0.s8 %v300
    %v302 = vlaneseq
    %v303 = vshrl.u32 %v302, 7
    %v304 = vsub.s32 %v301, %v303
    %v305 = vrot.slane %v270, %v304
    %v307 = vunpack.c.l.s4 1966171168
    %v308 = vunpack.c.0.s8 %v307
    %v309 = vlaneseq
    %v310 = vshrl.u32 %v309, 7
    %v311 = vsub.s32 %v308, %v310
    %v312 = vrot.slane %v298, %v311
    %v313 = vcombine.high %v305, %v305
    %v314 = vcombine.high %v312, %v312
    %v316 = vunpack.c.l.s4 1966171168
    %v317 = vunpack.c.0.s8 %v316
    %v318 = vlaneseq
    %v319 = vshrl.u32 %v318, 7
    %v320 = vsub.s32 %v317, %v319
    %v321 = vrot.slane %v305, %v320
    %v323 = vunpack.c.l.s4 1966171168
    %v324 = vunpack.c.0.s8 %v323
    %v325 = vlaneseq
    %v326 = vshrl.u32 %v325, 7
    %v327 = vsub.s32 %v324, %v326
    %v328 = vrot.slane %v312, %v327
    %v330 = vunpack.c.l.s4 1966171168
    %v331 = vunpack.c.0.s8 %v330
    %v332 = vlaneseq
    %v333 = vshrl.u32 %v332, 7
    %v334 = vsub.s32 %v331, %v333
    %v335 = vrot.slane %v313, %v334
    %v337 = vunpack.c.l.s4 1966171168
    %v338 = vunpack.c.0.s8 %v337
    %v339 = vlaneseq
    %v340 = vshrl.u32 %v339, 7
    %v341 = vsub.s32 %v338, %v340
    %v342 = vrot.slane %v314, %v341
    %v343 = vcombine.high %v321, %v321
    %v344 = vcombine.high %v328, %v328
    %v345 = vcombine.high %v335, %v335
    %v346 = vcombine.high %v271, %v271
    %v348 = vunpack.c.l.s4 1966171168
    %v349 = vunpack.c.0.s8 %v348
    %v350 = vlaneseq
    %v351 = vshrl.u32 %v350, 7
    %v352 = vsub.s32 %v349, %v351
    %v353 = vrot.slane %v271, %v352
    %v355 = vunpack.c.l.s4 1966171168
    %v356 = vunpack.c.0.s8 %v355
    %v357 = vlaneseq
    %v358 = vshrl.u32 %v357, 7
    %v359 = vsub.s32 %v356, %v358
    %v360 = vrot.slane %v346, %v359
    %v361 = vcombine.high %v353, %v353
    %v362 = vcombine.high %v360, %v360
    %v364 = vunpack.c.l.s4 1966171168
    %v365 = vunpack.c.0.s8 %v364
    %v366 = vlaneseq
    %v367 = vshrl.u32 %v366, 7
    %v368 = vsub.s32 %v365, %v367
    %v369 = vrot.slane %v353, %v368
    %v371 = vunpack.c.l.s4 1966171168
    %v372 = vunpack.c.0.s8 %v371
    %v373 = vlaneseq
    %v374 = vshrl.u32 %v373, 7
    %v375 = vsub.s32 %v372, %v374
    %v376 = vrot.slane %v360, %v375
    %v378 = vunpack.c.l.s4 1966171168
    %v379 = vunpack.c.0.s8 %v378
    %v380 = vlaneseq
    %v381 = vshrl.u32 %v380, 7
    %v382 = vsub.s32 %v379, %v381
    %v383 = vrot.slane %v361, %v382
    %v385 = vunpack.c.l.s4 1966171168
    %v386 = vunpack.c.0.s8 %v385
    %v387 = vlaneseq
    %v388 = vshrl.u32 %v387, 7
    %v389 = vsub.s32 %v386, %v388
    %v390 = vrot.slane %v362, %v389
    %v391 = vcombine.high %v369, %v369
    %v392 = vcombine.high %v376, %v376
    %v393 = vcombine.high %v383, %v383
    %v394 = vcombine.high %v272, %v272
    %v396 = vunpack.c.l.s4 1966171168
    %v397 = vunpack.c.0.s8 %v396
    %v398 = vlaneseq
    %v399 = vshrl.u32 %v398, 7
    %v400 = vsub.s32 %v397, %v399
    %v401 = vrot.slane %v272, %v400
    %v403 = vunpack.c.l.s4 1966171168
    %v404 = vunpack.c.0.s8 %v403
    %v405 = vlaneseq
    %v406 = vshrl.u32 %v405, 7
    %v407 = vsub.s32 %v404, %v406
    %v408 = vrot.slane %v394, %v407
    %v409 = vcombine.high %v401, %v401
    %v410 = vcombine.high %v408, %v408
    %v412 = vunpack.c.l.s4 1966171168
    %v413 = vunpack.c.0.s8 %v412
    %v414 = vlaneseq
    %v415 = vshrl.u32 %v414, 7
    %v416 = vsub.s32 %v413, %v415
    %v417 = vrot.slane %v401, %v416
    %v419 = vunpack.c.l.s4 1966171168
    %v420 = vunpack.c.0.s8 %v419
    %v421 = vlaneseq
    %v422 = vshrl.u32 %v421, 7
    %v423 = vsub.s32 %v420, %v422
    %v424 = vrot.slane %v408, %v423
    %v426 = vunpack.c.l.s4 1966171168
    %v427 = vunpack.c.0.s8 %v426
    %v428 = vlaneseq
    %v429 = vshrl.u32 %v428, 7
    %v430 = vsub.s32 %v427, %v429
    %v431 = vrot.slane %v409, %v430
    %v433 = vunpack.c.l.s4 1966171168
    %v434 = vunpack.c.0.s8 %v433
    %v435 = vlaneseq
    %v436 = vshrl.u32 %v435, 7
    %v437 = vsub.s32 %v434, %v436
    %v438 = vrot.slane %v410, %v437
    %v439 = vcombine.high %v417, %v417
    %v440 = vcombine.high %v424, %v424
    %v441 = vcombine.high %v431, %v431
    %v442 = vcombine.high %v273, %v273
    %v444 = vunpack.c.l.s4 1966171168
    %v445 = vunpack.c.0.s8 %v444
    %v446 = vlaneseq
    %v447 = vshrl.u32 %v446, 7
    %v448 = vsub.s32 %v445, %v447
    %v449 = vrot.slane %v273, %v448
    %v451 = vunpack.c.l.s4 1966171168
    %v452 = vunpack.c.0.s8 %v451
    %v453 = vlaneseq
    %v454 = vshrl.u32 %v453, 7
    %v455 = vsub.s32 %v452, %v454
    %v456 = vrot.slane %v442, %v455
    %v457 = vcombine.high %v449, %v449
    %v458 = vcombine.high %v456, %v456
    %v460 = vunpack.c.l.s4 1966171168
    %v461 = vunpack.c.0.s8 %v460
    %v462 = vlaneseq
    %v463 = vshrl.u32 %v462, 7
    %v464 = vsub.s32 %v461, %v463
    %v465 = vrot.slane %v449, %v464
    %v467 = vunpack.c.l.s4 1966171168
    %v468 = vunpack.c.0.s8 %v467
    %v469 = vlaneseq
    %v470 = vshrl.u32 %v469, 7
    %v471 = vsub.s32 %v468, %v470
    %v472 = vrot.slane %v456, %v471
    %v474 = vunpack.c.l.s4 1966171168
    %v475 = vunpack.c.0.s8 %v474
    %v476 = vlaneseq
    %v477 = vshrl.u32 %v476, 7
    %v478 = vsub.s32 %v475, %v477
    %v479 = vrot.slane %v457, %v478
    %v481 = vunpack.c.l.s4 1966171168
    %v482 = vunpack.c.0.s8 %v481
    %v483 = vlaneseq
    %v484 = vshrl.u32 %v483, 7
    %v485 = vsub.s32 %v482, %v484
    %v486 = vrot.slane %v458, %v485
    %v487 = vcombine.high %v465, %v465
    %v488 = vcombine.high %v472, %v472
    %v489 = vcombine.high %v479, %v479
    %v490 = vcombine.high %v274, %v274
    %v492 = vunpack.c.l.s4 1966171168
    %v493 = vunpack.c.0.s8 %v492
    %v494 = vlaneseq
    %v495 = vshrl.u32 %v494, 7
    %v496 = vsub.s32 %v493, %v495
    %v497 = vrot.slane %v274, %v496
    %v499 = vunpack.c.l.s4 1966171168
    %v500 = vunpack.c.0.s8 %v499
    %v501 = vlaneseq
    %v502 = vshrl.u32 %v501, 7
    %v503 = vsub.s32 %v500, %v502
    %v504 = vrot.slane %v490, %v503
    %v505 = vcombine.high %v497, %v497
    %v506 = vcombine.high %v504, %v504
    %v508 = vunpack.c.l.s4 1966171168
    %v509 = vunpack.c.0.s8 %v508
    %v510 = vlaneseq
    %v511 = vshrl.u32 %v510, 7
    %v512 = vsub.s32 %v509, %v511
    %v513 = vrot.slane %v497, %v512
    %v515 = vunpack.c.l.s4 1966171168
    %v516 = vunpack.c.0.s8 %v515
    %v517 = vlaneseq
    %v518 = vshrl.u32 %v517, 7
    %v519 = vsub.s32 %v516, %v518
    %v520 = vrot.slane %v504, %v519
    %v522 = vunpack.c.l.s4 1966171168
    %v523 = vunpack.c.0.s8 %v522
    %v524 = vlaneseq
    %v525 = vshrl.u32 %v524, 7
    %v526 = vsub.s32 %v523, %v525
    %v527 = vrot.slane %v505, %v526
    %v529 = vunpack.c.l.s4 1966171168
    %v530 = vunpack.c.0.s8 %v529
    %v531 = vlaneseq
    %v532 = vshrl.u32 %v531, 7
    %v533 = vsub.s32 %v530, %v532
    %v534 = vrot.slane %v506, %v533
    %v535 = vcombine.high %v513, %v513
    %v536 = vcombine.high %v520, %v520
    %v537 = vcombine.high %v527, %v527
    %v538 = vcombine.high %v275, %v275
    %v540 = vunpack.c.l.s4 1966171168
    %v541 = vunpack.c.0.s8 %v540
    %v542 = vlaneseq
    %v543 = vshrl.u32 %v542, 7
    %v544 = vsub.s32 %v541, %v543
    %v545 = vrot.slane %v275, %v544
    %v547 = vunpack.c.l.s4 1966171168
    %v548 = vunpack.c.0.s8 %v547
    %v549 = vlaneseq
    %v550 = vshrl.u32 %v549, 7
    %v551 = vsub.s32 %v548, %v550
    %v552 = vrot.slane %v538, %v551
    %v553 = vcombine.high %v545, %v545
    %v554 = vcombine.high %v552, %v552
    %v556 = vunpack.c.l.s4 1966171168
    %v557 = vunpack.c.0.s8 %v556
    %v558 = vlaneseq
    %v559 = vshrl.u32 %v558, 7
    %v560 = vsub.s32 %v557, %v559
    %v561 = vrot.slane %v545, %v560
    %v563 = vunpack.c.l.s4 1966171168
    %v564 = vunpack.c.0.s8 %v563
    %v565 = vlaneseq
    %v566 = vshrl.u32 %v565, 7
    %v567 = vsub.s32 %v564, %v566
    %v568 = vrot.slane %v552, %v567
    %v570 = vunpack.c.l.s4 1966171168
    %v571 = vunpack.c.0.s8 %v570
    %v572 = vlaneseq
    %v573 = vshrl.u32 %v572, 7
    %v574 = vsub.s32 %v571, %v573
    %v575 = vrot.slane %v553, %v574
    %v577 = vunpack.c.l.s4 1966171168
    %v578 = vunpack.c.0.s8 %v577
    %v579 = vlaneseq
    %v580 = vshrl.u32 %v579, 7
    %v581 = vsub.s32 %v578, %v580
    %v582 = vrot.slane %v554, %v581
    %v583 = vcombine.high %v561, %v561
    %v584 = vcombine.high %v568, %v568
    %v585 = vcombine.high %v575, %v575
    %v586 = vcombine.high %v276, %v276
    %v588 = vunpack.c.l.s4 1966171168
    %v589 = vunpack.c.0.s8 %v588
    %v590 = vlaneseq
    %v591 = vshrl.u32 %v590, 7
    %v592 = vsub.s32 %v589, %v591
    %v593 = vrot.slane %v276, %v592
    %v595 = vunpack.c.l.s4 1966171168
    %v596 = vunpack.c.0.s8 %v595
    %v597 = vlaneseq
    %v598 = vshrl.u32 %v597, 7
    %v599 = vsub.s32 %v596, %v598
    %v600 = vrot.slane %v586, %v599
    %v601 = vcombine.high %v593, %v593
    %v602 = vcombine.high %v600, %v600
    %v604 = vunpack.c.l.s4 1966171168
    %v605 = vunpack.c.0.s8 %v604
    %v606 = vlaneseq
    %v607 = vshrl.u32 %v606, 7
    %v608 = vsub.s32 %v605, %v607
    %v609 = vrot.slane %v593, %v608
    %v611 = vunpack.c.l.s4 1966171168
    %v612 = vunpack.c.0.s8 %v611
    %v613 = vlaneseq
    %v614 = vshrl.u32 %v613, 7
    %v615 = vsub.s32 %v612, %v614
    %v616 = vrot.slane %v600, %v615
    %v618 = vunpack.c.l.s4 1966171168
    %v619 = vunpack.c.0.s8 %v618
    %v620 = vlaneseq
    %v621 = vshrl.u32 %v620, 7
    %v622 = vsub.s32 %v619, %v621
    %v623 = vrot.slane %v601, %v622
    %v625 = vunpack.c.l.s4 1966171168
    %v626 = vunpack.c.0.s8 %v625
    %v627 = vlaneseq
    %v628 = vshrl.u32 %v627, 7
    %v629 = vsub.s32 %v626, %v628
    %v630 = vrot.slane %v602, %v629
    %v631 = vcombine.high %v609, %v609
    %v632 = vcombine.high %v616, %v616
    %v633 = vcombine.high %v623, %v623
    %v634 = vcombine.high %v277, %v277
    %v636 = vunpack.c.l.s4 1966171168
    %v637 = vunpack.c.0.s8 %v636
    %v638 = vlaneseq
    %v639 = vshrl.u32 %v638, 7
    %v640 = vsub.s32 %v637, %v639
    %v641 = vrot.slane %v277, %v640
    %v643 = vunpack.c.l.s4 1966171168
    %v644 = vunpack.c.0.s8 %v643
    %v645 = vlaneseq
    %v646 = vshrl.u32 %v645, 7
    %v647 = vsub.s32 %v644, %v646
    %v648 = vrot.slane %v634, %v647
    %v649 = vcombine.high %v641, %v641
    %v650 = vcombine.high %v648, %v648
    %v652 = vunpack.c.l.s4 1966171168
    %v653 = vunpack.c.0.s8 %v652
    %v654 = vlaneseq
    %v655 = vshrl.u32 %v654, 7
    %v656 = vsub.s32 %v653, %v655
    %v657 = vrot.slane %v641, %v656
    %v659 = vunpack.c.l.s4 1966171168
    %v660 = vunpack.c.0.s8 %v659
    %v661 = vlaneseq
    %v662 = vshrl.u32 %v661, 7
    %v663 = vsub.s32 %v660, %v662
    %v664 = vrot.slane %v648, %v663
    %v666 = vunpack.c.l.s4 1966171168
    %v667 = vunpack.c.0.s8 %v666
    %v668 = vlaneseq
    %v669 = vshrl.u32 %v668, 7
    %v670 = vsub.s32 %v667, %v669
    %v671 = vrot.slane %v649, %v670
    %v673 = vunpack.c.l.s4 1966171168
    %v674 = vunpack.c.0.s8 %v673
    %v675 = vlaneseq
    %v676 = vshrl.u32 %v675, 7
    %v677 = vsub.s32 %v674, %v676
    %v678 = vrot.slane %v650, %v677
    %v679 = vcombine.high %v657, %v657
    %v680 = vcombine.high %v664, %v664
    %v681 = vcombine.high %v671, %v671
    %v682 = vcombine.high %v278, %v278
    %v684 = vunpack.c.l.s4 1966171168
    %v685 = vunpack.c.0.s8 %v684
    %v686 = vlaneseq
    %v687 = vshrl.u32 %v686, 7
    %v688 = vsub.s32 %v685, %v687
    %v689 = vrot.slane %v278, %v688
    %v691 = vunpack.c.l.s4 1966171168
    %v692 = vunpack.c.0.s8 %v691
    %v693 = vlaneseq
    %v694 = vshrl.u32 %v693, 7
    %v695 = vsub.s32 %v692, %v694
    %v696 = vrot.slane %v682, %v695
    %v697 = vcombine.high %v689, %v689
    %v698 = vcombine.high %v696, %v696
    %v700 = vunpack.c.l.s4 1966171168
    %v701 = vunpack.c.0.s8 %v700
    %v702 = vlaneseq
    %v703 = vshrl.u32 %v702, 7
    %v704 = vsub.s32 %v701, %v703
    %v705 = vrot.slane %v689, %v704
    %v707 = vunpack.c.l.s4 1966171168
    %v708 = vunpack.c.0.s8 %v707
    %v709 = vlaneseq
    %v710 = vshrl.u32 %v709, 7
    %v711 = vsub.s32 %v708, %v710
    %v712 = vrot.slane %v696, %v711
    %v714 = vunpack.c.l.s4 1966171168
    %v715 = vunpack.c.0.s8 %v714
    %v716 = vlaneseq
    %v717 = vshrl.u32 %v716, 7
    %v718 = vsub.s32 %v715, %v717
    %v719 = vrot.slane %v697, %v718
    %v721 = vunpack.c.l.s4 1966171168
    %v722 = vunpack.c.0.s8 %v721
    %v723 = vlaneseq
    %v724 = vshrl.u32 %v723, 7
    %v725 = vsub.s32 %v722, %v724
    %v726 = vrot.slane %v698, %v725
    %v727 = vcombine.high %v705, %v705
    %v728 = vcombine.high %v712, %v712
    %v729 = vcombine.high %v719, %v719
    %v730 = vcombine.high %v279, %v279
    %v732 = vunpack.c.l.s4 1966171168
    %v733 = vunpack.c.0.s8 %v732
    %v734 = vlaneseq
    %v735 = vshrl.u32 %v734, 7
    %v736 = vsub.s32 %v733, %v735
    %v737 = vrot.slane %v279, %v736
    %v739 = vunpack.c.l.s4 1966171168
    %v740 = vunpack.c.0.s8 %v739
    %v741 = vlaneseq
    %v742 = vshrl.u32 %v741, 7
    %v743 = vsub.s32 %v740, %v742
    %v744 = vrot.slane %v730, %v743
    %v745 = vcombine.high %v737, %v737
    %v746 = vcombine.high %v744, %v744
    %v748 = vunpack.c.l.s4 1966171168
    %v749 = vunpack.c.0.s8 %v748
    %v750 = vlaneseq
    %v751 = vshrl.u32 %v750, 7
    %v752 = vsub.s32 %v749, %v751
    %v753 = vrot.slane %v737, %v752
    %v755 = vunpack.c.l.s4 1966171168
    %v756 = vunpack.c.0.s8 %v755
    %v757 = vlaneseq
    %v758 = vshrl.u32 %v757, 7
    %v759 = vsub.s32 %v756, %v758
    %v760 = vrot.slane %v744, %v759
    %v762 = vunpack.c.l.s4 1966171168
    %v763 = vunpack.c.0.s8 %v762
    %v764 = vlaneseq
    %v765 = vshrl.u32 %v764, 7
    %v766 = vsub.s32 %v763, %v765
    %v767 = vrot.slane %v745, %v766
    %v769 = vunpack.c.l.s4 1966171168
    %v770 = vunpack.c.0.s8 %v769
    %v771 = vlaneseq
    %v772 = vshrl.u32 %v771, 7
    %v773 = vsub.s32 %v770, %v772
    %v774 = vrot.slane %v746, %v773
    %v775 = vcombine.high %v753, %v753
    %v776 = vcombine.high %v760, %v760
    %v777 = vcombine.high %v767, %v767
    %v778 = vcombine.high %v280, %v280
    %v780 = vunpack.c.l.s4 1966171168
    %v781 = vunpack.c.0.s8 %v780
    %v782 = vlaneseq
    %v783 = vshrl.u32 %v782, 7
    %v784 = vsub.s32 %v781, %v783
    %v785 = vrot.slane %v280, %v784
    %v787 = vunpack.c.l.s4 1966171168
    %v788 = vunpack.c.0.s8 %v787
    %v789 = vlaneseq
    %v790 = vshrl.u32 %v789, 7
    %v791 = vsub.s32 %v788, %v790
    %v792 = vrot.slane %v778, %v791
    %v793 = vcombine.high %v785, %v785
    %v794 = vcombine.high %v792, %v792
    %v796 = vunpack.c.l.s4 1966171168
    %v797 = vunpack.c.0.s8 %v796
    %v798 = vlaneseq
    %v799 = vshrl.u32 %v798, 7
    %v800 = vsub.s32 %v797, %v799
    %v801 = vrot.slane %v785, %v800
    %v803 = vunpack.c.l.s4 1966171168
    %v804 = vunpack.c.0.s8 %v803
    %v805 = vlaneseq
    %v806 = vshrl.u32 %v805, 7
    %v807 = vsub.s32 %v804, %v806
    %v808 = vrot.slane %v792, %v807
    %v810 = vunpack.c.l.s4 1966171168
    %v811 = vunpack.c.0.s8 %v810
    %v812 = vlaneseq
    %v813 = vshrl.u32 %v812, 7
    %v814 = vsub.s32 %v811, %v813
    %v815 = vrot.slane %v793, %v814
    %v817 = vunpack.c.l.s4 1966171168
    %v818 = vunpack.c.0.s8 %v817
    %v819 = vlaneseq
    %v820 = vshrl.u32 %v819, 7
    %v821 = vsub.s32 %v818, %v820
    %v822 = vrot.slane %v794, %v821
    %v823 = vcombine.high %v801, %v801
    %v824 = vcombine.high %v808, %v808
    %v825 = vcombine.high %v815, %v815
    %v826 = vcombine.high %v281, %v281
    %v828 = vunpack.c.l.s4 1966171168
    %v829 = vunpack.c.0.s8 %v828
    %v830 = vlaneseq
    %v831 = vshrl.u32 %v830, 7
    %v832 = vsub.s32 %v829, %v831
    %v833 = vrot.slane %v281, %v832
    %v835 = vunpack.c.l.s4 1966171168
    %v836 = vunpack.c.0.s8 %v835
    %v837 = vlaneseq
    %v838 = vshrl.u32 %v837, 7
    %v839 = vsub.s32 %v836, %v838
    %v840 = vrot.slane %v826, %v839
    %v841 = vcombine.high %v833, %v833
    %v842 = vcombine.high %v840, %v840
    %v844 = vunpack.c.l.s4 1966171168
    %v845 = vunpack.c.0.s8 %v844
    %v846 = vlaneseq
    %v847 = vshrl.u32 %v846, 7
    %v848 = vsub.s32 %v845, %v847
    %v849 = vrot.slane %v833, %v848
    %v851 = vunpack.c.l.s4 1966171168
    %v852 = vunpack.c.0.s8 %v851
    %v853 = vlaneseq
    %v854 = vshrl.u32 %v853, 7
    %v855 = vsub.s32 %v852, %v854
    %v856 = vrot.slane %v840, %v855
    %v858 = vunpack.c.l.s4 1966171168
    %v859 = vunpack.c.0.s8 %v858
    %v860 = vlaneseq
    %v861 = vshrl.u32 %v860, 7
    %v862 = vsub.s32 %v859, %v861
    %v863 = vrot.slane %v841, %v862
    %v865 = vunpack.c.l.s4 1966171168
    %v866 = vunpack.c.0.s8 %v865
    %v867 = vlaneseq
    %v868 = vshrl.u32 %v867, 7
    %v869 = vsub.s32 %v866, %v868
    %v870 = vrot.slane %v842, %v869
    %v871 = vcombine.high %v849, %v849
    %v872 = vcombine.high %v856, %v856
    %v873 = vcombine.high %v863, %v863
    %v874 = vcombine.high %v282, %v282
    %v876 = vunpack.c.l.s4 1966171168
    %v877 = vunpack.c.0.s8 %v876
    %v878 = vlaneseq
    %v879 = vshrl.u32 %v878, 7
    %v880 = vsub.s32 %v877, %v879
    %v881 = vrot.slane %v282, %v880
    %v883 = vunpack.c.l.s4 1966171168
    %v884 = vunpack.c.0.s8 %v883
    %v885 = vlaneseq
    %v886 = vshrl.u32 %v885, 7
    %v887 = vsub.s32 %v884, %v886
    %v888 = vrot.slane %v874, %v887
    %v889 = vcombine.high %v881, %v881
    %v890 = vcombine.high %v888, %v888
    %v892 = vunpack.c.l.s4 1966171168
    %v893 = vunpack.c.0.s8 %v892
    %v894 = vlaneseq
    %v895 = vshrl.u32 %v894, 7
    %v896 = vsub.s32 %v893, %v895
    %v897 = vrot.slane %v881, %v896
    %v899 = vunpack.c.l.s4 1966171168
    %v900 = vunpack.c.0.s8 %v899
    %v901 = vlaneseq
    %v902 = vshrl.u32 %v901, 7
    %v903 = vsub.s32 %v900, %v902
    %v904 = vrot.slane %v888, %v903
    %v906 = vunpack.c.l.s4 1966171168
    %v907 = vunpack.c.0.s8 %v906
    %v908 = vlaneseq
    %v909 = vshrl.u32 %v908, 7
    %v910 = vsub.s32 %v907, %v909
    %v911 = vrot.slane %v889, %v910
    %v913 = vunpack.c.l.s4 1966171168
    %v914 = vunpack.c.0.s8 %v913
    %v915 = vlaneseq
    %v916 = vshrl.u32 %v915, 7
    %v917 = vsub.s32 %v914, %v916
    %v918 = vrot.slane %v890, %v917
    %v919 = vcombine.high %v897, %v897
    %v920 = vcombine.high %v904, %v904
    %v921 = vcombine.high %v911, %v911
    %v922 = vcombine.high %v283, %v283
    %v924 = vunpack.c.l.s4 1966171168
    %v925 = vunpack.c.0.s8 %v924
    %v926 = vlaneseq
    %v927 = vshrl.u32 %v926, 7
    %v928 = vsub.s32 %v925, %v927
    %v929 = vrot.slane %v283, %v928
    %v931 = vunpack.c.l.s4 1966171168
    %v932 = vunpack.c.0.s8 %v931
    %v933 = vlaneseq
    %v934 = vshrl.u32 %v933, 7
    %v935 = vsub.s32 %v932, %v934
    %v936 = vrot.slane %v922, %v935
    %v937 = vcombine.high %v929, %v929
    %v938 = vcombine.high %v936, %v936
    %v940 = vunpack.c.l.s4 1966171168
    %v941 = vunpack.c.0.s8 %v940
    %v942 = vlaneseq
    %v943 = vshrl.u32 %v942, 7
    %v944 = vsub.s32 %v941, %v943
    %v945 = vrot.slane %v929, %v944
    %v947 = vunpack.c.l.s4 1966171168
    %v948 = vunpack.c.0.s8 %v947
    %v949 = vlaneseq
    %v950 = vshrl.u32 %v949, 7
    %v951 = vsub.s32 %v948, %v950
    %v952 = vrot.slane %v936, %v951
    %v954 = vunpack.c.l.s4 1966171168
    %v955 = vunpack.c.0.s8 %v954
    %v956 = vlaneseq
    %v957 = vshrl.u32 %v956, 7
    %v958 = vsub.s32 %v955, %v957
    %v959 = vrot.slane %v937, %v958
    %v961 = vunpack.c.l.s4 1966171168
    %v962 = vunpack.c.0.s8 %v961
    %v963 = vlaneseq
    %v964 = vshrl.u32 %v963, 7
    %v965 = vsub.s32 %v962, %v964
    %v966 = vrot.slane %v938, %v965
    %v967 = vcombine.high %v945, %v945
    %v968 = vcombine.high %v952, %v952
    %v969 = vcombine.high %v959, %v959
    %v970 = vld [vmem:[%s1] sm:$0xff]
    %v971 = vld [vmem:[%s1 + $0x8] sm:$0xff]
    %v972 = vld [vmem:[%s1 + $0x10] sm:$0xff]
    %v973 = vld [vmem:[%s1 + $0x18] sm:$0xff]
    %v974 = vld [vmem:[%s1 + $0x20] sm:$0xff]
    %v975 = vld [vmem:[%s1 + $0x28] sm:$0xff]
    %v976 = vld [vmem:[%s1 + $0x30] sm:$0xff]
    %v977 = vld [vmem:[%s1 + $0x38] sm:$0xff]
    %v978 = vld [vmem:[%s2] sm:$0x1]
    %v980 = vlaneseq
    %v981 = vshrl.u32 %v980, 7
    %v982 = vsub.s32 0, %v981
    %v983 = vrot.slane %v978, %v982
    %v985 = vcombine.low %v321, %v335
    %v986 = vcombine.low %v343, %v345
    %v987 = vcombine.low %v328, %v342
    %v988 = vcombine.low %v344, %v369
    %v990 = vunpack.c.l.s4 1966171168
    %v991 = vunpack.c.0.s8 %v990
    %v992 = vlaneseq
    %v993 = vshrl.u32 %v992, 7
    %v994 = vsub.s32 %v991, %v993
    %v995 = vrot.slane %v985, %v994
    %v997 = vunpack.c.l.s4 1966171168
    %v998 = vunpack.c.0.s8 %v997
    %v999 = vlaneseq
    %v1000 = vshrl.u32 %v999, 7
    %v1001 = vsub.s32 %v998, %v1000
    %v1002 = vrot.slane %v986, %v1001
    %v1004 = vunpack.c.l.s4 1966171168
    %v1005 = vunpack.c.0.s8 %v1004
    %v1006 = vlaneseq
    %v1007 = vshrl.u32 %v1006, 7
    %v1008 = vsub.s32 %v1005, %v1007
    %v1009 = vrot.slane %v987, %v1008
    %v1011 = vunpack.c.l.s4 1966171168
    %v1012 = vunpack.c.0.s8 %v1011
    %v1013 = vlaneseq
    %v1014 = vshrl.u32 %v1013, 7
    %v1015 = vsub.s32 %v1012, %v1014
    %v1016 = vrot.slane %v988, %v1015
    %v1017 = vcombine.low %v995, %v1002
    %v1018 = vcombine.low %v1009, %v1016
    %v1020 = vunpack.c.l.s4 1966171168
    %v1021 = vunpack.c.0.s8 %v1020
    %v1022 = vlaneseq
    %v1023 = vshrl.u32 %v1022, 7
    %v1024 = vsub.s32 %v1021, %v1023
    %v1025 = vrot.slane %v1017, %v1024
    %v1027 = vunpack.c.l.s4 1966171168
    %v1028 = vunpack.c.0.s8 %v1027
    %v1029 = vlaneseq
    %v1030 = vshrl.u32 %v1029, 7
    %v1031 = vsub.s32 %v1028, %v1030
    %v1032 = vrot.slane %v1018, %v1031
    %v1033 = vcombine.low %v1025, %v1032
    %v1034 = vcombine.low %v383, %v391
    %v1035 = vcombine.low %v393, %v376
    %v1036 = vcombine.low %v390, %v392
    %v1037 = vcombine.low %v417, %v431
    %v1039 = vunpack.c.l.s4 1966171168
    %v1040 = vunpack.c.0.s8 %v1039
    %v1041 = vlaneseq
    %v1042 = vshrl.u32 %v1041, 7
    %v1043 = vsub.s32 %v1040, %v1042
    %v1044 = vrot.slane %v1034, %v1043
    %v1046 = vunpack.c.l.s4 1966171168
    %v1047 = vunpack.c.0.s8 %v1046
    %v1048 = vlaneseq
    %v1049 = vshrl.u32 %v1048, 7
    %v1050 = vsub.s32 %v1047, %v1049
    %v1051 = vrot.slane %v1035, %v1050
    %v1053 = vunpack.c.l.s4 1966171168
    %v1054 = vunpack.c.0.s8 %v1053
    %v1055 = vlaneseq
    %v1056 = vshrl.u32 %v1055, 7
    %v1057 = vsub.s32 %v1054, %v1056
    %v1058 = vrot.slane %v1036, %v1057
    %v1060 = vunpack.c.l.s4 1966171168
    %v1061 = vunpack.c.0.s8 %v1060
    %v1062 = vlaneseq
    %v1063 = vshrl.u32 %v1062, 7
    %v1064 = vsub.s32 %v1061, %v1063
    %v1065 = vrot.slane %v1037, %v1064
    %v1066 = vcombine.low %v1044, %v1051
    %v1067 = vcombine.low %v1058, %v1065
    %v1069 = vunpack.c.l.s4 1966171168
    %v1070 = vunpack.c.0.s8 %v1069
    %v1071 = vlaneseq
    %v1072 = vshrl.u32 %v1071, 7
    %v1073 = vsub.s32 %v1070, %v1072
    %v1074 = vrot.slane %v1066, %v1073
    %v1076 = vunpack.c.l.s4 1966171168
    %v1077 = vunpack.c.0.s8 %v1076
    %v1078 = vlaneseq
    %v1079 = vshrl.u32 %v1078, 7
    %v1080 = vsub.s32 %v1077, %v1079
    %v1081 = vrot.slane %v1067, %v1080
    %v1082 = vcombine.low %v1074, %v1081
    %v1083 = vcombine.low %v439, %v441
    %v1084 = vcombine.low %v424, %v438
    %v1085 = vcombine.low %v440, %v465
    %v1086 = vcombine.low %v479, %v487
    %v1088 = vunpack.c.l.s4 1966171168
    %v1089 = vunpack.c.0.s8 %v1088
    %v1090 = vlaneseq
    %v1091 = vshrl.u32 %v1090, 7
    %v1092 = vsub.s32 %v1089, %v1091
    %v1093 = vrot.slane %v1083, %v1092
    %v1095 = vunpack.c.l.s4 1966171168
    %v1096 = vunpack.c.0.s8 %v1095
    %v1097 = vlaneseq
    %v1098 = vshrl.u32 %v1097, 7
    %v1099 = vsub.s32 %v1096, %v1098
    %v1100 = vrot.slane %v1084, %v1099
    %v1102 = vunpack.c.l.s4 1966171168
    %v1103 = vunpack.c.0.s8 %v1102
    %v1104 = vlaneseq
    %v1105 = vshrl.u32 %v1104, 7
    %v1106 = vsub.s32 %v1103, %v1105
    %v1107 = vrot.slane %v1085, %v1106
    %v1109 = vunpack.c.l.s4 1966171168
    %v1110 = vunpack.c.0.s8 %v1109
    %v1111 = vlaneseq
    %v1112 = vshrl.u32 %v1111, 7
    %v1113 = vsub.s32 %v1110, %v1112
    %v1114 = vrot.slane %v1086, %v1113
    %v1115 = vcombine.low %v1093, %v1100
    %v1116 = vcombine.low %v1107, %v1114
    %v1118 = vunpack.c.l.s4 1966171168
    %v1119 = vunpack.c.0.s8 %v1118
    %v1120 = vlaneseq
    %v1121 = vshrl.u32 %v1120, 7
    %v1122 = vsub.s32 %v1119, %v1121
    %v1123 = vrot.slane %v1115, %v1122
    %v1125 = vunpack.c.l.s4 1966171168
    %v1126 = vunpack.c.0.s8 %v1125
    %v1127 = vlaneseq
    %v1128 = vshrl.u32 %v1127, 7
    %v1129 = vsub.s32 %v1126, %v1128
    %v1130 = vrot.slane %v1116, %v1129
    %v1131 = vcombine.low %v1123, %v1130
    %v1132 = vcombine.low %v489, %v472
    %v1133 = vcombine.low %v486, %v488
    %v1134 = vcombine.low %v513, %v527
    %v1135 = vcombine.low %v535, %v537
    %v1137 = vunpack.c.l.s4 1966171168
    %v1138 = vunpack.c.0.s8 %v1137
    %v1139 = vlaneseq
    %v1140 = vshrl.u32 %v1139, 7
    %v1141 = vsub.s32 %v1138, %v1140
    %v1142 = vrot.slane %v1132, %v1141
    %v1144 = vunpack.c.l.s4 1966171168
    %v1145 = vunpack.c.0.s8 %v1144
    %v1146 = vlaneseq
    %v1147 = vshrl.u32 %v1146, 7
    %v1148 = vsub.s32 %v1145, %v1147
    %v1149 = vrot.slane %v1133, %v1148
    %v1151 = vunpack.c.l.s4 1966171168
    %v1152 = vunpack.c.0.s8 %v1151
    %v1153 = vlaneseq
    %v1154 = vshrl.u32 %v1153, 7
    %v1155 = vsub.s32 %v1152, %v1154
    %v1156 = vrot.slane %v1134, %v1155
    %v1158 = vunpack.c.l.s4 1966171168
    %v1159 = vunpack.c.0.s8 %v1158
    %v1160 = vlaneseq
    %v1161 = vshrl.u32 %v1160, 7
    %v1162 = vsub.s32 %v1159, %v1161
    %v1163 = vrot.slane %v1135, %v1162
    %v1164 = vcombine.low %v1142, %v1149
    %v1165 = vcombine.low %v1156, %v1163
    %v1167 = vunpack.c.l.s4 1966171168
    %v1168 = vunpack.c.0.s8 %v1167
    %v1169 = vlaneseq
    %v1170 = vshrl.u32 %v1169, 7
    %v1171 = vsub.s32 %v1168, %v1170
    %v1172 = vrot.slane %v1164, %v1171
    %v1174 = vunpack.c.l.s4 1966171168
    %v1175 = vunpack.c.0.s8 %v1174
    %v1176 = vlaneseq
    %v1177 = vshrl.u32 %v1176, 7
    %v1178 = vsub.s32 %v1175, %v1177
    %v1179 = vrot.slane %v1165, %v1178
    %v1180 = vcombine.low %v1172, %v1179
    %v1181 = vcombine.low %v520, %v534
    %v1182 = vcombine.low %v536, %v561
    %v1183 = vcombine.low %v575, %v583
    %v1184 = vcombine.low %v585, %v568
    %v1186 = vunpack.c.l.s4 1966171168
    %v1187 = vunpack.c.0.s8 %v1186
    %v1188 = vlaneseq
    %v1189 = vshrl.u32 %v1188, 7
    %v1190 = vsub.s32 %v1187, %v1189
    %v1191 = vrot.slane %v1181, %v1190
    %v1193 = vunpack.c.l.s4 1966171168
    %v1194 = vunpack.c.0.s8 %v1193
    %v1195 = vlaneseq
    %v1196 = vshrl.u32 %v1195, 7
    %v1197 = vsub.s32 %v1194, %v1196
    %v1198 = vrot.slane %v1182, %v1197
    %v1200 = vunpack.c.l.s4 1966171168
    %v1201 = vunpack.c.0.s8 %v1200
    %v1202 = vlaneseq
    %v1203 = vshrl.u32 %v1202, 7
    %v1204 = vsub.s32 %v1201, %v1203
    %v1205 = vrot.slane %v1183, %v1204
    %v1207 = vunpack.c.l.s4 1966171168
    %v1208 = vunpack.c.0.s8 %v1207
    %v1209 = vlaneseq
    %v1210 = vshrl.u32 %v1209, 7
    %v1211 = vsub.s32 %v1208, %v1210
    %v1212 = vrot.slane %v1184, %v1211
    %v1213 = vcombine.low %v1191, %v1198
    %v1214 = vcombine.low %v1205, %v1212
    %v1216 = vunpack.c.l.s4 1966171168
    %v1217 = vunpack.c.0.s8 %v1216
    %v1218 = vlaneseq
    %v1219 = vshrl.u32 %v1218, 7
    %v1220 = vsub.s32 %v1217, %v1219
    %v1221 = vrot.slane %v1213, %v1220
    %v1223 = vunpack.c.l.s4 1966171168
    %v1224 = vunpack.c.0.s8 %v1223
    %v1225 = vlaneseq
    %v1226 = vshrl.u32 %v1225, 7
    %v1227 = vsub.s32 %v1224, %v1226
    %v1228 = vrot.slane %v1214, %v1227
    %v1229 = vcombine.low %v1221, %v1228
    %v1230 = vcombine.low %v582, %v584
    %v1231 = vcombine.low %v609, %v623
    %v1232 = vcombine.low %v631, %v633
    %v1233 = vcombine.low %v616, %v630
    %v1235 = vunpack.c.l.s4 1966171168
    %v1236 = vunpack.c.0.s8 %v1235
    %v1237 = vlaneseq
    %v1238 = vshrl.u32 %v1237, 7
    %v1239 = vsub.s32 %v1236, %v1238
    %v1240 = vrot.slane %v1230, %v1239
    %v1242 = vunpack.c.l.s4 1966171168
    %v1243 = vunpack.c.0.s8 %v1242
    %v1244 = vlaneseq
    %v1245 = vshrl.u32 %v1244, 7
    %v1246 = vsub.s32 %v1243, %v1245
    %v1247 = vrot.slane %v1231, %v1246
    %v1249 = vunpack.c.l.s4 1966171168
    %v1250 = vunpack.c.0.s8 %v1249
    %v1251 = vlaneseq
    %v1252 = vshrl.u32 %v1251, 7
    %v1253 = vsub.s32 %v1250, %v1252
    %v1254 = vrot.slane %v1232, %v1253
    %v1256 = vunpack.c.l.s4 1966171168
    %v1257 = vunpack.c.0.s8 %v1256
    %v1258 = vlaneseq
    %v1259 = vshrl.u32 %v1258, 7
    %v1260 = vsub.s32 %v1257, %v1259
    %v1261 = vrot.slane %v1233, %v1260
    %v1262 = vcombine.low %v1240, %v1247
    %v1263 = vcombine.low %v1254, %v1261
    %v1265 = vunpack.c.l.s4 1966171168
    %v1266 = vunpack.c.0.s8 %v1265
    %v1267 = vlaneseq
    %v1268 = vshrl.u32 %v1267, 7
    %v1269 = vsub.s32 %v1266, %v1268
    %v1270 = vrot.slane %v1262, %v1269
    %v1272 = vunpack.c.l.s4 1966171168
    %v1273 = vunpack.c.0.s8 %v1272
    %v1274 = vlaneseq
    %v1275 = vshrl.u32 %v1274, 7
    %v1276 = vsub.s32 %v1273, %v1275
    %v1277 = vrot.slane %v1263, %v1276
    %v1278 = vcombine.low %v1270, %v1277
    %v1279 = vcombine.low %v632, %v657
    %v1280 = vcombine.low %v671, %v679
    %v1281 = vcombine.low %v681, %v664
    %v1282 = vcombine.low %v678, %v680
    %v1284 = vunpack.c.l.s4 1966171168
    %v1285 = vunpack.c.0.s8 %v1284
    %v1286 = vlaneseq
    %v1287 = vshrl.u32 %v1286, 7
    %v1288 = vsub.s32 %v1285, %v1287
    %v1289 = vrot.slane %v1279, %v1288
    %v1291 = vunpack.c.l.s4 1966171168
    %v1292 = vunpack.c.0.s8 %v1291
    %v1293 = vlaneseq
    %v1294 = vshrl.u32 %v1293, 7
    %v1295 = vsub.s32 %v1292, %v1294
    %v1296 = vrot.slane %v1280, %v1295
    %v1298 = vunpack.c.l.s4 1966171168
    %v1299 = vunpack.c.0.s8 %v1298
    %v1300 = vlaneseq
    %v1301 = vshrl.u32 %v1300, 7
    %v1302 = vsub.s32 %v1299, %v1301
    %v1303 = vrot.slane %v1281, %v1302
    %v1305 = vunpack.c.l.s4 1966171168
    %v1306 = vunpack.c.0.s8 %v1305
    %v1307 = vlaneseq
    %v1308 = vshrl.u32 %v1307, 7
    %v1309 = vsub.s32 %v1306, %v1308
    %v1310 = vrot.slane %v1282, %v1309
    %v1311 = vcombine.low %v1289, %v1296
    %v1312 = vcombine.low %v1303, %v1310
    %v1314 = vunpack.c.l.s4 1966171168
    %v1315 = vunpack.c.0.s8 %v1314
    %v1316 = vlaneseq
    %v1317 = vshrl.u32 %v1316, 7
    %v1318 = vsub.s32 %v1315, %v1317
    %v1319 = vrot.slane %v1311, %v1318
    %v1321 = vunpack.c.l.s4 1966171168
    %v1322 = vunpack.c.0.s8 %v1321
    %v1323 = vlaneseq
    %v1324 = vshrl.u32 %v1323, 7
    %v1325 = vsub.s32 %v1322, %v1324
    %v1326 = vrot.slane %v1312, %v1325
    %v1327 = vcombine.low %v1319, %v1326
    %v1328 = vcombine.low %v705, %v719
    %v1329 = vcombine.low %v727, %v729
    %v1330 = vcombine.low %v712, %v726
    %v1331 = vcombine.low %v728, %v753
    %v1333 = vunpack.c.l.s4 1966171168
    %v1334 = vunpack.c.0.s8 %v1333
    %v1335 = vlaneseq
    %v1336 = vshrl.u32 %v1335, 7
    %v1337 = vsub.s32 %v1334, %v1336
    %v1338 = vrot.slane %v1328, %v1337
    %v1340 = vunpack.c.l.s4 1966171168
    %v1341 = vunpack.c.0.s8 %v1340
    %v1342 = vlaneseq
    %v1343 = vshrl.u32 %v1342, 7
    %v1344 = vsub.s32 %v1341, %v1343
    %v1345 = vrot.slane %v1329, %v1344
    %v1347 = vunpack.c.l.s4 1966171168
    %v1348 = vunpack.c.0.s8 %v1347
    %v1349 = vlaneseq
    %v1350 = vshrl.u32 %v1349, 7
    %v1351 = vsub.s32 %v1348, %v1350
    %v1352 = vrot.slane %v1330, %v1351
    %v1354 = vunpack.c.l.s4 1966171168
    %v1355 = vunpack.c.0.s8 %v1354
    %v1356 = vlaneseq
    %v1357 = vshrl.u32 %v1356, 7
    %v1358 = vsub.s32 %v1355, %v1357
    %v1359 = vrot.slane %v1331, %v1358
    %v1360 = vcombine.low %v1338, %v1345
    %v1361 = vcombine.low %v1352, %v1359
    %v1363 = vunpack.c.l.s4 1966171168
    %v1364 = vunpack.c.0.s8 %v1363
    %v1365 = vlaneseq
    %v1366 = vshrl.u32 %v1365, 7
    %v1367 = vsub.s32 %v1364, %v1366
    %v1368 = vrot.slane %v1360, %v1367
    %v1370 = vunpack.c.l.s4 1966171168
    %v1371 = vunpack.c.0.s8 %v1370
    %v1372 = vlaneseq
    %v1373 = vshrl.u32 %v1372, 7
    %v1374 = vsub.s32 %v1371, %v1373
    %v1375 = vrot.slane %v1361, %v1374
    %v1376 = vcombine.low %v1368, %v1375
    %v1377 = vcombine.low %v767, %v775
    %v1378 = vcombine.low %v777, %v760
    %v1379 = vcombine.low %v774, %v776
    %v1380 = vcombine.low %v801, %v815
    %v1382 = vunpack.c.l.s4 1966171168
    %v1383 = vunpack.c.0.s8 %v1382
    %v1384 = vlaneseq
    %v1385 = vshrl.u32 %v1384, 7
    %v1386 = vsub.s32 %v1383, %v1385
    %v1387 = vrot.slane %v1377, %v1386
    %v1389 = vunpack.c.l.s4 1966171168
    %v1390 = vunpack.c.0.s8 %v1389
    %v1391 = vlaneseq
    %v1392 = vshrl.u32 %v1391, 7
    %v1393 = vsub.s32 %v1390, %v1392
    %v1394 = vrot.slane %v1378, %v1393
    %v1396 = vunpack.c.l.s4 1966171168
    %v1397 = vunpack.c.0.s8 %v1396
    %v1398 = vlaneseq
    %v1399 = vshrl.u32 %v1398, 7
    %v1400 = vsub.s32 %v1397, %v1399
    %v1401 = vrot.slane %v1379, %v1400
    %v1403 = vunpack.c.l.s4 1966171168
    %v1404 = vunpack.c.0.s8 %v1403
    %v1405 = vlaneseq
    %v1406 = vshrl.u32 %v1405, 7
    %v1407 = vsub.s32 %v1404, %v1406
    %v1408 = vrot.slane %v1380, %v1407
    %v1409 = vcombine.low %v1387, %v1394
    %v1410 = vcombine.low %v1401, %v1408
    %v1412 = vunpack.c.l.s4 1966171168
    %v1413 = vunpack.c.0.s8 %v1412
    %v1414 = vlaneseq
    %v1415 = vshrl.u32 %v1414, 7
    %v1416 = vsub.s32 %v1413, %v1415
    %v1417 = vrot.slane %v1409, %v1416
    %v1419 = vunpack.c.l.s4 1966171168
    %v1420 = vunpack.c.0.s8 %v1419
    %v1421 = vlaneseq
    %v1422 = vshrl.u32 %v1421, 7
    %v1423 = vsub.s32 %v1420, %v1422
    %v1424 = vrot.slane %v1410, %v1423
    %v1425 = vcombine.low %v1417, %v1424
    %v1426 = vcombine.low %v823, %v825
    %v1427 = vcombine.low %v808, %v822
    %v1428 = vcombine.low %v824, %v849
    %v1429 = vcombine.low %v863, %v871
    %v1431 = vunpack.c.l.s4 1966171168
    %v1432 = vunpack.c.0.s8 %v1431
    %v1433 = vlaneseq
    %v1434 = vshrl.u32 %v1433, 7
    %v1435 = vsub.s32 %v1432, %v1434
    %v1436 = vrot.slane %v1426, %v1435
    %v1438 = vunpack.c.l.s4 1966171168
    %v1439 = vunpack.c.0.s8 %v1438
    %v1440 = vlaneseq
    %v1441 = vshrl.u32 %v1440, 7
    %v1442 = vsub.s32 %v1439, %v1441
    %v1443 = vrot.slane %v1427, %v1442
    %v1445 = vunpack.c.l.s4 1966171168
    %v1446 = vunpack.c.0.s8 %v1445
    %v1447 = vlaneseq
    %v1448 = vshrl.u32 %v1447, 7
    %v1449 = vsub.s32 %v1446, %v1448
    %v1450 = vrot.slane %v1428, %v1449
    %v1452 = vunpack.c.l.s4 1966171168
    %v1453 = vunpack.c.0.s8 %v1452
    %v1454 = vlaneseq
    %v1455 = vshrl.u32 %v1454, 7
    %v1456 = vsub.s32 %v1453, %v1455
    %v1457 = vrot.slane %v1429, %v1456
    %v1458 = vcombine.low %v1436, %v1443
    %v1459 = vcombine.low %v1450, %v1457
    %v1461 = vunpack.c.l.s4 1966171168
    %v1462 = vunpack.c.0.s8 %v1461
    %v1463 = vlaneseq
    %v1464 = vshrl.u32 %v1463, 7
    %v1465 = vsub.s32 %v1462, %v1464
    %v1466 = vrot.slane %v1458, %v1465
    %v1468 = vunpack.c.l.s4 1966171168
    %v1469 = vunpack.c.0.s8 %v1468
    %v1470 = vlaneseq
    %v1471 = vshrl.u32 %v1470, 7
    %v1472 = vsub.s32 %v1469, %v1471
    %v1473 = vrot.slane %v1459, %v1472
    %v1474 = vcombine.low %v1466, %v1473
    %v1475 = vcombine.low %v873, %v856
    %v1476 = vcombine.low %v870, %v872
    %v1477 = vcombine.low %v897, %v911
    %v1478 = vcombine.low %v919, %v921
    %v1480 = vunpack.c.l.s4 1966171168
    %v1481 = vunpack.c.0.s8 %v1480
    %v1482 = vlaneseq
    %v1483 = vshrl.u32 %v1482, 7
    %v1484 = vsub.s32 %v1481, %v1483
    %v1485 = vrot.slane %v1475, %v1484
    %v1487 = vunpack.c.l.s4 1966171168
    %v1488 = vunpack.c.0.s8 %v1487
    %v1489 = vlaneseq
    %v1490 = vshrl.u32 %v1489, 7
    %v1491 = vsub.s32 %v1488, %v1490
    %v1492 = vrot.slane %v1476, %v1491
    %v1494 = vunpack.c.l.s4 1966171168
    %v1495 = vunpack.c.0.s8 %v1494
    %v1496 = vlaneseq
    %v1497 = vshrl.u32 %v1496, 7
    %v1498 = vsub.s32 %v1495, %v1497
    %v1499 = vrot.slane %v1477, %v1498
    %v1501 = vunpack.c.l.s4 1966171168
    %v1502 = vunpack.c.0.s8 %v1501
    %v1503 = vlaneseq
    %v1504 = vshrl.u32 %v1503, 7
    %v1505 = vsub.s32 %v1502, %v1504
    %v1506 = vrot.slane %v1478, %v1505
    %v1507 = vcombine.low %v1485, %v1492
    %v1508 = vcombine.low %v1499, %v1506
    %v1510 = vunpack.c.l.s4 1966171168
    %v1511 = vunpack.c.0.s8 %v1510
    %v1512 = vlaneseq
    %v1513 = vshrl.u32 %v1512, 7
    %v1514 = vsub.s32 %v1511, %v1513
    %v1515 = vrot.slane %v1507, %v1514
    %v1517 = vunpack.c.l.s4 1966171168
    %v1518 = vunpack.c.0.s8 %v1517
    %v1519 = vlaneseq
    %v1520 = vshrl.u32 %v1519, 7
    %v1521 = vsub.s32 %v1518, %v1520
    %v1522 = vrot.slane %v1508, %v1521
    %v1523 = vcombine.low %v1515, %v1522
    %v1524 = vcombine.low %v904, %v918
    %v1525 = vcombine.low %v920, %v945
    %v1526 = vcombine.low %v959, %v967
    %v1527 = vcombine.low %v969, %v952
    %v1529 = vunpack.c.l.s4 1966171168
    %v1530 = vunpack.c.0.s8 %v1529
    %v1531 = vlaneseq
    %v1532 = vshrl.u32 %v1531, 7
    %v1533 = vsub.s32 %v1530, %v1532
    %v1534 = vrot.slane %v1524, %v1533
    %v1536 = vunpack.c.l.s4 1966171168
    %v1537 = vunpack.c.0.s8 %v1536
    %v1538 = vlaneseq
    %v1539 = vshrl.u32 %v1538, 7
    %v1540 = vsub.s32 %v1537, %v1539
    %v1541 = vrot.slane %v1525, %v1540
    %v1543 = vunpack.c.l.s4 1966171168
    %v1544 = vunpack.c.0.s8 %v1543
    %v1545 = vlaneseq
    %v1546 = vshrl.u32 %v1545, 7
    %v1547 = vsub.s32 %v1544, %v1546
    %v1548 = vrot.slane %v1526, %v1547
    %v1550 = vunpack.c.l.s4 1966171168
    %v1551 = vunpack.c.0.s8 %v1550
    %v1552 = vlaneseq
    %v1553 = vshrl.u32 %v1552, 7
    %v1554 = vsub.s32 %v1551, %v1553
    %v1555 = vrot.slane %v1527, %v1554
    %v1556 = vcombine.low %v1534, %v1541
    %v1557 = vcombine.low %v1548, %v1555
    %v1559 = vunpack.c.l.s4 1966171168
    %v1560 = vunpack.c.0.s8 %v1559
    %v1561 = vlaneseq
    %v1562 = vshrl.u32 %v1561, 7
    %v1563 = vsub.s32 %v1560, %v1562
    %v1564 = vrot.slane %v1556, %v1563
    %v1566 = vunpack.c.l.s4 1966171168
    %v1567 = vunpack.c.0.s8 %v1566
    %v1568 = vlaneseq
    %v1569 = vshrl.u32 %v1568, 7
    %v1570 = vsub.s32 %v1567, %v1569
    %v1571 = vrot.slane %v1557, %v1570
    %v1572 = vcombine.low %v1564, %v1571
    %v1573 = vcombine.low %v966, %v968
    %v1575 = vunpack.c.l.s4 1966171168
    %v1576 = vunpack.c.0.s8 %v1575
    %v1577 = vlaneseq
    %v1578 = vshrl.u32 %v1577, 7
    %v1579 = vsub.s32 %v1576, %v1578
    %v1580 = vrot.slane %v1573, %v1579
    %v1582 = vunpack.c.l.s4 1966171168
    %v1583 = vunpack.c.0.s8 %v1582
    %v1584 = vlaneseq
    %v1585 = vshrl.u32 %v1584, 7
    %v1586 = vsub.s32 %v1583, %v1585
    %v1587 = vrot.slane %v1580, %v1586
    %vm1588 = vcmask 523264
    %v1589 = vsel %vm1588, %v1033, 0
    %v1591 = vsel %vm1588, %v1082, 0
    %v1593 = vsel %vm1588, %v1131, 0
    %v1595 = vsel %vm1588, %v1180, 0
    %v1597 = vsel %vm1588, %v1229, 0
    %v1599 = vsel %vm1588, %v1278, 0
    %v1601 = vsel %vm1588, %v1327, 0
    %v1603 = vsel %vm1588, %v1376, 0
    %v1605 = vsel %vm1588, %v1425, 0
    %v1607 = vsel %vm1588, %v1474, 0
    %v1609 = vsel %vm1588, %v1523, 0
    %v1611 = vsel %vm1588, %v1572, 0
    %v1613 = vsel %vm1588, %v1587, 0
    %1615 = vmatprep.subr.mxu0 0.0
    %1616 = vmatpush1.msra.mxu0 %v970
    %1617 = vmatprep.subr.mxu0 0.0
    %1618 = vmatpush1.msra.mxu0 %v971
    %1619 = vmatprep.subr.mxu0 0.0
    %1620 = vmatpush1.msra.mxu0 %v972
    %1621 = vmatprep.subr.mxu0 0.0
    %1622 = vmatpush1.msra.mxu0 %v973
    %1623 = vmatprep.subr.mxu0 0.0
    %1624 = vmatpush1.msra.mxu0 %v974
    %1625 = vmatprep.subr.mxu0 0.0
    %1626 = vmatpush1.msra.mxu0 %v975
    %1627 = vmatprep.subr.mxu0 0.0
    %1628 = vmatpush1.msra.mxu0 %v976
    %1629 = vmatprep.subr.mxu0 0.0
    %1630 = vmatpush1.msra.mxu0 %v977
    %1631 = vmatprep.subr.mxu0 0.0
    %1632 = vmatpush1.msra.mxu0 0.0
    %1633 = vmatprep.subr.mxu0 0.0
    %1634 = vmatpush1.msra.mxu0 0.0
    %1635 = vmatprep.subr.mxu0 0.0
    %1636 = vmatpush1.msra.mxu0 0.0
    %1637 = vmatprep.subr.mxu0 0.0
    %1638 = vmatpush1.msra.mxu0 0.0
    %1639 = vmatprep.subr.mxu0 0.0
    %1640 = vmatpush1.msra.mxu0 0.0
    %1641 = vmatprep.subr.mxu0 0.0
    %1642 = vmatpush1.msra.mxu0 0.0
    %1643 = vmatprep.subr.mxu0 0.0
    %1644 = vmatpush1.msra.mxu0 0.0
    %1645 = vmatprep.subr.mxu0 0.0
    %1646 = vmatpush1.msra.mxu0 0.0
    %1647 = vmatprep.subr.mxu0 0.0
    %1648 = vmatpush1.msra.mxu0 0.0
    %1649 = vmatprep.subr.mxu0 0.0
    %1650 = vmatpush1.msra.mxu0 0.0
    %1651 = vmatprep.subr.mxu0 0.0
    %1652 = vmatpush1.msra.mxu0 0.0
    %1653 = vmatprep.subr.mxu0 0.0
    %1654 = vmatpush1.msra.mxu0 0.0
    %1655 = vmatprep.subr.mxu0 0.0
    %1656 = vmatpush1.msra.mxu0 0.0
    %1657 = vmatprep.subr.mxu0 0.0
    %1658 = vmatpush1.msra.mxu0 0.0
    %1659 = vmatprep.subr.mxu0 0.0
    %1660 = vmatpush1.msra.mxu0 0.0
    %1661 = vmatprep.subr.mxu0 0.0
    %1662 = vmatpush1.msra.mxu0 0.0
    %1663 = vmatprep.subr.mxu0 0.0
    %1664 = vmatpush1.msra.mxu0 0.0
    %1665 = vmatprep.subr.mxu0 0.0
    %1666 = vmatpush1.msra.mxu0 0.0
    %1667 = vmatprep.subr.mxu0 0.0
    %1668 = vmatpush1.msra.mxu0 0.0
    %1669 = vmatprep.subr.mxu0 0.0
    %1670 = vmatpush1.msra.mxu0 0.0
    %1671 = vmatprep.subr.mxu0 0.0
    %1672 = vmatpush1.msra.mxu0 0.0
    %1673 = vmatprep.subr.mxu0 0.0
    %1674 = vmatpush1.msra.mxu0 0.0
    %1675 = vmatprep.subr.mxu0 0.0
    %1676 = vmatpush1.msra.mxu0 0.0
    %1677 = vmatprep.subr.mxu0 0.0
    %1678 = vmatpush1.msra.mxu0 0.0
    %1679 = vmatprep.mubr.f32.mxu0 0.0
    %1680 = vmatmul.mubr.f32.gmra.mrb[0].mxu0 %v1589
    %v1681 = vpop.f32.mrb[0].mxu0
    %v1682 = vadd.f32 %v983, %v1681
    %v1683 = vpop.f32.mrb[0].mxu0
    %1684 = vmatprep.mubr.f32.mxu0 0.0
    %1685 = vmatmul.mubr.f32.gmra.mrb[0].mxu0 %v1591
    %v1686 = vpop.f32.mrb[0].mxu0
    %v1687 = vadd.f32 %v983, %v1686
    %v1688 = vpop.f32.mrb[0].mxu0
    %1689 = vmatprep.mubr.f32.mxu0 0.0
    %1690 = vmatmul.mubr.f32.gmra.mrb[0].mxu0 %v1593
    %v1691 = vpop.f32.mrb[0].mxu0
    %v1692 = vadd.f32 %v983, %v1691
    %v1693 = vpop.f32.mrb[0].mxu0
    %1694 = vmatprep.mubr.f32.mxu0 0.0
    %1695 = vmatmul.mubr.f32.gmra.mrb[0].mxu0 %v1595
    %v1696 = vpop.f32.mrb[0].mxu0
    %v1697 = vadd.f32 %v983, %v1696
    %v1698 = vpop.f32.mrb[0].mxu0
    %1699 = vmatprep.mubr.f32.mxu0 0.0
    %1700 = vmatmul.mubr.f32.gmra.mrb[0].mxu0 %v1597
    %v1701 = vpop.f32.mrb[0].mxu0
    %v1702 = vadd.f32 %v983, %v1701
    %v1703 = vpop.f32.mrb[0].mxu0
    %1704 = vmatprep.mubr.f32.mxu0 0.0
    %1705 = vmatmul.mubr.f32.gmra.mrb[0].mxu0 %v1599
    %v1706 = vpop.f32.mrb[0].mxu0
    %v1707 = vadd.f32 %v983, %v1706
    %v1708 = vpop.f32.mrb[0].mxu0
    %1709 = vmatprep.mubr.f32.mxu0 0.0
    %1710 = vmatmul.mubr.f32.gmra.mrb[0].mxu0 %v1601
    %v1711 = vpop.f32.mrb[0].mxu0
    %v1712 = vadd.f32 %v983, %v1711
    %v1713 = vpop.f32.mrb[0].mxu0
    %1714 = vmatprep.mubr.f32.mxu0 0.0
    %1715 = vmatmul.mubr.f32.gmra.mrb[0].mxu0 %v1603
    %v1716 = vpop.f32.mrb[0].mxu0
    %v1717 = vadd.f32 %v983, %v1716
    %v1718 = vpop.f32.mrb[0].mxu0
    %1719 = vmatprep.mubr.f32.mxu0 0.0
    %1720 = vmatmul.mubr.f32.gmra.mrb[0].mxu0 %v1605
    %v1721 = vpop.f32.mrb[0].mxu0
    %v1722 = vadd.f32 %v983, %v1721
    %v1723 = vpop.f32.mrb[0].mxu0
    %1724 = vmatprep.mubr.f32.mxu0 0.0
    %1725 = vmatmul.mubr.f32.gmra.mrb[0].mxu0 %v1607
    %v1726 = vpop.f32.mrb[0].mxu0
    %v1727 = vadd.f32 %v983, %v1726
    %v1728 = vpop.f32.mrb[0].mxu0
    %1729 = vmatprep.mubr.f32.mxu0 0.0
    %1730 = vmatmul.mubr.f32.gmra.mrb[0].mxu0 %v1609
    %v1731 = vpop.f32.mrb[0].mxu0
    %v1732 = vadd.f32 %v983, %v1731
    %v1733 = vpop.f32.mrb[0].mxu0
    %1734 = vmatprep.mubr.f32.mxu0 0.0
    %1735 = vmatmul.mubr.f32.gmra.mrb[0].mxu0 %v1611
    %v1736 = vpop.f32.mrb[0].mxu0
    %v1737 = vadd.f32 %v983, %v1736
    %v1738 = vpop.f32.mrb[0].mxu0
    %1739 = vmatprep.mubr.f32.mxu0 0.0
    %1740 = vmatmul.mubr.f32.gmra.mrb[0].mxu0 %v1613
    %v1741 = vpop.f32.mrb[0].mxu0
    %v1742 = vadd.f32 %v983, %v1741
    %v1743 = vpop.f32.mrb[0].mxu0
    %1744 = vdwg.mxu0
    %v1745 = vmax.f32 %v1682, 0.0
    %v1746 = vmax.f32 %v1687, 0.0
    %v1747 = vmax.f32 %v1692, 0.0
    %v1748 = vmax.f32 %v1697, 0.0
    %v1749 = vmax.f32 %v1702, 0.0
    %v1750 = vmax.f32 %v1707, 0.0
    %v1751 = vmax.f32 %v1712, 0.0
    %v1752 = vmax.f32 %v1717, 0.0
    %v1753 = vmax.f32 %v1722, 0.0
    %v1754 = vmax.f32 %v1727, 0.0
    %v1755 = vmax.f32 %v1732, 0.0
    %v1756 = vmax.f32 %v1737, 0.0
    %v1757 = vmax.f32 %v1742, 0.0
    %v1771 = vcombine.high %v1745, %v1745
    %v1773 = vunpack.c.l.s4 1966171168
    %v1774 = vunpack.c.0.s8 %v1773
    %v1775 = vlaneseq
    %v1776 = vshrl.u32 %v1775, 7
    %v1777 = vsub.s32 %v1774, %v1776
    %v1778 = vrot.slane %v1745, %v1777
    %v1780 = vunpack.c.l.s4 1966171168
    %v1781 = vunpack.c.0.s8 %v1780
    %v1782 = vlaneseq
    %v1783 = vshrl.u32 %v1782, 7
    %v1784 = vsub.s32 %v1781, %v1783
    %v1785 = vrot.slane %v1771, %v1784
    %v1786 = vcombine.high %v1778, %v1778
    %v1787 = vcombine.high %v1785, %v1785
    %v1789 = vunpack.c.l.s4 1966171168
    %v1790 = vunpack.c.0.s8 %v1789
    %v1791 = vlaneseq
    %v1792 = vshrl.u32 %v1791, 7
    %v1793 = vsub.s32 %v1790, %v1792
    %v1794 = vrot.slane %v1778, %v1793
    %v1796 = vunpack.c.l.s4 1966171168
    %v1797 = vunpack.c.0.s8 %v1796
    %v1798 = vlaneseq
    %v1799 = vshrl.u32 %v1798, 7
    %v1800 = vsub.s32 %v1797, %v1799
    %v1801 = vrot.slane %v1785, %v1800
    %v1803 = vunpack.c.l.s4 1966171168
    %v1804 = vunpack.c.0.s8 %v1803
    %v1805 = vlaneseq
    %v1806 = vshrl.u32 %v1805, 7
    %v1807 = vsub.s32 %v1804, %v1806
    %v1808 = vrot.slane %v1786, %v1807
    %v1810 = vunpack.c.l.s4 1966171168
    %v1811 = vunpack.c.0.s8 %v1810
    %v1812 = vlaneseq
    %v1813 = vshrl.u32 %v1812, 7
    %v1814 = vsub.s32 %v1811, %v1813
    %v1815 = vrot.slane %v1787, %v1814
    %v1816 = vcombine.high %v1794, %v1794
    %v1817 = vcombine.high %v1801, %v1801
    %v1818 = vcombine.high %v1808, %v1808
    %v1819 = vcombine.high %v1815, %v1815
    %v1820 = vcombine.high %v1746, %v1746
    %v1822 = vunpack.c.l.s4 1966171168
    %v1823 = vunpack.c.0.s8 %v1822
    %v1824 = vlaneseq
    %v1825 = vshrl.u32 %v1824, 7
    %v1826 = vsub.s32 %v1823, %v1825
    %v1827 = vrot.slane %v1746, %v1826
    %v1829 = vunpack.c.l.s4 1966171168
    %v1830 = vunpack.c.0.s8 %v1829
    %v1831 = vlaneseq
    %v1832 = vshrl.u32 %v1831, 7
    %v1833 = vsub.s32 %v1830, %v1832
    %v1834 = vrot.slane %v1820, %v1833
    %v1835 = vcombine.high %v1827, %v1827
    %v1836 = vcombine.high %v1834, %v1834
    %v1838 = vunpack.c.l.s4 1966171168
    %v1839 = vunpack.c.0.s8 %v1838
    %v1840 = vlaneseq
    %v1841 = vshrl.u32 %v1840, 7
    %v1842 = vsub.s32 %v1839, %v1841
    %v1843 = vrot.slane %v1827, %v1842
    %v1845 = vunpack.c.l.s4 1966171168
    %v1846 = vunpack.c.0.s8 %v1845
    %v1847 = vlaneseq
    %v1848 = vshrl.u32 %v1847, 7
    %v1849 = vsub.s32 %v1846, %v1848
    %v1850 = vrot.slane %v1834, %v1849
    %v1852 = vunpack.c.l.s4 1966171168
    %v1853 = vunpack.c.0.s8 %v1852
    %v1854 = vlaneseq
    %v1855 = vshrl.u32 %v1854, 7
    %v1856 = vsub.s32 %v1853, %v1855
    %v1857 = vrot.slane %v1835, %v1856
    %v1859 = vunpack.c.l.s4 1966171168
    %v1860 = vunpack.c.0.s8 %v1859
    %v1861 = vlaneseq
    %v1862 = vshrl.u32 %v1861, 7
    %v1863 = vsub.s32 %v1860, %v1862
    %v1864 = vrot.slane %v1836, %v1863
    %v1865 = vcombine.high %v1843, %v1843
    %v1866 = vcombine.high %v1850, %v1850
    %v1867 = vcombine.high %v1857, %v1857
    %v1868 = vcombine.high %v1864, %v1864
    %v1869 = vcombine.high %v1747, %v1747
    %v1871 = vunpack.c.l.s4 1966171168
    %v1872 = vunpack.c.0.s8 %v1871
    %v1873 = vlaneseq
    %v1874 = vshrl.u32 %v1873, 7
    %v1875 = vsub.s32 %v1872, %v1874
    %v1876 = vrot.slane %v1747, %v1875
    %v1878 = vunpack.c.l.s4 1966171168
    %v1879 = vunpack.c.0.s8 %v1878
    %v1880 = vlaneseq
    %v1881 = vshrl.u32 %v1880, 7
    %v1882 = vsub.s32 %v1879, %v1881
    %v1883 = vrot.slane %v1869, %v1882
    %v1884 = vcombine.high %v1876, %v1876
    %v1885 = vcombine.high %v1883, %v1883
    %v1887 = vunpack.c.l.s4 1966171168
    %v1888 = vunpack.c.0.s8 %v1887
    %v1889 = vlaneseq
    %v1890 = vshrl.u32 %v1889, 7
    %v1891 = vsub.s32 %v1888, %v1890
    %v1892 = vrot.slane %v1876, %v1891
    %v1894 = vunpack.c.l.s4 1966171168
    %v1895 = vunpack.c.0.s8 %v1894
    %v1896 = vlaneseq
    %v1897 = vshrl.u32 %v1896, 7
    %v1898 = vsub.s32 %v1895, %v1897
    %v1899 = vrot.slane %v1883, %v1898
    %v1901 = vunpack.c.l.s4 1966171168
    %v1902 = vunpack.c.0.s8 %v1901
    %v1903 = vlaneseq
    %v1904 = vshrl.u32 %v1903, 7
    %v1905 = vsub.s32 %v1902, %v1904
    %v1906 = vrot.slane %v1884, %v1905
    %v1908 = vunpack.c.l.s4 1966171168
    %v1909 = vunpack.c.0.s8 %v1908
    %v1910 = vlaneseq
    %v1911 = vshrl.u32 %v1910, 7
    %v1912 = vsub.s32 %v1909, %v1911
    %v1913 = vrot.slane %v1885, %v1912
    %v1914 = vcombine.high %v1892, %v1892
    %v1915 = vcombine.high %v1899, %v1899
    %v1916 = vcombine.high %v1906, %v1906
    %v1917 = vcombine.high %v1913, %v1913
    %v1918 = vcombine.high %v1748, %v1748
    %v1920 = vunpack.c.l.s4 1966171168
    %v1921 = vunpack.c.0.s8 %v1920
    %v1922 = vlaneseq
    %v1923 = vshrl.u32 %v1922, 7
    %v1924 = vsub.s32 %v1921, %v1923
    %v1925 = vrot.slane %v1748, %v1924
    %v1927 = vunpack.c.l.s4 1966171168
    %v1928 = vunpack.c.0.s8 %v1927
    %v1929 = vlaneseq
    %v1930 = vshrl.u32 %v1929, 7
    %v1931 = vsub.s32 %v1928, %v1930
    %v1932 = vrot.slane %v1918, %v1931
    %v1933 = vcombine.high %v1925, %v1925
    %v1934 = vcombine.high %v1932, %v1932
    %v1936 = vunpack.c.l.s4 1966171168
    %v1937 = vunpack.c.0.s8 %v1936
    %v1938 = vlaneseq
    %v1939 = vshrl.u32 %v1938, 7
    %v1940 = vsub.s32 %v1937, %v1939
    %v1941 = vrot.slane %v1925, %v1940
    %v1943 = vunpack.c.l.s4 1966171168
    %v1944 = vunpack.c.0.s8 %v1943
    %v1945 = vlaneseq
    %v1946 = vshrl.u32 %v1945, 7
    %v1947 = vsub.s32 %v1944, %v1946
    %v1948 = vrot.slane %v1932, %v1947
    %v1950 = vunpack.c.l.s4 1966171168
    %v1951 = vunpack.c.0.s8 %v1950
    %v1952 = vlaneseq
    %v1953 = vshrl.u32 %v1952, 7
    %v1954 = vsub.s32 %v1951, %v1953
    %v1955 = vrot.slane %v1933, %v1954
    %v1957 = vunpack.c.l.s4 1966171168
    %v1958 = vunpack.c.0.s8 %v1957
    %v1959 = vlaneseq
    %v1960 = vshrl.u32 %v1959, 7
    %v1961 = vsub.s32 %v1958, %v1960
    %v1962 = vrot.slane %v1934, %v1961
    %v1963 = vcombine.high %v1941, %v1941
    %v1964 = vcombine.high %v1948, %v1948
    %v1965 = vcombine.high %v1955, %v1955
    %v1966 = vcombine.high %v1962, %v1962
    %v1967 = vcombine.high %v1749, %v1749
    %v1969 = vunpack.c.l.s4 1966171168
    %v1970 = vunpack.c.0.s8 %v1969
    %v1971 = vlaneseq
    %v1972 = vshrl.u32 %v1971, 7
    %v1973 = vsub.s32 %v1970, %v1972
    %v1974 = vrot.slane %v1749, %v1973
    %v1976 = vunpack.c.l.s4 1966171168
    %v1977 = vunpack.c.0.s8 %v1976
    %v1978 = vlaneseq
    %v1979 = vshrl.u32 %v1978, 7
    %v1980 = vsub.s32 %v1977, %v1979
    %v1981 = vrot.slane %v1967, %v1980
    %v1982 = vcombine.high %v1974, %v1974
    %v1983 = vcombine.high %v1981, %v1981
    %v1985 = vunpack.c.l.s4 1966171168
    %v1986 = vunpack.c.0.s8 %v1985
    %v1987 = vlaneseq
    %v1988 = vshrl.u32 %v1987, 7
    %v1989 = vsub.s32 %v1986, %v1988
    %v1990 = vrot.slane %v1974, %v1989
    %v1992 = vunpack.c.l.s4 1966171168
    %v1993 = vunpack.c.0.s8 %v1992
    %v1994 = vlaneseq
    %v1995 = vshrl.u32 %v1994, 7
    %v1996 = vsub.s32 %v1993, %v1995
    %v1997 = vrot.slane %v1981, %v1996
    %v1999 = vunpack.c.l.s4 1966171168
    %v2000 = vunpack.c.0.s8 %v1999
    %v2001 = vlaneseq
    %v2002 = vshrl.u32 %v2001, 7
    %v2003 = vsub.s32 %v2000, %v2002
    %v2004 = vrot.slane %v1982, %v2003
    %v2006 = vunpack.c.l.s4 1966171168
    %v2007 = vunpack.c.0.s8 %v2006
    %v2008 = vlaneseq
    %v2009 = vshrl.u32 %v2008, 7
    %v2010 = vsub.s32 %v2007, %v2009
    %v2011 = vrot.slane %v1983, %v2010
    %v2012 = vcombine.high %v1990, %v1990
    %v2013 = vcombine.high %v1997, %v1997
    %v2014 = vcombine.high %v2004, %v2004
    %v2015 = vcombine.high %v2011, %v2011
    %v2016 = vcombine.high %v1750, %v1750
    %v2018 = vunpack.c.l.s4 1966171168
    %v2019 = vunpack.c.0.s8 %v2018
    %v2020 = vlaneseq
    %v2021 = vshrl.u32 %v2020, 7
    %v2022 = vsub.s32 %v2019, %v2021
    %v2023 = vrot.slane %v1750, %v2022
    %v2025 = vunpack.c.l.s4 1966171168
    %v2026 = vunpack.c.0.s8 %v2025
    %v2027 = vlaneseq
    %v2028 = vshrl.u32 %v2027, 7
    %v2029 = vsub.s32 %v2026, %v2028
    %v2030 = vrot.slane %v2016, %v2029
    %v2031 = vcombine.high %v2023, %v2023
    %v2032 = vcombine.high %v2030, %v2030
    %v2034 = vunpack.c.l.s4 1966171168
    %v2035 = vunpack.c.0.s8 %v2034
    %v2036 = vlaneseq
    %v2037 = vshrl.u32 %v2036, 7
    %v2038 = vsub.s32 %v2035, %v2037
    %v2039 = vrot.slane %v2023, %v2038
    %v2041 = vunpack.c.l.s4 1966171168
    %v2042 = vunpack.c.0.s8 %v2041
    %v2043 = vlaneseq
    %v2044 = vshrl.u32 %v2043, 7
    %v2045 = vsub.s32 %v2042, %v2044
    %v2046 = vrot.slane %v2030, %v2045
    %v2048 = vunpack.c.l.s4 1966171168
    %v2049 = vunpack.c.0.s8 %v2048
    %v2050 = vlaneseq
    %v2051 = vshrl.u32 %v2050, 7
    %v2052 = vsub.s32 %v2049, %v2051
    %v2053 = vrot.slane %v2031, %v2052
    %v2055 = vunpack.c.l.s4 1966171168
    %v2056 = vunpack.c.0.s8 %v2055
    %v2057 = vlaneseq
    %v2058 = vshrl.u32 %v2057, 7
    %v2059 = vsub.s32 %v2056, %v2058
    %v2060 = vrot.slane %v2032, %v2059
    %v2061 = vcombine.high %v2039, %v2039
    %v2062 = vcombine.high %v2046, %v2046
    %v2063 = vcombine.high %v2053, %v2053
    %v2064 = vcombine.high %v2060, %v2060
    %v2065 = vcombine.high %v1751, %v1751
    %v2067 = vunpack.c.l.s4 1966171168
    %v2068 = vunpack.c.0.s8 %v2067
    %v2069 = vlaneseq
    %v2070 = vshrl.u32 %v2069, 7
    %v2071 = vsub.s32 %v2068, %v2070
    %v2072 = vrot.slane %v1751, %v2071
    %v2074 = vunpack.c.l.s4 1966171168
    %v2075 = vunpack.c.0.s8 %v2074
    %v2076 = vlaneseq
    %v2077 = vshrl.u32 %v2076, 7
    %v2078 = vsub.s32 %v2075, %v2077
    %v2079 = vrot.slane %v2065, %v2078
    %v2080 = vcombine.high %v2072, %v2072
    %v2081 = vcombine.high %v2079, %v2079
    %v2083 = vunpack.c.l.s4 1966171168
    %v2084 = vunpack.c.0.s8 %v2083
    %v2085 = vlaneseq
    %v2086 = vshrl.u32 %v2085, 7
    %v2087 = vsub.s32 %v2084, %v2086
    %v2088 = vrot.slane %v2072, %v2087
    %v2090 = vunpack.c.l.s4 1966171168
    %v2091 = vunpack.c.0.s8 %v2090
    %v2092 = vlaneseq
    %v2093 = vshrl.u32 %v2092, 7
    %v2094 = vsub.s32 %v2091, %v2093
    %v2095 = vrot.slane %v2079, %v2094
    %v2097 = vunpack.c.l.s4 1966171168
    %v2098 = vunpack.c.0.s8 %v2097
    %v2099 = vlaneseq
    %v2100 = vshrl.u32 %v2099, 7
    %v2101 = vsub.s32 %v2098, %v2100
    %v2102 = vrot.slane %v2080, %v2101
    %v2104 = vunpack.c.l.s4 1966171168
    %v2105 = vunpack.c.0.s8 %v2104
    %v2106 = vlaneseq
    %v2107 = vshrl.u32 %v2106, 7
    %v2108 = vsub.s32 %v2105, %v2107
    %v2109 = vrot.slane %v2081, %v2108
    %v2110 = vcombine.high %v2088, %v2088
    %v2111 = vcombine.high %v2095, %v2095
    %v2112 = vcombine.high %v2102, %v2102
    %v2113 = vcombine.high %v2109, %v2109
    %v2114 = vcombine.high %v1752, %v1752
    %v2116 = vunpack.c.l.s4 1966171168
    %v2117 = vunpack.c.0.s8 %v2116
    %v2118 = vlaneseq
    %v2119 = vshrl.u32 %v2118, 7
    %v2120 = vsub.s32 %v2117, %v2119
    %v2121 = vrot.slane %v1752, %v2120
    %v2123 = vunpack.c.l.s4 1966171168
    %v2124 = vunpack.c.0.s8 %v2123
    %v2125 = vlaneseq
    %v2126 = vshrl.u32 %v2125, 7
    %v2127 = vsub.s32 %v2124, %v2126
    %v2128 = vrot.slane %v2114, %v2127
    %v2129 = vcombine.high %v2121, %v2121
    %v2130 = vcombine.high %v2128, %v2128
    %v2132 = vunpack.c.l.s4 1966171168
    %v2133 = vunpack.c.0.s8 %v2132
    %v2134 = vlaneseq
    %v2135 = vshrl.u32 %v2134, 7
    %v2136 = vsub.s32 %v2133, %v2135
    %v2137 = vrot.slane %v2121, %v2136
    %v2139 = vunpack.c.l.s4 1966171168
    %v2140 = vunpack.c.0.s8 %v2139
    %v2141 = vlaneseq
    %v2142 = vshrl.u32 %v2141, 7
    %v2143 = vsub.s32 %v2140, %v2142
    %v2144 = vrot.slane %v2128, %v2143
    %v2146 = vunpack.c.l.s4 1966171168
    %v2147 = vunpack.c.0.s8 %v2146
    %v2148 = vlaneseq
    %v2149 = vshrl.u32 %v2148, 7
    %v2150 = vsub.s32 %v2147, %v2149
    %v2151 = vrot.slane %v2129, %v2150
    %v2153 = vunpack.c.l.s4 1966171168
    %v2154 = vunpack.c.0.s8 %v2153
    %v2155 = vlaneseq
    %v2156 = vshrl.u32 %v2155, 7
    %v2157 = vsub.s32 %v2154, %v2156
    %v2158 = vrot.slane %v2130, %v2157
    %v2159 = vcombine.high %v2137, %v2137
    %v2160 = vcombine.high %v2144, %v2144
    %v2161 = vcombine.high %v2151, %v2151
    %v2162 = vcombine.high %v2158, %v2158
    %v2163 = vcombine.high %v1753, %v1753
    %v2165 = vunpack.c.l.s4 1966171168
    %v2166 = vunpack.c.0.s8 %v2165
    %v2167 = vlaneseq
    %v2168 = vshrl.u32 %v2167, 7
    %v2169 = vsub.s32 %v2166, %v2168
    %v2170 = vrot.slane %v1753, %v2169
    %v2172 = vunpack.c.l.s4 1966171168
    %v2173 = vunpack.c.0.s8 %v2172
    %v2174 = vlaneseq
    %v2175 = vshrl.u32 %v2174, 7
    %v2176 = vsub.s32 %v2173, %v2175
    %v2177 = vrot.slane %v2163, %v2176
    %v2178 = vcombine.high %v2170, %v2170
    %v2179 = vcombine.high %v2177, %v2177
    %v2181 = vunpack.c.l.s4 1966171168
    %v2182 = vunpack.c.0.s8 %v2181
    %v2183 = vlaneseq
    %v2184 = vshrl.u32 %v2183, 7
    %v2185 = vsub.s32 %v2182, %v2184
    %v2186 = vrot.slane %v2170, %v2185
    %v2188 = vunpack.c.l.s4 1966171168
    %v2189 = vunpack.c.0.s8 %v2188
    %v2190 = vlaneseq
    %v2191 = vshrl.u32 %v2190, 7
    %v2192 = vsub.s32 %v2189, %v2191
    %v2193 = vrot.slane %v2177, %v2192
    %v2195 = vunpack.c.l.s4 1966171168
    %v2196 = vunpack.c.0.s8 %v2195
    %v2197 = vlaneseq
    %v2198 = vshrl.u32 %v2197, 7
    %v2199 = vsub.s32 %v2196, %v2198
    %v2200 = vrot.slane %v2178, %v2199
    %v2202 = vunpack.c.l.s4 1966171168
    %v2203 = vunpack.c.0.s8 %v2202
    %v2204 = vlaneseq
    %v2205 = vshrl.u32 %v2204, 7
    %v2206 = vsub.s32 %v2203, %v2205
    %v2207 = vrot.slane %v2179, %v2206
    %v2208 = vcombine.high %v2186, %v2186
    %v2209 = vcombine.high %v2193, %v2193
    %v2210 = vcombine.high %v2200, %v2200
    %v2211 = vcombine.high %v2207, %v2207
    %v2212 = vcombine.high %v1754, %v1754
    %v2214 = vunpack.c.l.s4 1966171168
    %v2215 = vunpack.c.0.s8 %v2214
    %v2216 = vlaneseq
    %v2217 = vshrl.u32 %v2216, 7
    %v2218 = vsub.s32 %v2215, %v2217
    %v2219 = vrot.slane %v1754, %v2218
    %v2221 = vunpack.c.l.s4 1966171168
    %v2222 = vunpack.c.0.s8 %v2221
    %v2223 = vlaneseq
    %v2224 = vshrl.u32 %v2223, 7
    %v2225 = vsub.s32 %v2222, %v2224
    %v2226 = vrot.slane %v2212, %v2225
    %v2227 = vcombine.high %v2219, %v2219
    %v2228 = vcombine.high %v2226, %v2226
    %v2230 = vunpack.c.l.s4 1966171168
    %v2231 = vunpack.c.0.s8 %v2230
    %v2232 = vlaneseq
    %v2233 = vshrl.u32 %v2232, 7
    %v2234 = vsub.s32 %v2231, %v2233
    %v2235 = vrot.slane %v2219, %v2234
    %v2237 = vunpack.c.l.s4 1966171168
    %v2238 = vunpack.c.0.s8 %v2237
    %v2239 = vlaneseq
    %v2240 = vshrl.u32 %v2239, 7
    %v2241 = vsub.s32 %v2238, %v2240
    %v2242 = vrot.slane %v2226, %v2241
    %v2244 = vunpack.c.l.s4 1966171168
    %v2245 = vunpack.c.0.s8 %v2244
    %v2246 = vlaneseq
    %v2247 = vshrl.u32 %v2246, 7
    %v2248 = vsub.s32 %v2245, %v2247
    %v2249 = vrot.slane %v2227, %v2248
    %v2251 = vunpack.c.l.s4 1966171168
    %v2252 = vunpack.c.0.s8 %v2251
    %v2253 = vlaneseq
    %v2254 = vshrl.u32 %v2253, 7
    %v2255 = vsub.s32 %v2252, %v2254
    %v2256 = vrot.slane %v2228, %v2255
    %v2257 = vcombine.high %v2235, %v2235
    %v2258 = vcombine.high %v2242, %v2242
    %v2259 = vcombine.high %v2249, %v2249
    %v2260 = vcombine.high %v2256, %v2256
    %v2261 = vcombine.high %v1755, %v1755
    %v2263 = vunpack.c.l.s4 1966171168
    %v2264 = vunpack.c.0.s8 %v2263
    %v2265 = vlaneseq
    %v2266 = vshrl.u32 %v2265, 7
    %v2267 = vsub.s32 %v2264, %v2266
    %v2268 = vrot.slane %v1755, %v2267
    %v2270 = vunpack.c.l.s4 1966171168
    %v2271 = vunpack.c.0.s8 %v2270
    %v2272 = vlaneseq
    %v2273 = vshrl.u32 %v2272, 7
    %v2274 = vsub.s32 %v2271, %v2273
    %v2275 = vrot.slane %v2261, %v2274
    %v2276 = vcombine.high %v2268, %v2268
    %v2277 = vcombine.high %v2275, %v2275
    %v2279 = vunpack.c.l.s4 1966171168
    %v2280 = vunpack.c.0.s8 %v2279
    %v2281 = vlaneseq
    %v2282 = vshrl.u32 %v2281, 7
    %v2283 = vsub.s32 %v2280, %v2282
    %v2284 = vrot.slane %v2268, %v2283
    %v2286 = vunpack.c.l.s4 1966171168
    %v2287 = vunpack.c.0.s8 %v2286
    %v2288 = vlaneseq
    %v2289 = vshrl.u32 %v2288, 7
    %v2290 = vsub.s32 %v2287, %v2289
    %v2291 = vrot.slane %v2275, %v2290
    %v2293 = vunpack.c.l.s4 1966171168
    %v2294 = vunpack.c.0.s8 %v2293
    %v2295 = vlaneseq
    %v2296 = vshrl.u32 %v2295, 7
    %v2297 = vsub.s32 %v2294, %v2296
    %v2298 = vrot.slane %v2276, %v2297
    %v2300 = vunpack.c.l.s4 1966171168
    %v2301 = vunpack.c.0.s8 %v2300
    %v2302 = vlaneseq
    %v2303 = vshrl.u32 %v2302, 7
    %v2304 = vsub.s32 %v2301, %v2303
    %v2305 = vrot.slane %v2277, %v2304
    %v2306 = vcombine.high %v2284, %v2284
    %v2307 = vcombine.high %v2291, %v2291
    %v2308 = vcombine.high %v2298, %v2298
    %v2309 = vcombine.high %v2305, %v2305
    %v2310 = vcombine.high %v1756, %v1756
    %v2312 = vunpack.c.l.s4 1966171168
    %v2313 = vunpack.c.0.s8 %v2312
    %v2314 = vlaneseq
    %v2315 = vshrl.u32 %v2314, 7
    %v2316 = vsub.s32 %v2313, %v2315
    %v2317 = vrot.slane %v1756, %v2316
    %v2319 = vunpack.c.l.s4 1966171168
    %v2320 = vunpack.c.0.s8 %v2319
    %v2321 = vlaneseq
    %v2322 = vshrl.u32 %v2321, 7
    %v2323 = vsub.s32 %v2320, %v2322
    %v2324 = vrot.slane %v2310, %v2323
    %v2325 = vcombine.high %v2317, %v2317
    %v2326 = vcombine.high %v2324, %v2324
    %v2328 = vunpack.c.l.s4 1966171168
    %v2329 = vunpack.c.0.s8 %v2328
    %v2330 = vlaneseq
    %v2331 = vshrl.u32 %v2330, 7
    %v2332 = vsub.s32 %v2329, %v2331
    %v2333 = vrot.slane %v2317, %v2332
    %v2335 = vunpack.c.l.s4 1966171168
    %v2336 = vunpack.c.0.s8 %v2335
    %v2337 = vlaneseq
    %v2338 = vshrl.u32 %v2337, 7
    %v2339 = vsub.s32 %v2336, %v2338
    %v2340 = vrot.slane %v2324, %v2339
    %v2342 = vunpack.c.l.s4 1966171168
    %v2343 = vunpack.c.0.s8 %v2342
    %v2344 = vlaneseq
    %v2345 = vshrl.u32 %v2344, 7
    %v2346 = vsub.s32 %v2343, %v2345
    %v2347 = vrot.slane %v2325, %v2346
    %v2349 = vunpack.c.l.s4 1966171168
    %v2350 = vunpack.c.0.s8 %v2349
    %v2351 = vlaneseq
    %v2352 = vshrl.u32 %v2351, 7
    %v2353 = vsub.s32 %v2350, %v2352
    %v2354 = vrot.slane %v2326, %v2353
    %v2355 = vcombine.high %v2333, %v2333
    %v2356 = vcombine.high %v2340, %v2340
    %v2357 = vcombine.high %v2347, %v2347
    %v2358 = vcombine.high %v2354, %v2354
    %v2360 = vunpack.c.l.s4 1966171168
    %v2361 = vunpack.c.0.s8 %v2360
    %v2362 = vlaneseq
    %v2363 = vshrl.u32 %v2362, 7
    %v2364 = vsub.s32 %v2361, %v2363
    %v2365 = vrot.slane %v1757, %v2364
    %v2366 = vcombine.high %v2365, %v2365
    %v2368 = vunpack.c.l.s4 1966171168
    %v2369 = vunpack.c.0.s8 %v2368
    %v2370 = vlaneseq
    %v2371 = vshrl.u32 %v2370, 7
    %v2372 = vsub.s32 %v2369, %v2371
    %v2373 = vrot.slane %v2365, %v2372
    %v2375 = vunpack.c.l.s4 1966171168
    %v2376 = vunpack.c.0.s8 %v2375
    %v2377 = vlaneseq
    %v2378 = vshrl.u32 %v2377, 7
    %v2379 = vsub.s32 %v2376, %v2378
    %v2380 = vrot.slane %v2366, %v2379
    %v2381 = vcombine.low %v1794, %v1808
    %v2382 = vcombine.low %v1816, %v1818
    %v2384 = vunpack.c.l.s4 1966171168
    %v2385 = vunpack.c.0.s8 %v2384
    %v2386 = vlaneseq
    %v2387 = vshrl.u32 %v2386, 7
    %v2388 = vsub.s32 %v2385, %v2387
    %v2389 = vrot.slane %v2381, %v2388
    %v2391 = vunpack.c.l.s4 1966171168
    %v2392 = vunpack.c.0.s8 %v2391
    %v2393 = vlaneseq
    %v2394 = vshrl.u32 %v2393, 7
    %v2395 = vsub.s32 %v2392, %v2394
    %v2396 = vrot.slane %v2382, %v2395
    %v2398 = vunpack.c.l.s4 1966171168
    %v2399 = vunpack.c.0.s8 %v2398
    %v2400 = vlaneseq
    %v2401 = vshrl.u32 %v2400, 7
    %v2402 = vsub.s32 %v2399, %v2401
    %v2403 = vrot.slane %v1801, %v2402
    %v2404 = vcombine.low %v2389, %v2396
    %v2406 = vunpack.c.l.s4 1966171168
    %v2407 = vunpack.c.0.s8 %v2406
    %v2408 = vlaneseq
    %v2409 = vshrl.u32 %v2408, 7
    %v2410 = vsub.s32 %v2407, %v2409
    %v2411 = vrot.slane %v2404, %v2410
    %v2413 = vunpack.c.l.s4 1966171168
    %v2414 = vunpack.c.0.s8 %v2413
    %v2415 = vlaneseq
    %v2416 = vshrl.u32 %v2415, 7
    %v2417 = vsub.s32 %v2414, %v2416
    %v2418 = vrot.slane %v2403, %v2417
    %v2419 = vcombine.low %v2411, %v2418
    %v2420 = vcombine.low %v1819, %v1843
    %v2421 = vcombine.low %v1857, %v1865
    %v2423 = vunpack.c.l.s4 1966171168
    %v2424 = vunpack.c.0.s8 %v2423
    %v2425 = vlaneseq
    %v2426 = vshrl.u32 %v2425, 7
    %v2427 = vsub.s32 %v2424, %v2426
    %v2428 = vrot.slane %v2420, %v2427
    %v2430 = vunpack.c.l.s4 1966171168
    %v2431 = vunpack.c.0.s8 %v2430
    %v2432 = vlaneseq
    %v2433 = vshrl.u32 %v2432, 7
    %v2434 = vsub.s32 %v2431, %v2433
    %v2435 = vrot.slane %v2421, %v2434
    %v2437 = vunpack.c.l.s4 1966171168
    %v2438 = vunpack.c.0.s8 %v2437
    %v2439 = vlaneseq
    %v2440 = vshrl.u32 %v2439, 7
    %v2441 = vsub.s32 %v2438, %v2440
    %v2442 = vrot.slane %v1867, %v2441
    %v2443 = vcombine.low %v2428, %v2435
    %v2445 = vunpack.c.l.s4 1966171168
    %v2446 = vunpack.c.0.s8 %v2445
    %v2447 = vlaneseq
    %v2448 = vshrl.u32 %v2447, 7
    %v2449 = vsub.s32 %v2446, %v2448
    %v2450 = vrot.slane %v2443, %v2449
    %v2452 = vunpack.c.l.s4 1966171168
    %v2453 = vunpack.c.0.s8 %v2452
    %v2454 = vlaneseq
    %v2455 = vshrl.u32 %v2454, 7
    %v2456 = vsub.s32 %v2453, %v2455
    %v2457 = vrot.slane %v2442, %v2456
    %v2458 = vcombine.low %v2450, %v2457
    %v2459 = vcombine.low %v1866, %v1868
    %v2460 = vcombine.low %v1892, %v1906
    %v2462 = vunpack.c.l.s4 1966171168
    %v2463 = vunpack.c.0.s8 %v2462
    %v2464 = vlaneseq
    %v2465 = vshrl.u32 %v2464, 7
    %v2466 = vsub.s32 %v2463, %v2465
    %v2467 = vrot.slane %v2459, %v2466
    %v2469 = vunpack.c.l.s4 1966171168
    %v2470 = vunpack.c.0.s8 %v2469
    %v2471 = vlaneseq
    %v2472 = vshrl.u32 %v2471, 7
    %v2473 = vsub.s32 %v2470, %v2472
    %v2474 = vrot.slane %v2460, %v2473
    %v2476 = vunpack.c.l.s4 1966171168
    %v2477 = vunpack.c.0.s8 %v2476
    %v2478 = vlaneseq
    %v2479 = vshrl.u32 %v2478, 7
    %v2480 = vsub.s32 %v2477, %v2479
    %v2481 = vrot.slane %v1914, %v2480
    %v2482 = vcombine.low %v2467, %v2474
    %v2484 = vunpack.c.l.s4 1966171168
    %v2485 = vunpack.c.0.s8 %v2484
    %v2486 = vlaneseq
    %v2487 = vshrl.u32 %v2486, 7
    %v2488 = vsub.s32 %v2485, %v2487
    %v2489 = vrot.slane %v2482, %v2488
    %v2491 = vunpack.c.l.s4 1966171168
    %v2492 = vunpack.c.0.s8 %v2491
    %v2493 = vlaneseq
    %v2494 = vshrl.u32 %v2493, 7
    %v2495 = vsub.s32 %v2492, %v2494
    %v2496 = vrot.slane %v2481, %v2495
    %v2497 = vcombine.low %v2489, %v2496
    %v2498 = vcombine.low %v1913, %v1915
    %v2499 = vcombine.low %v1917, %v1941
    %v2501 = vunpack.c.l.s4 1966171168
    %v2502 = vunpack.c.0.s8 %v2501
    %v2503 = vlaneseq
    %v2504 = vshrl.u32 %v2503, 7
    %v2505 = vsub.s32 %v2502, %v2504
    %v2506 = vrot.slane %v2498, %v2505
    %v2508 = vunpack.c.l.s4 1966171168
    %v2509 = vunpack.c.0.s8 %v2508
    %v2510 = vlaneseq
    %v2511 = vshrl.u32 %v2510, 7
    %v2512 = vsub.s32 %v2509, %v2511
    %v2513 = vrot.slane %v2499, %v2512
    %v2515 = vunpack.c.l.s4 1966171168
    %v2516 = vunpack.c.0.s8 %v2515
    %v2517 = vlaneseq
    %v2518 = vshrl.u32 %v2517, 7
    %v2519 = vsub.s32 %v2516, %v2518
    %v2520 = vrot.slane %v1955, %v2519
    %v2521 = vcombine.low %v2506, %v2513
    %v2523 = vunpack.c.l.s4 1966171168
    %v2524 = vunpack.c.0.s8 %v2523
    %v2525 = vlaneseq
    %v2526 = vshrl.u32 %v2525, 7
    %v2527 = vsub.s32 %v2524, %v2526
    %v2528 = vrot.slane %v2521, %v2527
    %v2530 = vunpack.c.l.s4 1966171168
    %v2531 = vunpack.c.0.s8 %v2530
    %v2532 = vlaneseq
    %v2533 = vshrl.u32 %v2532, 7
    %v2534 = vsub.s32 %v2531, %v2533
    %v2535 = vrot.slane %v2520, %v2534
    %v2536 = vcombine.low %v2528, %v2535
    %v2537 = vcombine.low %v1948, %v1962
    %v2538 = vcombine.low %v1964, %v1966
    %v2540 = vunpack.c.l.s4 1966171168
    %v2541 = vunpack.c.0.s8 %v2540
    %v2542 = vlaneseq
    %v2543 = vshrl.u32 %v2542, 7
    %v2544 = vsub.s32 %v2541, %v2543
    %v2545 = vrot.slane %v2537, %v2544
    %v2547 = vunpack.c.l.s4 1966171168
    %v2548 = vunpack.c.0.s8 %v2547
    %v2549 = vlaneseq
    %v2550 = vshrl.u32 %v2549, 7
    %v2551 = vsub.s32 %v2548, %v2550
    %v2552 = vrot.slane %v2538, %v2551
    %v2554 = vunpack.c.l.s4 1966171168
    %v2555 = vunpack.c.0.s8 %v2554
    %v2556 = vlaneseq
    %v2557 = vshrl.u32 %v2556, 7
    %v2558 = vsub.s32 %v2555, %v2557
    %v2559 = vrot.slane %v1990, %v2558
    %v2560 = vcombine.low %v2545, %v2552
    %v2562 = vunpack.c.l.s4 1966171168
    %v2563 = vunpack.c.0.s8 %v2562
    %v2564 = vlaneseq
    %v2565 = vshrl.u32 %v2564, 7
    %v2566 = vsub.s32 %v2563, %v2565
    %v2567 = vrot.slane %v2560, %v2566
    %v2569 = vunpack.c.l.s4 1966171168
    %v2570 = vunpack.c.0.s8 %v2569
    %v2571 = vlaneseq
    %v2572 = vshrl.u32 %v2571, 7
    %v2573 = vsub.s32 %v2570, %v2572
    %v2574 = vrot.slane %v2559, %v2573
    %v2575 = vcombine.low %v2567, %v2574
    %v2576 = vcombine.low %v2102, %v2110
    %v2577 = vcombine.low %v2112, %v2095
    %v2579 = vunpack.c.l.s4 1966171168
    %v2580 = vunpack.c.0.s8 %v2579
    %v2581 = vlaneseq
    %v2582 = vshrl.u32 %v2581, 7
    %v2583 = vsub.s32 %v2580, %v2582
    %v2584 = vrot.slane %v2576, %v2583
    %v2586 = vunpack.c.l.s4 1966171168
    %v2587 = vunpack.c.0.s8 %v2586
    %v2588 = vlaneseq
    %v2589 = vshrl.u32 %v2588, 7
    %v2590 = vsub.s32 %v2587, %v2589
    %v2591 = vrot.slane %v2577, %v2590
    %v2593 = vunpack.c.l.s4 1966171168
    %v2594 = vunpack.c.0.s8 %v2593
    %v2595 = vlaneseq
    %v2596 = vshrl.u32 %v2595, 7
    %v2597 = vsub.s32 %v2594, %v2596
    %v2598 = vrot.slane %v2109, %v2597
    %v2599 = vcombine.low %v2584, %v2591
    %v2601 = vunpack.c.l.s4 1966171168
    %v2602 = vunpack.c.0.s8 %v2601
    %v2603 = vlaneseq
    %v2604 = vshrl.u32 %v2603, 7
    %v2605 = vsub.s32 %v2602, %v2604
    %v2606 = vrot.slane %v2599, %v2605
    %v2608 = vunpack.c.l.s4 1966171168
    %v2609 = vunpack.c.0.s8 %v2608
    %v2610 = vlaneseq
    %v2611 = vshrl.u32 %v2610, 7
    %v2612 = vsub.s32 %v2609, %v2611
    %v2613 = vrot.slane %v2598, %v2612
    %v2614 = vcombine.low %v2606, %v2613
    %v2615 = vcombine.low %v2137, %v2151
    %v2616 = vcombine.low %v2159, %v2161
    %v2618 = vunpack.c.l.s4 1966171168
    %v2619 = vunpack.c.0.s8 %v2618
    %v2620 = vlaneseq
    %v2621 = vshrl.u32 %v2620, 7
    %v2622 = vsub.s32 %v2619, %v2621
    %v2623 = vrot.slane %v2615, %v2622
    %v2625 = vunpack.c.l.s4 1966171168
    %v2626 = vunpack.c.0.s8 %v2625
    %v2627 = vlaneseq
    %v2628 = vshrl.u32 %v2627, 7
    %v2629 = vsub.s32 %v2626, %v2628
    %v2630 = vrot.slane %v2616, %v2629
    %v2632 = vunpack.c.l.s4 1966171168
    %v2633 = vunpack.c.0.s8 %v2632
    %v2634 = vlaneseq
    %v2635 = vshrl.u32 %v2634, 7
    %v2636 = vsub.s32 %v2633, %v2635
    %v2637 = vrot.slane %v2144, %v2636
    %v2638 = vcombine.low %v2623, %v2630
    %v2640 = vunpack.c.l.s4 1966171168
    %v2641 = vunpack.c.0.s8 %v2640
    %v2642 = vlaneseq
    %v2643 = vshrl.u32 %v2642, 7
    %v2644 = vsub.s32 %v2641, %v2643
    %v2645 = vrot.slane %v2638, %v2644
    %v2647 = vunpack.c.l.s4 1966171168
    %v2648 = vunpack.c.0.s8 %v2647
    %v2649 = vlaneseq
    %v2650 = vshrl.u32 %v2649, 7
    %v2651 = vsub.s32 %v2648, %v2650
    %v2652 = vrot.slane %v2637, %v2651
    %v2653 = vcombine.low %v2645, %v2652
    %v2654 = vcombine.low %v2162, %v2186
    %v2655 = vcombine.low %v2200, %v2208
    %v2657 = vunpack.c.l.s4 1966171168
    %v2658 = vunpack.c.0.s8 %v2657
    %v2659 = vlaneseq
    %v2660 = vshrl.u32 %v2659, 7
    %v2661 = vsub.s32 %v2658, %v2660
    %v2662 = vrot.slane %v2654, %v2661
    %v2664 = vunpack.c.l.s4 1966171168
    %v2665 = vunpack.c.0.s8 %v2664
    %v2666 = vlaneseq
    %v2667 = vshrl.u32 %v2666, 7
    %v2668 = vsub.s32 %v2665, %v2667
    %v2669 = vrot.slane %v2655, %v2668
    %v2671 = vunpack.c.l.s4 1966171168
    %v2672 = vunpack.c.0.s8 %v2671
    %v2673 = vlaneseq
    %v2674 = vshrl.u32 %v2673, 7
    %v2675 = vsub.s32 %v2672, %v2674
    %v2676 = vrot.slane %v2210, %v2675
    %v2677 = vcombine.low %v2662, %v2669
    %v2679 = vunpack.c.l.s4 1966171168
    %v2680 = vunpack.c.0.s8 %v2679
    %v2681 = vlaneseq
    %v2682 = vshrl.u32 %v2681, 7
    %v2683 = vsub.s32 %v2680, %v2682
    %v2684 = vrot.slane %v2677, %v2683
    %v2686 = vunpack.c.l.s4 1966171168
    %v2687 = vunpack.c.0.s8 %v2686
    %v2688 = vlaneseq
    %v2689 = vshrl.u32 %v2688, 7
    %v2690 = vsub.s32 %v2687, %v2689
    %v2691 = vrot.slane %v2676, %v2690
    %v2692 = vcombine.low %v2684, %v2691
    %v2693 = vcombine.low %v2209, %v2211
    %v2694 = vcombine.low %v2235, %v2249
    %v2696 = vunpack.c.l.s4 1966171168
    %v2697 = vunpack.c.0.s8 %v2696
    %v2698 = vlaneseq
    %v2699 = vshrl.u32 %v2698, 7
    %v2700 = vsub.s32 %v2697, %v2699
    %v2701 = vrot.slane %v2693, %v2700
    %v2703 = vunpack.c.l.s4 1966171168
    %v2704 = vunpack.c.0.s8 %v2703
    %v2705 = vlaneseq
    %v2706 = vshrl.u32 %v2705, 7
    %v2707 = vsub.s32 %v2704, %v2706
    %v2708 = vrot.slane %v2694, %v2707
    %v2710 = vunpack.c.l.s4 1966171168
    %v2711 = vunpack.c.0.s8 %v2710
    %v2712 = vlaneseq
    %v2713 = vshrl.u32 %v2712, 7
    %v2714 = vsub.s32 %v2711, %v2713
    %v2715 = vrot.slane %v2257, %v2714
    %v2716 = vcombine.low %v2701, %v2708
    %v2718 = vunpack.c.l.s4 1966171168
    %v2719 = vunpack.c.0.s8 %v2718
    %v2720 = vlaneseq
    %v2721 = vshrl.u32 %v2720, 7
    %v2722 = vsub.s32 %v2719, %v2721
    %v2723 = vrot.slane %v2716, %v2722
    %v2725 = vunpack.c.l.s4 1966171168
    %v2726 = vunpack.c.0.s8 %v2725
    %v2727 = vlaneseq
    %v2728 = vshrl.u32 %v2727, 7
    %v2729 = vsub.s32 %v2726, %v2728
    %v2730 = vrot.slane %v2715, %v2729
    %v2731 = vcombine.low %v2723, %v2730
    %v2732 = vcombine.low %v2256, %v2258
    %v2733 = vcombine.low %v2260, %v2284
    %v2735 = vunpack.c.l.s4 1966171168
    %v2736 = vunpack.c.0.s8 %v2735
    %v2737 = vlaneseq
    %v2738 = vshrl.u32 %v2737, 7
    %v2739 = vsub.s32 %v2736, %v2738
    %v2740 = vrot.slane %v2732, %v2739
    %v2742 = vunpack.c.l.s4 1966171168
    %v2743 = vunpack.c.0.s8 %v2742
    %v2744 = vlaneseq
    %v2745 = vshrl.u32 %v2744, 7
    %v2746 = vsub.s32 %v2743, %v2745
    %v2747 = vrot.slane %v2733, %v2746
    %v2749 = vunpack.c.l.s4 1966171168
    %v2750 = vunpack.c.0.s8 %v2749
    %v2751 = vlaneseq
    %v2752 = vshrl.u32 %v2751, 7
    %v2753 = vsub.s32 %v2750, %v2752
    %v2754 = vrot.slane %v2298, %v2753
    %v2755 = vcombine.low %v2740, %v2747
    %v2757 = vunpack.c.l.s4 1966171168
    %v2758 = vunpack.c.0.s8 %v2757
    %v2759 = vlaneseq
    %v2760 = vshrl.u32 %v2759, 7
    %v2761 = vsub.s32 %v2758, %v2760
    %v2762 = vrot.slane %v2755, %v2761
    %v2764 = vunpack.c.l.s4 1966171168
    %v2765 = vunpack.c.0.s8 %v2764
    %v2766 = vlaneseq
    %v2767 = vshrl.u32 %v2766, 7
    %v2768 = vsub.s32 %v2765, %v2767
    %v2769 = vrot.slane %v2754, %v2768
    %v2770 = vcombine.low %v2762, %v2769
    %v2781 = vcombine.low %v1808, %v1816
    %v2782 = vcombine.low %v1818, %v1801
    %v2784 = vunpack.c.l.s4 1966171168
    %v2785 = vunpack.c.0.s8 %v2784
    %v2786 = vlaneseq
    %v2787 = vshrl.u32 %v2786, 7
    %v2788 = vsub.s32 %v2785, %v2787
    %v2789 = vrot.slane %v2781, %v2788
    %v2791 = vunpack.c.l.s4 1966171168
    %v2792 = vunpack.c.0.s8 %v2791
    %v2793 = vlaneseq
    %v2794 = vshrl.u32 %v2793, 7
    %v2795 = vsub.s32 %v2792, %v2794
    %v2796 = vrot.slane %v2782, %v2795
    %v2798 = vunpack.c.l.s4 1966171168
    %v2799 = vunpack.c.0.s8 %v2798
    %v2800 = vlaneseq
    %v2801 = vshrl.u32 %v2800, 7
    %v2802 = vsub.s32 %v2799, %v2801
    %v2803 = vrot.slane %v1815, %v2802
    %v2804 = vcombine.low %v2789, %v2796
    %v2806 = vunpack.c.l.s4 1966171168
    %v2807 = vunpack.c.0.s8 %v2806
    %v2808 = vlaneseq
    %v2809 = vshrl.u32 %v2808, 7
    %v2810 = vsub.s32 %v2807, %v2809
    %v2811 = vrot.slane %v2804, %v2810
    %v2813 = vunpack.c.l.s4 1966171168
    %v2814 = vunpack.c.0.s8 %v2813
    %v2815 = vlaneseq
    %v2816 = vshrl.u32 %v2815, 7
    %v2817 = vsub.s32 %v2814, %v2816
    %v2818 = vrot.slane %v2803, %v2817
    %v2819 = vcombine.low %v2811, %v2818
    %v2820 = vcombine.low %v1843, %v1857
    %v2821 = vcombine.low %v1865, %v1867
    %v2823 = vunpack.c.l.s4 1966171168
    %v2824 = vunpack.c.0.s8 %v2823
    %v2825 = vlaneseq
    %v2826 = vshrl.u32 %v2825, 7
    %v2827 = vsub.s32 %v2824, %v2826
    %v2828 = vrot.slane %v2820, %v2827
    %v2830 = vunpack.c.l.s4 1966171168
    %v2831 = vunpack.c.0.s8 %v2830
    %v2832 = vlaneseq
    %v2833 = vshrl.u32 %v2832, 7
    %v2834 = vsub.s32 %v2831, %v2833
    %v2835 = vrot.slane %v2821, %v2834
    %v2837 = vunpack.c.l.s4 1966171168
    %v2838 = vunpack.c.0.s8 %v2837
    %v2839 = vlaneseq
    %v2840 = vshrl.u32 %v2839, 7
    %v2841 = vsub.s32 %v2838, %v2840
    %v2842 = vrot.slane %v1850, %v2841
    %v2843 = vcombine.low %v2828, %v2835
    %v2845 = vunpack.c.l.s4 1966171168
    %v2846 = vunpack.c.0.s8 %v2845
    %v2847 = vlaneseq
    %v2848 = vshrl.u32 %v2847, 7
    %v2849 = vsub.s32 %v2846, %v2848
    %v2850 = vrot.slane %v2843, %v2849
    %v2852 = vunpack.c.l.s4 1966171168
    %v2853 = vunpack.c.0.s8 %v2852
    %v2854 = vlaneseq
    %v2855 = vshrl.u32 %v2854, 7
    %v2856 = vsub.s32 %v2853, %v2855
    %v2857 = vrot.slane %v2842, %v2856
    %v2858 = vcombine.low %v2850, %v2857
    %v2859 = vcombine.low %v1868, %v1892
    %v2860 = vcombine.low %v1906, %v1914
    %v2862 = vunpack.c.l.s4 1966171168
    %v2863 = vunpack.c.0.s8 %v2862
    %v2864 = vlaneseq
    %v2865 = vshrl.u32 %v2864, 7
    %v2866 = vsub.s32 %v2863, %v2865
    %v2867 = vrot.slane %v2859, %v2866
    %v2869 = vunpack.c.l.s4 1966171168
    %v2870 = vunpack.c.0.s8 %v2869
    %v2871 = vlaneseq
    %v2872 = vshrl.u32 %v2871, 7
    %v2873 = vsub.s32 %v2870, %v2872
    %v2874 = vrot.slane %v2860, %v2873
    %v2876 = vunpack.c.l.s4 1966171168
    %v2877 = vunpack.c.0.s8 %v2876
    %v2878 = vlaneseq
    %v2879 = vshrl.u32 %v2878, 7
    %v2880 = vsub.s32 %v2877, %v2879
    %v2881 = vrot.slane %v1916, %v2880
    %v2882 = vcombine.low %v2867, %v2874
    %v2884 = vunpack.c.l.s4 1966171168
    %v2885 = vunpack.c.0.s8 %v2884
    %v2886 = vlaneseq
    %v2887 = vshrl.u32 %v2886, 7
    %v2888 = vsub.s32 %v2885, %v2887
    %v2889 = vrot.slane %v2882, %v2888
    %v2891 = vunpack.c.l.s4 1966171168
    %v2892 = vunpack.c.0.s8 %v2891
    %v2893 = vlaneseq
    %v2894 = vshrl.u32 %v2893, 7
    %v2895 = vsub.s32 %v2892, %v2894
    %v2896 = vrot.slane %v2881, %v2895
    %v2897 = vcombine.low %v2889, %v2896
    %v2898 = vcombine.low %v1915, %v1917
    %v2899 = vcombine.low %v1941, %v1955
    %v2901 = vunpack.c.l.s4 1966171168
    %v2902 = vunpack.c.0.s8 %v2901
    %v2903 = vlaneseq
    %v2904 = vshrl.u32 %v2903, 7
    %v2905 = vsub.s32 %v2902, %v2904
    %v2906 = vrot.slane %v2898, %v2905
    %v2908 = vunpack.c.l.s4 1966171168
    %v2909 = vunpack.c.0.s8 %v2908
    %v2910 = vlaneseq
    %v2911 = vshrl.u32 %v2910, 7
    %v2912 = vsub.s32 %v2909, %v2911
    %v2913 = vrot.slane %v2899, %v2912
    %v2915 = vunpack.c.l.s4 1966171168
    %v2916 = vunpack.c.0.s8 %v2915
    %v2917 = vlaneseq
    %v2918 = vshrl.u32 %v2917, 7
    %v2919 = vsub.s32 %v2916, %v2918
    %v2920 = vrot.slane %v1963, %v2919
    %v2921 = vcombine.low %v2906, %v2913
    %v2923 = vunpack.c.l.s4 1966171168
    %v2924 = vunpack.c.0.s8 %v2923
    %v2925 = vlaneseq
    %v2926 = vshrl.u32 %v2925, 7
    %v2927 = vsub.s32 %v2924, %v2926
    %v2928 = vrot.slane %v2921, %v2927
    %v2930 = vunpack.c.l.s4 1966171168
    %v2931 = vunpack.c.0.s8 %v2930
    %v2932 = vlaneseq
    %v2933 = vshrl.u32 %v2932, 7
    %v2934 = vsub.s32 %v2931, %v2933
    %v2935 = vrot.slane %v2920, %v2934
    %v2936 = vcombine.low %v2928, %v2935
    %v2937 = vcombine.low %v1962, %v1964
    %v2938 = vcombine.low %v1966, %v1990
    %v2940 = vunpack.c.l.s4 1966171168
    %v2941 = vunpack.c.0.s8 %v2940
    %v2942 = vlaneseq
    %v2943 = vshrl.u32 %v2942, 7
    %v2944 = vsub.s32 %v2941, %v2943
    %v2945 = vrot.slane %v2937, %v2944
    %v2947 = vunpack.c.l.s4 1966171168
    %v2948 = vunpack.c.0.s8 %v2947
    %v2949 = vlaneseq
    %v2950 = vshrl.u32 %v2949, 7
    %v2951 = vsub.s32 %v2948, %v2950
    %v2952 = vrot.slane %v2938, %v2951
    %v2954 = vunpack.c.l.s4 1966171168
    %v2955 = vunpack.c.0.s8 %v2954
    %v2956 = vlaneseq
    %v2957 = vshrl.u32 %v2956, 7
    %v2958 = vsub.s32 %v2955, %v2957
    %v2959 = vrot.slane %v2004, %v2958
    %v2960 = vcombine.low %v2945, %v2952
    %v2962 = vunpack.c.l.s4 1966171168
    %v2963 = vunpack.c.0.s8 %v2962
    %v2964 = vlaneseq
    %v2965 = vshrl.u32 %v2964, 7
    %v2966 = vsub.s32 %v2963, %v2965
    %v2967 = vrot.slane %v2960, %v2966
    %v2969 = vunpack.c.l.s4 1966171168
    %v2970 = vunpack.c.0.s8 %v2969
    %v2971 = vlaneseq
    %v2972 = vshrl.u32 %v2971, 7
    %v2973 = vsub.s32 %v2970, %v2972
    %v2974 = vrot.slane %v2959, %v2973
    %v2975 = vcombine.low %v2967, %v2974
    %v2976 = vcombine.low %v2110, %v2112
    %v2977 = vcombine.low %v2095, %v2109
    %v2979 = vunpack.c.l.s4 1966171168
    %v2980 = vunpack.c.0.s8 %v2979
    %v2981 = vlaneseq
    %v2982 = vshrl.u32 %v2981, 7
    %v2983 = vsub.s32 %v2980, %v2982
    %v2984 = vrot.slane %v2976, %v2983
    %v2986 = vunpack.c.l.s4 1966171168
    %v2987 = vunpack.c.0.s8 %v2986
    %v2988 = vlaneseq
    %v2989 = vshrl.u32 %v2988, 7
    %v2990 = vsub.s32 %v2987, %v2989
    %v2991 = vrot.slane %v2977, %v2990
    %v2993 = vunpack.c.l.s4 1966171168
    %v2994 = vunpack.c.0.s8 %v2993
    %v2995 = vlaneseq
    %v2996 = vshrl.u32 %v2995, 7
    %v2997 = vsub.s32 %v2994, %v2996
    %v2998 = vrot.slane %v2111, %v2997
    %v2999 = vcombine.low %v2984, %v2991
    %v3001 = vunpack.c.l.s4 1966171168
    %v3002 = vunpack.c.0.s8 %v3001
    %v3003 = vlaneseq
    %v3004 = vshrl.u32 %v3003, 7
    %v3005 = vsub.s32 %v3002, %v3004
    %v3006 = vrot.slane %v2999, %v3005
    %v3008 = vunpack.c.l.s4 1966171168
    %v3009 = vunpack.c.0.s8 %v3008
    %v3010 = vlaneseq
    %v3011 = vshrl.u32 %v3010, 7
    %v3012 = vsub.s32 %v3009, %v3011
    %v3013 = vrot.slane %v2998, %v3012
    %v3014 = vcombine.low %v3006, %v3013
    %v3015 = vcombine.low %v2151, %v2159
    %v3016 = vcombine.low %v2161, %v2144
    %v3018 = vunpack.c.l.s4 1966171168
    %v3019 = vunpack.c.0.s8 %v3018
    %v3020 = vlaneseq
    %v3021 = vshrl.u32 %v3020, 7
    %v3022 = vsub.s32 %v3019, %v3021
    %v3023 = vrot.slane %v3015, %v3022
    %v3025 = vunpack.c.l.s4 1966171168
    %v3026 = vunpack.c.0.s8 %v3025
    %v3027 = vlaneseq
    %v3028 = vshrl.u32 %v3027, 7
    %v3029 = vsub.s32 %v3026, %v3028
    %v3030 = vrot.slane %v3016, %v3029
    %v3032 = vunpack.c.l.s4 1966171168
    %v3033 = vunpack.c.0.s8 %v3032
    %v3034 = vlaneseq
    %v3035 = vshrl.u32 %v3034, 7
    %v3036 = vsub.s32 %v3033, %v3035
    %v3037 = vrot.slane %v2158, %v3036
    %v3038 = vcombine.low %v3023, %v3030
    %v3040 = vunpack.c.l.s4 1966171168
    %v3041 = vunpack.c.0.s8 %v3040
    %v3042 = vlaneseq
    %v3043 = vshrl.u32 %v3042, 7
    %v3044 = vsub.s32 %v3041, %v3043
    %v3045 = vrot.slane %v3038, %v3044
    %v3047 = vunpack.c.l.s4 1966171168
    %v3048 = vunpack.c.0.s8 %v3047
    %v3049 = vlaneseq
    %v3050 = vshrl.u32 %v3049, 7
    %v3051 = vsub.s32 %v3048, %v3050
    %v3052 = vrot.slane %v3037, %v3051
    %v3053 = vcombine.low %v3045, %v3052
    %v3054 = vcombine.low %v2186, %v2200
    %v3055 = vcombine.low %v2208, %v2210
    %v3057 = vunpack.c.l.s4 1966171168
    %v3058 = vunpack.c.0.s8 %v3057
    %v3059 = vlaneseq
    %v3060 = vshrl.u32 %v3059, 7
    %v3061 = vsub.s32 %v3058, %v3060
    %v3062 = vrot.slane %v3054, %v3061
    %v3064 = vunpack.c.l.s4 1966171168
    %v3065 = vunpack.c.0.s8 %v3064
    %v3066 = vlaneseq
    %v3067 = vshrl.u32 %v3066, 7
    %v3068 = vsub.s32 %v3065, %v3067
    %v3069 = vrot.slane %v3055, %v3068
    %v3071 = vunpack.c.l.s4 1966171168
    %v3072 = vunpack.c.0.s8 %v3071
    %v3073 = vlaneseq
    %v3074 = vshrl.u32 %v3073, 7
    %v3075 = vsub.s32 %v3072, %v3074
    %v3076 = vrot.slane %v2193, %v3075
    %v3077 = vcombine.low %v3062, %v3069
    %v3079 = vunpack.c.l.s4 1966171168
    %v3080 = vunpack.c.0.s8 %v3079
    %v3081 = vlaneseq
    %v3082 = vshrl.u32 %v3081, 7
    %v3083 = vsub.s32 %v3080, %v3082
    %v3084 = vrot.slane %v3077, %v3083
    %v3086 = vunpack.c.l.s4 1966171168
    %v3087 = vunpack.c.0.s8 %v3086
    %v3088 = vlaneseq
    %v3089 = vshrl.u32 %v3088, 7
    %v3090 = vsub.s32 %v3087, %v3089
    %v3091 = vrot.slane %v3076, %v3090
    %v3092 = vcombine.low %v3084, %v3091
    %v3093 = vcombine.low %v2211, %v2235
    %v3094 = vcombine.low %v2249, %v2257
    %v3096 = vunpack.c.l.s4 1966171168
    %v3097 = vunpack.c.0.s8 %v3096
    %v3098 = vlaneseq
    %v3099 = vshrl.u32 %v3098, 7
    %v3100 = vsub.s32 %v3097, %v3099
    %v3101 = vrot.slane %v3093, %v3100
    %v3103 = vunpack.c.l.s4 1966171168
    %v3104 = vunpack.c.0.s8 %v3103
    %v3105 = vlaneseq
    %v3106 = vshrl.u32 %v3105, 7
    %v3107 = vsub.s32 %v3104, %v3106
    %v3108 = vrot.slane %v3094, %v3107
    %v3110 = vunpack.c.l.s4 1966171168
    %v3111 = vunpack.c.0.s8 %v3110
    %v3112 = vlaneseq
    %v3113 = vshrl.u32 %v3112, 7
    %v3114 = vsub.s32 %v3111, %v3113
    %v3115 = vrot.slane %v2259, %v3114
    %v3116 = vcombine.low %v3101, %v3108
    %v3118 = vunpack.c.l.s4 1966171168
    %v3119 = vunpack.c.0.s8 %v3118
    %v3120 = vlaneseq
    %v3121 = vshrl.u32 %v3120, 7
    %v3122 = vsub.s32 %v3119, %v3121
    %v3123 = vrot.slane %v3116, %v3122
    %v3125 = vunpack.c.l.s4 1966171168
    %v3126 = vunpack.c.0.s8 %v3125
    %v3127 = vlaneseq
    %v3128 = vshrl.u32 %v3127, 7
    %v3129 = vsub.s32 %v3126, %v3128
    %v3130 = vrot.slane %v3115, %v3129
    %v3131 = vcombine.low %v3123, %v3130
    %v3132 = vcombine.low %v2258, %v2260
    %v3133 = vcombine.low %v2284, %v2298
    %v3135 = vunpack.c.l.s4 1966171168
    %v3136 = vunpack.c.0.s8 %v3135
    %v3137 = vlaneseq
    %v3138 = vshrl.u32 %v3137, 7
    %v3139 = vsub.s32 %v3136, %v3138
    %v3140 = vrot.slane %v3132, %v3139
    %v3142 = vunpack.c.l.s4 1966171168
    %v3143 = vunpack.c.0.s8 %v3142
    %v3144 = vlaneseq
    %v3145 = vshrl.u32 %v3144, 7
    %v3146 = vsub.s32 %v3143, %v3145
    %v3147 = vrot.slane %v3133, %v3146
    %v3149 = vunpack.c.l.s4 1966171168
    %v3150 = vunpack.c.0.s8 %v3149
    %v3151 = vlaneseq
    %v3152 = vshrl.u32 %v3151, 7
    %v3153 = vsub.s32 %v3150, %v3152
    %v3154 = vrot.slane %v2306, %v3153
    %v3155 = vcombine.low %v3140, %v3147
    %v3157 = vunpack.c.l.s4 1966171168
    %v3158 = vunpack.c.0.s8 %v3157
    %v3159 = vlaneseq
    %v3160 = vshrl.u32 %v3159, 7
    %v3161 = vsub.s32 %v3158, %v3160
    %v3162 = vrot.slane %v3155, %v3161
    %v3164 = vunpack.c.l.s4 1966171168
    %v3165 = vunpack.c.0.s8 %v3164
    %v3166 = vlaneseq
    %v3167 = vshrl.u32 %v3166, 7
    %v3168 = vsub.s32 %v3165, %v3167
    %v3169 = vrot.slane %v3154, %v3168
    %v3170 = vcombine.low %v3162, %v3169
    %3171 = vrot.lane.b32.xlu0 %v2819, 8
    %v3172 = vpop.permute.xlu0 %3171
    %3173 = vrot.lane.b32.xlu0 %v2858, 8
    %v3174 = vpop.permute.xlu0 %3173
    %3175 = vrot.lane.b32.xlu0 %v2897, 8
    %v3176 = vpop.permute.xlu0 %3175
    %3177 = vrot.lane.b32.xlu0 %v2936, 8
    %v3178 = vpop.permute.xlu0 %3177
    %3179 = vrot.lane.b32.xlu0 %v2975, 8
    %v3180 = vpop.permute.xlu0 %3179
    %3181 = vrot.lane.b32.xlu0 %v3014, 8
    %v3182 = vpop.permute.xlu0 %3181
    %3183 = vrot.lane.b32.xlu0 %v3053, 8
    %v3184 = vpop.permute.xlu0 %3183
    %3185 = vrot.lane.b32.xlu0 %v3092, 8
    %v3186 = vpop.permute.xlu0 %3185
    %3187 = vrot.lane.b32.xlu0 %v3131, 8
    %v3188 = vpop.permute.xlu0 %3187
    %3189 = vrot.lane.b32.xlu0 %v3170, 8
    %v3190 = vpop.permute.xlu0 %3189
    %v3201 = vcombine.low %v1801, %v1815
    %v3203 = vunpack.c.l.s4 1966171168
    %v3204 = vunpack.c.0.s8 %v3203
    %v3205 = vlaneseq
    %v3206 = vshrl.u32 %v3205, 7
    %v3207 = vsub.s32 %v3204, %v3206
    %v3208 = vrot.slane %v3201, %v3207
    %v3210 = vunpack.c.l.s4 1966171168
    %v3211 = vunpack.c.0.s8 %v3210
    %v3212 = vlaneseq
    %v3213 = vshrl.u32 %v3212, 7
    %v3214 = vsub.s32 %v3211, %v3213
    %v3215 = vrot.slane %v1817, %v3214
    %v3216 = vcombine.low %v2396, %v3208
    %v3218 = vunpack.c.l.s4 1966171168
    %v3219 = vunpack.c.0.s8 %v3218
    %v3220 = vlaneseq
    %v3221 = vshrl.u32 %v3220, 7
    %v3222 = vsub.s32 %v3219, %v3221
    %v3223 = vrot.slane %v3216, %v3222
    %v3225 = vunpack.c.l.s4 1966171168
    %v3226 = vunpack.c.0.s8 %v3225
    %v3227 = vlaneseq
    %v3228 = vshrl.u32 %v3227, 7
    %v3229 = vsub.s32 %v3226, %v3228
    %v3230 = vrot.slane %v3215, %v3229
    %v3231 = vcombine.low %v3223, %v3230
    %v3232 = vcombine.low %v1867, %v1850
    %v3234 = vunpack.c.l.s4 1966171168
    %v3235 = vunpack.c.0.s8 %v3234
    %v3236 = vlaneseq
    %v3237 = vshrl.u32 %v3236, 7
    %v3238 = vsub.s32 %v3235, %v3237
    %v3239 = vrot.slane %v3232, %v3238
    %v3241 = vunpack.c.l.s4 1966171168
    %v3242 = vunpack.c.0.s8 %v3241
    %v3243 = vlaneseq
    %v3244 = vshrl.u32 %v3243, 7
    %v3245 = vsub.s32 %v3242, %v3244
    %v3246 = vrot.slane %v1864, %v3245
    %v3247 = vcombine.low %v2435, %v3239
    %v3249 = vunpack.c.l.s4 1966171168
    %v3250 = vunpack.c.0.s8 %v3249
    %v3251 = vlaneseq
    %v3252 = vshrl.u32 %v3251, 7
    %v3253 = vsub.s32 %v3250, %v3252
    %v3254 = vrot.slane %v3247, %v3253
    %v3256 = vunpack.c.l.s4 1966171168
    %v3257 = vunpack.c.0.s8 %v3256
    %v3258 = vlaneseq
    %v3259 = vshrl.u32 %v3258, 7
    %v3260 = vsub.s32 %v3257, %v3259
    %v3261 = vrot.slane %v3246, %v3260
    %v3262 = vcombine.low %v3254, %v3261
    %v3263 = vcombine.low %v1914, %v1916
    %v3265 = vunpack.c.l.s4 1966171168
    %v3266 = vunpack.c.0.s8 %v3265
    %v3267 = vlaneseq
    %v3268 = vshrl.u32 %v3267, 7
    %v3269 = vsub.s32 %v3266, %v3268
    %v3270 = vrot.slane %v3263, %v3269
    %v3272 = vunpack.c.l.s4 1966171168
    %v3273 = vunpack.c.0.s8 %v3272
    %v3274 = vlaneseq
    %v3275 = vshrl.u32 %v3274, 7
    %v3276 = vsub.s32 %v3273, %v3275
    %v3277 = vrot.slane %v1899, %v3276
    %v3278 = vcombine.low %v2474, %v3270
    %v3280 = vunpack.c.l.s4 1966171168
    %v3281 = vunpack.c.0.s8 %v3280
    %v3282 = vlaneseq
    %v3283 = vshrl.u32 %v3282, 7
    %v3284 = vsub.s32 %v3281, %v3283
    %v3285 = vrot.slane %v3278, %v3284
    %v3287 = vunpack.c.l.s4 1966171168
    %v3288 = vunpack.c.0.s8 %v3287
    %v3289 = vlaneseq
    %v3290 = vshrl.u32 %v3289, 7
    %v3291 = vsub.s32 %v3288, %v3290
    %v3292 = vrot.slane %v3277, %v3291
    %v3293 = vcombine.low %v3285, %v3292
    %v3294 = vcombine.low %v1955, %v1963
    %v3296 = vunpack.c.l.s4 1966171168
    %v3297 = vunpack.c.0.s8 %v3296
    %v3298 = vlaneseq
    %v3299 = vshrl.u32 %v3298, 7
    %v3300 = vsub.s32 %v3297, %v3299
    %v3301 = vrot.slane %v3294, %v3300
    %v3303 = vunpack.c.l.s4 1966171168
    %v3304 = vunpack.c.0.s8 %v3303
    %v3305 = vlaneseq
    %v3306 = vshrl.u32 %v3305, 7
    %v3307 = vsub.s32 %v3304, %v3306
    %v3308 = vrot.slane %v1965, %v3307
    %v3309 = vcombine.low %v2513, %v3301
    %v3311 = vunpack.c.l.s4 1966171168
    %v3312 = vunpack.c.0.s8 %v3311
    %v3313 = vlaneseq
    %v3314 = vshrl.u32 %v3313, 7
    %v3315 = vsub.s32 %v3312, %v3314
    %v3316 = vrot.slane %v3309, %v3315
    %v3318 = vunpack.c.l.s4 1966171168
    %v3319 = vunpack.c.0.s8 %v3318
    %v3320 = vlaneseq
    %v3321 = vshrl.u32 %v3320, 7
    %v3322 = vsub.s32 %v3319, %v3321
    %v3323 = vrot.slane %v3308, %v3322
    %v3324 = vcombine.low %v3316, %v3323
    %v3325 = vcombine.low %v1990, %v2004
    %v3327 = vunpack.c.l.s4 1966171168
    %v3328 = vunpack.c.0.s8 %v3327
    %v3329 = vlaneseq
    %v3330 = vshrl.u32 %v3329, 7
    %v3331 = vsub.s32 %v3328, %v3330
    %v3332 = vrot.slane %v3325, %v3331
    %v3334 = vunpack.c.l.s4 1966171168
    %v3335 = vunpack.c.0.s8 %v3334
    %v3336 = vlaneseq
    %v3337 = vshrl.u32 %v3336, 7
    %v3338 = vsub.s32 %v3335, %v3337
    %v3339 = vrot.slane %v2012, %v3338
    %v3340 = vcombine.low %v2552, %v3332
    %v3342 = vunpack.c.l.s4 1966171168
    %v3343 = vunpack.c.0.s8 %v3342
    %v3344 = vlaneseq
    %v3345 = vshrl.u32 %v3344, 7
    %v3346 = vsub.s32 %v3343, %v3345
    %v3347 = vrot.slane %v3340, %v3346
    %v3349 = vunpack.c.l.s4 1966171168
    %v3350 = vunpack.c.0.s8 %v3349
    %v3351 = vlaneseq
    %v3352 = vshrl.u32 %v3351, 7
    %v3353 = vsub.s32 %v3350, %v3352
    %v3354 = vrot.slane %v3339, %v3353
    %v3355 = vcombine.low %v3347, %v3354
    %v3356 = vcombine.low %v2109, %v2111
    %v3358 = vunpack.c.l.s4 1966171168
    %v3359 = vunpack.c.0.s8 %v3358
    %v3360 = vlaneseq
    %v3361 = vshrl.u32 %v3360, 7
    %v3362 = vsub.s32 %v3359, %v3361
    %v3363 = vrot.slane %v3356, %v3362
    %v3365 = vunpack.c.l.s4 1966171168
    %v3366 = vunpack.c.0.s8 %v3365
    %v3367 = vlaneseq
    %v3368 = vshrl.u32 %v3367, 7
    %v3369 = vsub.s32 %v3366, %v3368
    %v3370 = vrot.slane %v2113, %v3369
    %v3371 = vcombine.low %v2591, %v3363
    %v3373 = vunpack.c.l.s4 1966171168
    %v3374 = vunpack.c.0.s8 %v3373
    %v3375 = vlaneseq
    %v3376 = vshrl.u32 %v3375, 7
    %v3377 = vsub.s32 %v3374, %v3376
    %v3378 = vrot.slane %v3371, %v3377
    %v3380 = vunpack.c.l.s4 1966171168
    %v3381 = vunpack.c.0.s8 %v3380
    %v3382 = vlaneseq
    %v3383 = vshrl.u32 %v3382, 7
    %v3384 = vsub.s32 %v3381, %v3383
    %v3385 = vrot.slane %v3370, %v3384
    %v3386 = vcombine.low %v3378, %v3385
    %v3387 = vcombine.low %v2144, %v2158
    %v3389 = vunpack.c.l.s4 1966171168
    %v3390 = vunpack.c.0.s8 %v3389
    %v3391 = vlaneseq
    %v3392 = vshrl.u32 %v3391, 7
    %v3393 = vsub.s32 %v3390, %v3392
    %v3394 = vrot.slane %v3387, %v3393
    %v3396 = vunpack.c.l.s4 1966171168
    %v3397 = vunpack.c.0.s8 %v3396
    %v3398 = vlaneseq
    %v3399 = vshrl.u32 %v3398, 7
    %v3400 = vsub.s32 %v3397, %v3399
    %v3401 = vrot.slane %v2160, %v3400
    %v3402 = vcombine.low %v2630, %v3394
    %v3404 = vunpack.c.l.s4 1966171168
    %v3405 = vunpack.c.0.s8 %v3404
    %v3406 = vlaneseq
    %v3407 = vshrl.u32 %v3406, 7
    %v3408 = vsub.s32 %v3405, %v3407
    %v3409 = vrot.slane %v3402, %v3408
    %v3411 = vunpack.c.l.s4 1966171168
    %v3412 = vunpack.c.0.s8 %v3411
    %v3413 = vlaneseq
    %v3414 = vshrl.u32 %v3413, 7
    %v3415 = vsub.s32 %v3412, %v3414
    %v3416 = vrot.slane %v3401, %v3415
    %v3417 = vcombine.low %v3409, %v3416
    %v3418 = vcombine.low %v2210, %v2193
    %v3420 = vunpack.c.l.s4 1966171168
    %v3421 = vunpack.c.0.s8 %v3420
    %v3422 = vlaneseq
    %v3423 = vshrl.u32 %v3422, 7
    %v3424 = vsub.s32 %v3421, %v3423
    %v3425 = vrot.slane %v3418, %v3424
    %v3427 = vunpack.c.l.s4 1966171168
    %v3428 = vunpack.c.0.s8 %v3427
    %v3429 = vlaneseq
    %v3430 = vshrl.u32 %v3429, 7
    %v3431 = vsub.s32 %v3428, %v3430
    %v3432 = vrot.slane %v2207, %v3431
    %v3433 = vcombine.low %v2669, %v3425
    %v3435 = vunpack.c.l.s4 1966171168
    %v3436 = vunpack.c.0.s8 %v3435
    %v3437 = vlaneseq
    %v3438 = vshrl.u32 %v3437, 7
    %v3439 = vsub.s32 %v3436, %v3438
    %v3440 = vrot.slane %v3433, %v3439
    %v3442 = vunpack.c.l.s4 1966171168
    %v3443 = vunpack.c.0.s8 %v3442
    %v3444 = vlaneseq
    %v3445 = vshrl.u32 %v3444, 7
    %v3446 = vsub.s32 %v3443, %v3445
    %v3447 = vrot.slane %v3432, %v3446
    %v3448 = vcombine.low %v3440, %v3447
    %v3449 = vcombine.low %v2257, %v2259
    %v3451 = vunpack.c.l.s4 1966171168
    %v3452 = vunpack.c.0.s8 %v3451
    %v3453 = vlaneseq
    %v3454 = vshrl.u32 %v3453, 7
    %v3455 = vsub.s32 %v3452, %v3454
    %v3456 = vrot.slane %v3449, %v3455
    %v3458 = vunpack.c.l.s4 1966171168
    %v3459 = vunpack.c.0.s8 %v3458
    %v3460 = vlaneseq
    %v3461 = vshrl.u32 %v3460, 7
    %v3462 = vsub.s32 %v3459, %v3461
    %v3463 = vrot.slane %v2242, %v3462
    %v3464 = vcombine.low %v2708, %v3456
    %v3466 = vunpack.c.l.s4 1966171168
    %v3467 = vunpack.c.0.s8 %v3466
    %v3468 = vlaneseq
    %v3469 = vshrl.u32 %v3468, 7
    %v3470 = vsub.s32 %v3467, %v3469
    %v3471 = vrot.slane %v3464, %v3470
    %v3473 = vunpack.c.l.s4 1966171168
    %v3474 = vunpack.c.0.s8 %v3473
    %v3475 = vlaneseq
    %v3476 = vshrl.u32 %v3475, 7
    %v3477 = vsub.s32 %v3474, %v3476
    %v3478 = vrot.slane %v3463, %v3477
    %v3479 = vcombine.low %v3471, %v3478
    %v3480 = vcombine.low %v2298, %v2306
    %v3482 = vunpack.c.l.s4 1966171168
    %v3483 = vunpack.c.0.s8 %v3482
    %v3484 = vlaneseq
    %v3485 = vshrl.u32 %v3484, 7
    %v3486 = vsub.s32 %v3483, %v3485
    %v3487 = vrot.slane %v3480, %v3486
    %v3489 = vunpack.c.l.s4 1966171168
    %v3490 = vunpack.c.0.s8 %v3489
    %v3491 = vlaneseq
    %v3492 = vshrl.u32 %v3491, 7
    %v3493 = vsub.s32 %v3490, %v3492
    %v3494 = vrot.slane %v2308, %v3493
    %v3495 = vcombine.low %v2747, %v3487
    %v3497 = vunpack.c.l.s4 1966171168
    %v3498 = vunpack.c.0.s8 %v3497
    %v3499 = vlaneseq
    %v3500 = vshrl.u32 %v3499, 7
    %v3501 = vsub.s32 %v3498, %v3500
    %v3502 = vrot.slane %v3495, %v3501
    %v3504 = vunpack.c.l.s4 1966171168
    %v3505 = vunpack.c.0.s8 %v3504
    %v3506 = vlaneseq
    %v3507 = vshrl.u32 %v3506, 7
    %v3508 = vsub.s32 %v3505, %v3507
    %v3509 = vrot.slane %v3494, %v3508
    %v3510 = vcombine.low %v3502, %v3509
    %3511 = vrot.lane.b32.xlu0 %v3231, 16
    %v3512 = vpop.permute.xlu0 %3511
    %3513 = vrot.lane.b32.xlu0 %v3262, 16
    %v3514 = vpop.permute.xlu0 %3513
    %3515 = vrot.lane.b32.xlu0 %v3293, 16
    %v3516 = vpop.permute.xlu0 %3515
    %3517 = vrot.lane.b32.xlu0 %v3324, 16
    %v3518 = vpop.permute.xlu0 %3517
    %3519 = vrot.lane.b32.xlu0 %v3355, 16
    %v3520 = vpop.permute.xlu0 %3519
    %3521 = vrot.lane.b32.xlu0 %v3386, 16
    %v3522 = vpop.permute.xlu0 %3521
    %3523 = vrot.lane.b32.xlu0 %v3417, 16
    %v3524 = vpop.permute.xlu0 %3523
    %3525 = vrot.lane.b32.xlu0 %v3448, 16
    %v3526 = vpop.permute.xlu0 %3525
    %3527 = vrot.lane.b32.xlu0 %v3479, 16
    %v3528 = vpop.permute.xlu0 %3527
    %3529 = vrot.lane.b32.xlu0 %v3510, 16
    %v3530 = vpop.permute.xlu0 %3529
    %v3541 = vcombine.low %v2014, %v1997
    %v3542 = vcombine.low %v2011, %v2013
    %v3544 = vunpack.c.l.s4 1966171168
    %v3545 = vunpack.c.0.s8 %v3544
    %v3546 = vlaneseq
    %v3547 = vshrl.u32 %v3546, 7
    %v3548 = vsub.s32 %v3545, %v3547
    %v3549 = vrot.slane %v3541, %v3548
    %v3551 = vunpack.c.l.s4 1966171168
    %v3552 = vunpack.c.0.s8 %v3551
    %v3553 = vlaneseq
    %v3554 = vshrl.u32 %v3553, 7
    %v3555 = vsub.s32 %v3552, %v3554
    %v3556 = vrot.slane %v3542, %v3555
    %v3558 = vunpack.c.l.s4 1966171168
    %v3559 = vunpack.c.0.s8 %v3558
    %v3560 = vlaneseq
    %v3561 = vshrl.u32 %v3560, 7
    %v3562 = vsub.s32 %v3559, %v3561
    %v3563 = vrot.slane %v2015, %v3562
    %v3564 = vcombine.low %v3549, %v3556
    %v3566 = vunpack.c.l.s4 1966171168
    %v3567 = vunpack.c.0.s8 %v3566
    %v3568 = vlaneseq
    %v3569 = vshrl.u32 %v3568, 7
    %v3570 = vsub.s32 %v3567, %v3569
    %v3571 = vrot.slane %v3564, %v3570
    %v3573 = vunpack.c.l.s4 1966171168
    %v3574 = vunpack.c.0.s8 %v3573
    %v3575 = vlaneseq
    %v3576 = vshrl.u32 %v3575, 7
    %v3577 = vsub.s32 %v3574, %v3576
    %v3578 = vrot.slane %v3563, %v3577
    %v3579 = vcombine.low %v3571, %v3578
    %v3580 = vcombine.low %v2291, %v2305
    %v3581 = vcombine.low %v2307, %v2309
    %v3583 = vunpack.c.l.s4 1966171168
    %v3584 = vunpack.c.0.s8 %v3583
    %v3585 = vlaneseq
    %v3586 = vshrl.u32 %v3585, 7
    %v3587 = vsub.s32 %v3584, %v3586
    %v3588 = vrot.slane %v3580, %v3587
    %v3590 = vunpack.c.l.s4 1966171168
    %v3591 = vunpack.c.0.s8 %v3590
    %v3592 = vlaneseq
    %v3593 = vshrl.u32 %v3592, 7
    %v3594 = vsub.s32 %v3591, %v3593
    %v3595 = vrot.slane %v3581, %v3594
    %v3597 = vunpack.c.l.s4 1966171168
    %v3598 = vunpack.c.0.s8 %v3597
    %v3599 = vlaneseq
    %v3600 = vshrl.u32 %v3599, 7
    %v3601 = vsub.s32 %v3598, %v3600
    %v3602 = vrot.slane %v2333, %v3601
    %v3603 = vcombine.low %v3588, %v3595
    %v3605 = vunpack.c.l.s4 1966171168
    %v3606 = vunpack.c.0.s8 %v3605
    %v3607 = vlaneseq
    %v3608 = vshrl.u32 %v3607, 7
    %v3609 = vsub.s32 %v3606, %v3608
    %v3610 = vrot.slane %v3603, %v3609
    %v3612 = vunpack.c.l.s4 1966171168
    %v3613 = vunpack.c.0.s8 %v3612
    %v3614 = vlaneseq
    %v3615 = vshrl.u32 %v3614, 7
    %v3616 = vsub.s32 %v3613, %v3615
    %v3617 = vrot.slane %v3602, %v3616
    %v3618 = vcombine.low %v3610, %v3617
    %3619 = vrot.lane.b32.xlu0 %v2458, 24
    %v3620 = vpop.permute.xlu0 %3619
    %3621 = vrot.lane.b32.xlu0 %v2497, 24
    %v3622 = vpop.permute.xlu0 %3621
    %3623 = vrot.lane.b32.xlu0 %v2536, 24
    %v3624 = vpop.permute.xlu0 %3623
    %3625 = vrot.lane.b32.xlu0 %v2575, 24
    %v3626 = vpop.permute.xlu0 %3625
    %3627 = vrot.lane.b32.xlu0 %v3579, 24
    %v3628 = vpop.permute.xlu0 %3627
    %3629 = vrot.lane.b32.xlu0 %v2653, 24
    %v3630 = vpop.permute.xlu0 %3629
    %3631 = vrot.lane.b32.xlu0 %v2692, 24
    %v3632 = vpop.permute.xlu0 %3631
    %3633 = vrot.lane.b32.xlu0 %v2731, 24
    %v3634 = vpop.permute.xlu0 %3633
    %3635 = vrot.lane.b32.xlu0 %v2770, 24
    %v3636 = vpop.permute.xlu0 %3635
    %3637 = vrot.lane.b32.xlu0 %v3618, 24
    %v3638 = vpop.permute.xlu0 %3637
    %v3649 = vcombine.low %v1997, %v2011
    %v3650 = vcombine.low %v2013, %v2015
    %v3652 = vunpack.c.l.s4 1966171168
    %v3653 = vunpack.c.0.s8 %v3652
    %v3654 = vlaneseq
    %v3655 = vshrl.u32 %v3654, 7
    %v3656 = vsub.s32 %v3653, %v3655
    %v3657 = vrot.slane %v3649, %v3656
    %v3659 = vunpack.c.l.s4 1966171168
    %v3660 = vunpack.c.0.s8 %v3659
    %v3661 = vlaneseq
    %v3662 = vshrl.u32 %v3661, 7
    %v3663 = vsub.s32 %v3660, %v3662
    %v3664 = vrot.slane %v3650, %v3663
    %v3666 = vunpack.c.l.s4 1966171168
    %v3667 = vunpack.c.0.s8 %v3666
    %v3668 = vlaneseq
    %v3669 = vshrl.u32 %v3668, 7
    %v3670 = vsub.s32 %v3667, %v3669
    %v3671 = vrot.slane %v2039, %v3670
    %v3672 = vcombine.low %v3657, %v3664
    %v3674 = vunpack.c.l.s4 1966171168
    %v3675 = vunpack.c.0.s8 %v3674
    %v3676 = vlaneseq
    %v3677 = vshrl.u32 %v3676, 7
    %v3678 = vsub.s32 %v3675, %v3677
    %v3679 = vrot.slane %v3672, %v3678
    %v3681 = vunpack.c.l.s4 1966171168
    %v3682 = vunpack.c.0.s8 %v3681
    %v3683 = vlaneseq
    %v3684 = vshrl.u32 %v3683, 7
    %v3685 = vsub.s32 %v3682, %v3684
    %v3686 = vrot.slane %v3671, %v3685
    %v3687 = vcombine.low %v3679, %v3686
    %v3688 = vcombine.low %v2305, %v2307
    %v3689 = vcombine.low %v2309, %v2333
    %v3691 = vunpack.c.l.s4 1966171168
    %v3692 = vunpack.c.0.s8 %v3691
    %v3693 = vlaneseq
    %v3694 = vshrl.u32 %v3693, 7
    %v3695 = vsub.s32 %v3692, %v3694
    %v3696 = vrot.slane %v3688, %v3695
    %v3698 = vunpack.c.l.s4 1966171168
    %v3699 = vunpack.c.0.s8 %v3698
    %v3700 = vlaneseq
    %v3701 = vshrl.u32 %v3700, 7
    %v3702 = vsub.s32 %v3699, %v3701
    %v3703 = vrot.slane %v3689, %v3702
    %v3705 = vunpack.c.l.s4 1966171168
    %v3706 = vunpack.c.0.s8 %v3705
    %v3707 = vlaneseq
    %v3708 = vshrl.u32 %v3707, 7
    %v3709 = vsub.s32 %v3706, %v3708
    %v3710 = vrot.slane %v2347, %v3709
    %v3711 = vcombine.low %v3696, %v3703
    %v3713 = vunpack.c.l.s4 1966171168
    %v3714 = vunpack.c.0.s8 %v3713
    %v3715 = vlaneseq
    %v3716 = vshrl.u32 %v3715, 7
    %v3717 = vsub.s32 %v3714, %v3716
    %v3718 = vrot.slane %v3711, %v3717
    %v3720 = vunpack.c.l.s4 1966171168
    %v3721 = vunpack.c.0.s8 %v3720
    %v3722 = vlaneseq
    %v3723 = vshrl.u32 %v3722, 7
    %v3724 = vsub.s32 %v3721, %v3723
    %v3725 = vrot.slane %v3710, %v3724
    %v3726 = vcombine.low %v3718, %v3725
    %3727 = vrot.lane.b32.xlu0 %v2858, 32
    %v3728 = vpop.permute.xlu0 %3727
    %3729 = vrot.lane.b32.xlu0 %v2897, 32
    %v3730 = vpop.permute.xlu0 %3729
    %3731 = vrot.lane.b32.xlu0 %v2936, 32
    %v3732 = vpop.permute.xlu0 %3731
    %3733 = vrot.lane.b32.xlu0 %v2975, 32
    %v3734 = vpop.permute.xlu0 %3733
    %3735 = vrot.lane.b32.xlu0 %v3687, 32
    %v3736 = vpop.permute.xlu0 %3735
    %3737 = vrot.lane.b32.xlu0 %v3053, 32
    %v3738 = vpop.permute.xlu0 %3737
    %3739 = vrot.lane.b32.xlu0 %v3092, 32
    %v3740 = vpop.permute.xlu0 %3739
    %3741 = vrot.lane.b32.xlu0 %v3131, 32
    %v3742 = vpop.permute.xlu0 %3741
    %3743 = vrot.lane.b32.xlu0 %v3170, 32
    %v3744 = vpop.permute.xlu0 %3743
    %3745 = vrot.lane.b32.xlu0 %v3726, 32
    %v3746 = vpop.permute.xlu0 %3745
    %v3757 = vcombine.low %v2015, %v2039
    %v3759 = vunpack.c.l.s4 1966171168
    %v3760 = vunpack.c.0.s8 %v3759
    %v3761 = vlaneseq
    %v3762 = vshrl.u32 %v3761, 7
    %v3763 = vsub.s32 %v3760, %v3762
    %v3764 = vrot.slane %v3757, %v3763
    %v3766 = vunpack.c.l.s4 1966171168
    %v3767 = vunpack.c.0.s8 %v3766
    %v3768 = vlaneseq
    %v3769 = vshrl.u32 %v3768, 7
    %v3770 = vsub.s32 %v3767, %v3769
    %v3771 = vrot.slane %v2053, %v3770
    %v3772 = vcombine.low %v3556, %v3764
    %v3774 = vunpack.c.l.s4 1966171168
    %v3775 = vunpack.c.0.s8 %v3774
    %v3776 = vlaneseq
    %v3777 = vshrl.u32 %v3776, 7
    %v3778 = vsub.s32 %v3775, %v3777
    %v3779 = vrot.slane %v3772, %v3778
    %v3781 = vunpack.c.l.s4 1966171168
    %v3782 = vunpack.c.0.s8 %v3781
    %v3783 = vlaneseq
    %v3784 = vshrl.u32 %v3783, 7
    %v3785 = vsub.s32 %v3782, %v3784
    %v3786 = vrot.slane %v3771, %v3785
    %v3787 = vcombine.low %v3779, %v3786
    %v3788 = vcombine.low %v2333, %v2347
    %v3790 = vunpack.c.l.s4 1966171168
    %v3791 = vunpack.c.0.s8 %v3790
    %v3792 = vlaneseq
    %v3793 = vshrl.u32 %v3792, 7
    %v3794 = vsub.s32 %v3791, %v3793
    %v3795 = vrot.slane %v3788, %v3794
    %v3797 = vunpack.c.l.s4 1966171168
    %v3798 = vunpack.c.0.s8 %v3797
    %v3799 = vlaneseq
    %v3800 = vshrl.u32 %v3799, 7
    %v3801 = vsub.s32 %v3798, %v3800
    %v3802 = vrot.slane %v2355, %v3801
    %v3803 = vcombine.low %v3595, %v3795
    %v3805 = vunpack.c.l.s4 1966171168
    %v3806 = vunpack.c.0.s8 %v3805
    %v3807 = vlaneseq
    %v3808 = vshrl.u32 %v3807, 7
    %v3809 = vsub.s32 %v3806, %v3808
    %v3810 = vrot.slane %v3803, %v3809
    %v3812 = vunpack.c.l.s4 1966171168
    %v3813 = vunpack.c.0.s8 %v3812
    %v3814 = vlaneseq
    %v3815 = vshrl.u32 %v3814, 7
    %v3816 = vsub.s32 %v3813, %v3815
    %v3817 = vrot.slane %v3802, %v3816
    %v3818 = vcombine.low %v3810, %v3817
    %3819 = vrot.lane.b32.xlu0 %v3262, 40
    %v3820 = vpop.permute.xlu0 %3819
    %3821 = vrot.lane.b32.xlu0 %v3293, 40
    %v3822 = vpop.permute.xlu0 %3821
    %3823 = vrot.lane.b32.xlu0 %v3324, 40
    %v3824 = vpop.permute.xlu0 %3823
    %3825 = vrot.lane.b32.xlu0 %v3355, 40
    %v3826 = vpop.permute.xlu0 %3825
    %3827 = vrot.lane.b32.xlu0 %v3787, 40
    %v3828 = vpop.permute.xlu0 %3827
    %3829 = vrot.lane.b32.xlu0 %v3417, 40
    %v3830 = vpop.permute.xlu0 %3829
    %3831 = vrot.lane.b32.xlu0 %v3448, 40
    %v3832 = vpop.permute.xlu0 %3831
    %3833 = vrot.lane.b32.xlu0 %v3479, 40
    %v3834 = vpop.permute.xlu0 %3833
    %3835 = vrot.lane.b32.xlu0 %v3510, 40
    %v3836 = vpop.permute.xlu0 %3835
    %3837 = vrot.lane.b32.xlu0 %v3818, 40
    %v3838 = vpop.permute.xlu0 %3837
    %v3849 = vcombine.low %v2061, %v2063
    %v3850 = vcombine.low %v2046, %v2060
    %v3852 = vunpack.c.l.s4 1966171168
    %v3853 = vunpack.c.0.s8 %v3852
    %v3854 = vlaneseq
    %v3855 = vshrl.u32 %v3854, 7
    %v3856 = vsub.s32 %v3853, %v3855
    %v3857 = vrot.slane %v3849, %v3856
    %v3859 = vunpack.c.l.s4 1966171168
    %v3860 = vunpack.c.0.s8 %v3859
    %v3861 = vlaneseq
    %v3862 = vshrl.u32 %v3861, 7
    %v3863 = vsub.s32 %v3860, %v3862
    %v3864 = vrot.slane %v3850, %v3863
    %v3866 = vunpack.c.l.s4 1966171168
    %v3867 = vunpack.c.0.s8 %v3866
    %v3868 = vlaneseq
    %v3869 = vshrl.u32 %v3868, 7
    %v3870 = vsub.s32 %v3867, %v3869
    %v3871 = vrot.slane %v2062, %v3870
    %v3872 = vcombine.low %v3857, %v3864
    %v3874 = vunpack.c.l.s4 1966171168
    %v3875 = vunpack.c.0.s8 %v3874
    %v3876 = vlaneseq
    %v3877 = vshrl.u32 %v3876, 7
    %v3878 = vsub.s32 %v3875, %v3877
    %v3879 = vrot.slane %v3872, %v3878
    %v3881 = vunpack.c.l.s4 1966171168
    %v3882 = vunpack.c.0.s8 %v3881
    %v3883 = vlaneseq
    %v3884 = vshrl.u32 %v3883, 7
    %v3885 = vsub.s32 %v3882, %v3884
    %v3886 = vrot.slane %v3871, %v3885
    %v3887 = vcombine.low %v3879, %v3886
    %v3888 = vcombine.low %v2357, %v2340
    %v3889 = vcombine.low %v2354, %v2356
    %v3891 = vunpack.c.l.s4 1966171168
    %v3892 = vunpack.c.0.s8 %v3891
    %v3893 = vlaneseq
    %v3894 = vshrl.u32 %v3893, 7
    %v3895 = vsub.s32 %v3892, %v3894
    %v3896 = vrot.slane %v3888, %v3895
    %v3898 = vunpack.c.l.s4 1966171168
    %v3899 = vunpack.c.0.s8 %v3898
    %v3900 = vlaneseq
    %v3901 = vshrl.u32 %v3900, 7
    %v3902 = vsub.s32 %v3899, %v3901
    %v3903 = vrot.slane %v3889, %v3902
    %v3905 = vunpack.c.l.s4 1966171168
    %v3906 = vunpack.c.0.s8 %v3905
    %v3907 = vlaneseq
    %v3908 = vshrl.u32 %v3907, 7
    %v3909 = vsub.s32 %v3906, %v3908
    %v3910 = vrot.slane %v2358, %v3909
    %v3911 = vcombine.low %v3896, %v3903
    %v3913 = vunpack.c.l.s4 1966171168
    %v3914 = vunpack.c.0.s8 %v3913
    %v3915 = vlaneseq
    %v3916 = vshrl.u32 %v3915, 7
    %v3917 = vsub.s32 %v3914, %v3916
    %v3918 = vrot.slane %v3911, %v3917
    %v3920 = vunpack.c.l.s4 1966171168
    %v3921 = vunpack.c.0.s8 %v3920
    %v3922 = vlaneseq
    %v3923 = vshrl.u32 %v3922, 7
    %v3924 = vsub.s32 %v3921, %v3923
    %v3925 = vrot.slane %v3910, %v3924
    %v3926 = vcombine.low %v3918, %v3925
    %3927 = vrot.lane.b32.xlu0 %v2497, 48
    %v3928 = vpop.permute.xlu0 %3927
    %3929 = vrot.lane.b32.xlu0 %v2536, 48
    %v3930 = vpop.permute.xlu0 %3929
    %3931 = vrot.lane.b32.xlu0 %v2575, 48
    %v3932 = vpop.permute.xlu0 %3931
    %3933 = vrot.lane.b32.xlu0 %v3579, 48
    %v3934 = vpop.permute.xlu0 %3933
    %3935 = vrot.lane.b32.xlu0 %v3887, 48
    %v3936 = vpop.permute.xlu0 %3935
    %3937 = vrot.lane.b32.xlu0 %v2692, 48
    %v3938 = vpop.permute.xlu0 %3937
    %3939 = vrot.lane.b32.xlu0 %v2731, 48
    %v3940 = vpop.permute.xlu0 %3939
    %3941 = vrot.lane.b32.xlu0 %v2770, 48
    %v3942 = vpop.permute.xlu0 %3941
    %3943 = vrot.lane.b32.xlu0 %v3618, 48
    %v3944 = vpop.permute.xlu0 %3943
    %3945 = vrot.lane.b32.xlu0 %v3926, 48
    %v3946 = vpop.permute.xlu0 %3945
    %v3957 = vcombine.low %v2063, %v2046
    %v3958 = vcombine.low %v2060, %v2062
    %v3960 = vunpack.c.l.s4 1966171168
    %v3961 = vunpack.c.0.s8 %v3960
    %v3962 = vlaneseq
    %v3963 = vshrl.u32 %v3962, 7
    %v3964 = vsub.s32 %v3961, %v3963
    %v3965 = vrot.slane %v3957, %v3964
    %v3967 = vunpack.c.l.s4 1966171168
    %v3968 = vunpack.c.0.s8 %v3967
    %v3969 = vlaneseq
    %v3970 = vshrl.u32 %v3969, 7
    %v3971 = vsub.s32 %v3968, %v3970
    %v3972 = vrot.slane %v3958, %v3971
    %v3974 = vunpack.c.l.s4 1966171168
    %v3975 = vunpack.c.0.s8 %v3974
    %v3976 = vlaneseq
    %v3977 = vshrl.u32 %v3976, 7
    %v3978 = vsub.s32 %v3975, %v3977
    %v3979 = vrot.slane %v2064, %v3978
    %v3980 = vcombine.low %v3965, %v3972
    %v3982 = vunpack.c.l.s4 1966171168
    %v3983 = vunpack.c.0.s8 %v3982
    %v3984 = vlaneseq
    %v3985 = vshrl.u32 %v3984, 7
    %v3986 = vsub.s32 %v3983, %v3985
    %v3987 = vrot.slane %v3980, %v3986
    %v3989 = vunpack.c.l.s4 1966171168
    %v3990 = vunpack.c.0.s8 %v3989
    %v3991 = vlaneseq
    %v3992 = vshrl.u32 %v3991, 7
    %v3993 = vsub.s32 %v3990, %v3992
    %v3994 = vrot.slane %v3979, %v3993
    %v3995 = vcombine.low %v3987, %v3994
    %v3996 = vcombine.low %v2340, %v2354
    %v3997 = vcombine.low %v2356, %v2358
    %v3999 = vunpack.c.l.s4 1966171168
    %v4000 = vunpack.c.0.s8 %v3999
    %v4001 = vlaneseq
    %v4002 = vshrl.u32 %v4001, 7
    %v4003 = vsub.s32 %v4000, %v4002
    %v4004 = vrot.slane %v3996, %v4003
    %v4006 = vunpack.c.l.s4 1966171168
    %v4007 = vunpack.c.0.s8 %v4006
    %v4008 = vlaneseq
    %v4009 = vshrl.u32 %v4008, 7
    %v4010 = vsub.s32 %v4007, %v4009
    %v4011 = vrot.slane %v3997, %v4010
    %v4013 = vunpack.c.l.s4 1966171168
    %v4014 = vunpack.c.0.s8 %v4013
    %v4015 = vlaneseq
    %v4016 = vshrl.u32 %v4015, 7
    %v4017 = vsub.s32 %v4014, %v4016
    %v4018 = vrot.slane %v2373, %v4017
    %v4019 = vcombine.low %v4004, %v4011
    %v4021 = vunpack.c.l.s4 1966171168
    %v4022 = vunpack.c.0.s8 %v4021
    %v4023 = vlaneseq
    %v4024 = vshrl.u32 %v4023, 7
    %v4025 = vsub.s32 %v4022, %v4024
    %v4026 = vrot.slane %v4019, %v4025
    %v4028 = vunpack.c.l.s4 1966171168
    %v4029 = vunpack.c.0.s8 %v4028
    %v4030 = vlaneseq
    %v4031 = vshrl.u32 %v4030, 7
    %v4032 = vsub.s32 %v4029, %v4031
    %v4033 = vrot.slane %v4018, %v4032
    %v4034 = vcombine.low %v4026, %v4033
    %4035 = vrot.lane.b32.xlu0 %v2897, 56
    %v4036 = vpop.permute.xlu0 %4035
    %4037 = vrot.lane.b32.xlu0 %v2936, 56
    %v4038 = vpop.permute.xlu0 %4037
    %4039 = vrot.lane.b32.xlu0 %v2975, 56
    %v4040 = vpop.permute.xlu0 %4039
    %4041 = vrot.lane.b32.xlu0 %v3687, 56
    %v4042 = vpop.permute.xlu0 %4041
    %4043 = vrot.lane.b32.xlu0 %v3995, 56
    %v4044 = vpop.permute.xlu0 %4043
    %4045 = vrot.lane.b32.xlu0 %v3092, 56
    %v4046 = vpop.permute.xlu0 %4045
    %4047 = vrot.lane.b32.xlu0 %v3131, 56
    %v4048 = vpop.permute.xlu0 %4047
    %4049 = vrot.lane.b32.xlu0 %v3170, 56
    %v4050 = vpop.permute.xlu0 %4049
    %4051 = vrot.lane.b32.xlu0 %v3726, 56
    %v4052 = vpop.permute.xlu0 %4051
    %4053 = vrot.lane.b32.xlu0 %v4034, 56
    %v4054 = vpop.permute.xlu0 %4053
    %v4065 = vcombine.low %v2062, %v2064
    %v4067 = vunpack.c.l.s4 1966171168
    %v4068 = vunpack.c.0.s8 %v4067
    %v4069 = vlaneseq
    %v4070 = vshrl.u32 %v4069, 7
    %v4071 = vsub.s32 %v4068, %v4070
    %v4072 = vrot.slane %v4065, %v4071
    %v4074 = vunpack.c.l.s4 1966171168
    %v4075 = vunpack.c.0.s8 %v4074
    %v4076 = vlaneseq
    %v4077 = vshrl.u32 %v4076, 7
    %v4078 = vsub.s32 %v4075, %v4077
    %v4079 = vrot.slane %v2088, %v4078
    %v4080 = vcombine.low %v3864, %v4072
    %v4082 = vunpack.c.l.s4 1966171168
    %v4083 = vunpack.c.0.s8 %v4082
    %v4084 = vlaneseq
    %v4085 = vshrl.u32 %v4084, 7
    %v4086 = vsub.s32 %v4083, %v4085
    %v4087 = vrot.slane %v4080, %v4086
    %v4089 = vunpack.c.l.s4 1966171168
    %v4090 = vunpack.c.0.s8 %v4089
    %v4091 = vlaneseq
    %v4092 = vshrl.u32 %v4091, 7
    %v4093 = vsub.s32 %v4090, %v4092
    %v4094 = vrot.slane %v4079, %v4093
    %v4095 = vcombine.low %v4087, %v4094
    %v4096 = vcombine.low %v2358, %v2373
    %v4098 = vunpack.c.l.s4 1966171168
    %v4099 = vunpack.c.0.s8 %v4098
    %v4100 = vlaneseq
    %v4101 = vshrl.u32 %v4100, 7
    %v4102 = vsub.s32 %v4099, %v4101
    %v4103 = vrot.slane %v4096, %v4102
    %v4105 = vunpack.c.l.s4 1966171168
    %v4106 = vunpack.c.0.s8 %v4105
    %v4107 = vlaneseq
    %v4108 = vshrl.u32 %v4107, 7
    %v4109 = vsub.s32 %v4106, %v4108
    %v4110 = vrot.slane %v2380, %v4109
    %v4111 = vcombine.low %v3903, %v4103
    %v4113 = vunpack.c.l.s4 1966171168
    %v4114 = vunpack.c.0.s8 %v4113
    %v4115 = vlaneseq
    %v4116 = vshrl.u32 %v4115, 7
    %v4117 = vsub.s32 %v4114, %v4116
    %v4118 = vrot.slane %v4111, %v4117
    %v4120 = vunpack.c.l.s4 1966171168
    %v4121 = vunpack.c.0.s8 %v4120
    %v4122 = vlaneseq
    %v4123 = vshrl.u32 %v4122, 7
    %v4124 = vsub.s32 %v4121, %v4123
    %v4125 = vrot.slane %v4110, %v4124
    %v4126 = vcombine.low %v4118, %v4125
    %4127 = vrot.lane.b32.xlu0 %v3293, 64
    %v4128 = vpop.permute.xlu0 %4127
    %4129 = vrot.lane.b32.xlu0 %v3324, 64
    %v4130 = vpop.permute.xlu0 %4129
    %4131 = vrot.lane.b32.xlu0 %v3355, 64
    %v4132 = vpop.permute.xlu0 %4131
    %4133 = vrot.lane.b32.xlu0 %v3787, 64
    %v4134 = vpop.permute.xlu0 %4133
    %4135 = vrot.lane.b32.xlu0 %v4095, 64
    %v4136 = vpop.permute.xlu0 %4135
    %4137 = vrot.lane.b32.xlu0 %v3448, 64
    %v4138 = vpop.permute.xlu0 %4137
    %4139 = vrot.lane.b32.xlu0 %v3479, 64
    %v4140 = vpop.permute.xlu0 %4139
    %4141 = vrot.lane.b32.xlu0 %v3510, 64
    %v4142 = vpop.permute.xlu0 %4141
    %4143 = vrot.lane.b32.xlu0 %v3818, 64
    %v4144 = vpop.permute.xlu0 %4143
    %4145 = vrot.lane.b32.xlu0 %v4126, 64
    %v4146 = vpop.permute.xlu0 %4145
    %vm4157 = vcmask 64512
    %v4158 = vsel %vm4157, %v2419, %v3172
    %v4159 = vsel %vm4157, %v2458, %v3174
    %v4160 = vsel %vm4157, %v2497, %v3176
    %v4161 = vsel %vm4157, %v2536, %v3178
    %v4162 = vsel %vm4157, %v2575, %v3180
    %v4163 = vsel %vm4157, %v2614, %v3182
    %v4164 = vsel %vm4157, %v2653, %v3184
    %v4165 = vsel %vm4157, %v2692, %v3186
    %v4166 = vsel %vm4157, %v2731, %v3188
    %v4167 = vsel %vm4157, %v2770, %v3190
    %v4168 = vsel %vm239, %v4158, %v3512
    %v4169 = vsel %vm239, %v4159, %v3514
    %v4170 = vsel %vm239, %v4160, %v3516
    %v4171 = vsel %vm239, %v4161, %v3518
    %v4172 = vsel %vm239, %v4162, %v3520
    %v4173 = vsel %vm239, %v4163, %v3522
    %v4174 = vsel %vm239, %v4164, %v3524
    %v4175 = vsel %vm239, %v4165, %v3526
    %v4176 = vsel %vm239, %v4166, %v3528
    %v4177 = vsel %vm239, %v4167, %v3530
    %vm4178 = vcmask 195584
    %v4179 = vsel %vm4178, %v4168, %v3620
    %v4180 = vsel %vm4178, %v4169, %v3622
    %v4181 = vsel %vm4178, %v4170, %v3624
    %v4182 = vsel %vm4178, %v4171, %v3626
    %v4183 = vsel %vm4178, %v4172, %v3628
    %v4184 = vsel %vm4178, %v4173, %v3630
    %v4185 = vsel %vm4178, %v4174, %v3632
    %v4186 = vsel %vm4178, %v4175, %v3634
    %v4187 = vsel %vm4178, %v4176, %v3636
    %v4188 = vsel %vm4178, %v4177, %v3638
    %v4189 = vsel %vm254, %v4179, %v3728
    %v4190 = vsel %vm254, %v4180, %v3730
    %v4191 = vsel %vm254, %v4181, %v3732
    %v4192 = vsel %vm254, %v4182, %v3734
    %v4193 = vsel %vm254, %v4183, %v3736
    %v4194 = vsel %vm254, %v4184, %v3738
    %v4195 = vsel %vm254, %v4185, %v3740
    %v4196 = vsel %vm254, %v4186, %v3742
    %v4197 = vsel %vm254, %v4187, %v3744
    %v4198 = vsel %vm254, %v4188, %v3746
    %vm4199 = vcmask 326656
    %v4200 = vsel %vm4199, %v4189, %v3820
    %v4201 = vsel %vm4199, %v4190, %v3822
    %v4202 = vsel %vm4199, %v4191, %v3824
    %v4203 = vsel %vm4199, %v4192, %v3826
    %v4204 = vsel %vm4199, %v4193, %v3828
    %v4205 = vsel %vm4199, %v4194, %v3830
    %v4206 = vsel %vm4199, %v4195, %v3832
    %v4207 = vsel %vm4199, %v4196, %v3834
    %v4208 = vsel %vm4199, %v4197, %v3836
    %v4209 = vsel %vm4199, %v4198, %v3838
    %v4210 = vsel %vm269, %v4200, %v3928
    %v4211 = vsel %vm269, %v4201, %v3930
    %v4212 = vsel %vm269, %v4202, %v3932
    %v4213 = vsel %vm269, %v4203, %v3934
    %v4214 = vsel %vm269, %v4204, %v3936
    %v4215 = vsel %vm269, %v4205, %v3938
    %v4216 = vsel %vm269, %v4206, %v3940
    %v4217 = vsel %vm269, %v4207, %v3942
    %v4218 = vsel %vm269, %v4208, %v3944
    %v4219 = vsel %vm269, %v4209, %v3946
    %vm4220 = vcmask 457728
    %v4221 = vsel %vm4220, %v4210, %v4036
    %v4222 = vsel %vm4220, %v4211, %v4038
    %v4223 = vsel %vm4220, %v4212, %v4040
    %v4224 = vsel %vm4220, %v4213, %v4042
    %v4225 = vsel %vm4220, %v4214, %v4044
    %v4226 = vsel %vm4220, %v4215, %v4046
    %v4227 = vsel %vm4220, %v4216, %v4048
    %v4228 = vsel %vm4220, %v4217, %v4050
    %v4229 = vsel %vm4220, %v4218, %v4052
    %v4230 = vsel %vm4220, %v4219, %v4054
    %v4231 = vsel %vm1588, %v4221, %v4128
    %v4232 = vsel %vm1588, %v4222, %v4130
    %v4233 = vsel %vm1588, %v4223, %v4132
    %v4234 = vsel %vm1588, %v4224, %v4134
    %v4235 = vsel %vm1588, %v4225, %v4136
    %v4236 = vsel %vm1588, %v4226, %v4138
    %v4237 = vsel %vm1588, %v4227, %v4140
    %v4238 = vsel %vm1588, %v4228, %v4142
    %v4239 = vsel %vm1588, %v4229, %v4144
    %v4240 = vsel %vm1588, %v4230, %v4146
    %v4251 = vcombine.high %v4231, %v4231
    %v4253 = vunpack.c.l.s4 1966171168
    %v4254 = vunpack.c.0.s8 %v4253
    %v4255 = vlaneseq
    %v4256 = vshrl.u32 %v4255, 7
    %v4257 = vsub.s32 %v4254, %v4256
    %v4258 = vrot.slane %v4231, %v4257
    %v4260 = vunpack.c.l.s4 1966171168
    %v4261 = vunpack.c.0.s8 %v4260
    %v4262 = vlaneseq
    %v4263 = vshrl.u32 %v4262, 7
    %v4264 = vsub.s32 %v4261, %v4263
    %v4265 = vrot.slane %v4251, %v4264
    %v4266 = vcombine.high %v4258, %v4258
    %v4268 = vunpack.c.l.s4 1966171168
    %v4269 = vunpack.c.0.s8 %v4268
    %v4270 = vlaneseq
    %v4271 = vshrl.u32 %v4270, 7
    %v4272 = vsub.s32 %v4269, %v4271
    %v4273 = vrot.slane %v4258, %v4272
    %v4275 = vunpack.c.l.s4 1966171168
    %v4276 = vunpack.c.0.s8 %v4275
    %v4277 = vlaneseq
    %v4278 = vshrl.u32 %v4277, 7
    %v4279 = vsub.s32 %v4276, %v4278
    %v4280 = vrot.slane %v4265, %v4279
    %v4282 = vunpack.c.l.s4 1966171168
    %v4283 = vunpack.c.0.s8 %v4282
    %v4284 = vlaneseq
    %v4285 = vshrl.u32 %v4284, 7
    %v4286 = vsub.s32 %v4283, %v4285
    %v4287 = vrot.slane %v4266, %v4286
    %v4288 = vcombine.high %v4273, %v4273
    %v4289 = vcombine.high %v4287, %v4287
    %v4290 = vcombine.high %v4232, %v4232
    %v4292 = vunpack.c.l.s4 1966171168
    %v4293 = vunpack.c.0.s8 %v4292
    %v4294 = vlaneseq
    %v4295 = vshrl.u32 %v4294, 7
    %v4296 = vsub.s32 %v4293, %v4295
    %v4297 = vrot.slane %v4232, %v4296
    %v4299 = vunpack.c.l.s4 1966171168
    %v4300 = vunpack.c.0.s8 %v4299
    %v4301 = vlaneseq
    %v4302 = vshrl.u32 %v4301, 7
    %v4303 = vsub.s32 %v4300, %v4302
    %v4304 = vrot.slane %v4290, %v4303
    %v4305 = vcombine.high %v4297, %v4297
    %v4307 = vunpack.c.l.s4 1966171168
    %v4308 = vunpack.c.0.s8 %v4307
    %v4309 = vlaneseq
    %v4310 = vshrl.u32 %v4309, 7
    %v4311 = vsub.s32 %v4308, %v4310
    %v4312 = vrot.slane %v4297, %v4311
    %v4314 = vunpack.c.l.s4 1966171168
    %v4315 = vunpack.c.0.s8 %v4314
    %v4316 = vlaneseq
    %v4317 = vshrl.u32 %v4316, 7
    %v4318 = vsub.s32 %v4315, %v4317
    %v4319 = vrot.slane %v4304, %v4318
    %v4321 = vunpack.c.l.s4 1966171168
    %v4322 = vunpack.c.0.s8 %v4321
    %v4323 = vlaneseq
    %v4324 = vshrl.u32 %v4323, 7
    %v4325 = vsub.s32 %v4322, %v4324
    %v4326 = vrot.slane %v4305, %v4325
    %v4327 = vcombine.high %v4312, %v4312
    %v4328 = vcombine.high %v4326, %v4326
    %v4329 = vcombine.high %v4233, %v4233
    %v4331 = vunpack.c.l.s4 1966171168
    %v4332 = vunpack.c.0.s8 %v4331
    %v4333 = vlaneseq
    %v4334 = vshrl.u32 %v4333, 7
    %v4335 = vsub.s32 %v4332, %v4334
    %v4336 = vrot.slane %v4233, %v4335
    %v4338 = vunpack.c.l.s4 1966171168
    %v4339 = vunpack.c.0.s8 %v4338
    %v4340 = vlaneseq
    %v4341 = vshrl.u32 %v4340, 7
    %v4342 = vsub.s32 %v4339, %v4341
    %v4343 = vrot.slane %v4329, %v4342
    %v4344 = vcombine.high %v4336, %v4336
    %v4346 = vunpack.c.l.s4 1966171168
    %v4347 = vunpack.c.0.s8 %v4346
    %v4348 = vlaneseq
    %v4349 = vshrl.u32 %v4348, 7
    %v4350 = vsub.s32 %v4347, %v4349
    %v4351 = vrot.slane %v4336, %v4350
    %v4353 = vunpack.c.l.s4 1966171168
    %v4354 = vunpack.c.0.s8 %v4353
    %v4355 = vlaneseq
    %v4356 = vshrl.u32 %v4355, 7
    %v4357 = vsub.s32 %v4354, %v4356
    %v4358 = vrot.slane %v4343, %v4357
    %v4360 = vunpack.c.l.s4 1966171168
    %v4361 = vunpack.c.0.s8 %v4360
    %v4362 = vlaneseq
    %v4363 = vshrl.u32 %v4362, 7
    %v4364 = vsub.s32 %v4361, %v4363
    %v4365 = vrot.slane %v4344, %v4364
    %v4366 = vcombine.high %v4351, %v4351
    %v4367 = vcombine.high %v4365, %v4365
    %v4368 = vcombine.high %v4234, %v4234
    %v4370 = vunpack.c.l.s4 1966171168
    %v4371 = vunpack.c.0.s8 %v4370
    %v4372 = vlaneseq
    %v4373 = vshrl.u32 %v4372, 7
    %v4374 = vsub.s32 %v4371, %v4373
    %v4375 = vrot.slane %v4234, %v4374
    %v4377 = vunpack.c.l.s4 1966171168
    %v4378 = vunpack.c.0.s8 %v4377
    %v4379 = vlaneseq
    %v4380 = vshrl.u32 %v4379, 7
    %v4381 = vsub.s32 %v4378, %v4380
    %v4382 = vrot.slane %v4368, %v4381
    %v4383 = vcombine.high %v4375, %v4375
    %v4385 = vunpack.c.l.s4 1966171168
    %v4386 = vunpack.c.0.s8 %v4385
    %v4387 = vlaneseq
    %v4388 = vshrl.u32 %v4387, 7
    %v4389 = vsub.s32 %v4386, %v4388
    %v4390 = vrot.slane %v4375, %v4389
    %v4392 = vunpack.c.l.s4 1966171168
    %v4393 = vunpack.c.0.s8 %v4392
    %v4394 = vlaneseq
    %v4395 = vshrl.u32 %v4394, 7
    %v4396 = vsub.s32 %v4393, %v4395
    %v4397 = vrot.slane %v4382, %v4396
    %v4399 = vunpack.c.l.s4 1966171168
    %v4400 = vunpack.c.0.s8 %v4399
    %v4401 = vlaneseq
    %v4402 = vshrl.u32 %v4401, 7
    %v4403 = vsub.s32 %v4400, %v4402
    %v4404 = vrot.slane %v4383, %v4403
    %v4405 = vcombine.high %v4390, %v4390
    %v4406 = vcombine.high %v4404, %v4404
    %v4407 = vcombine.high %v4235, %v4235
    %v4409 = vunpack.c.l.s4 1966171168
    %v4410 = vunpack.c.0.s8 %v4409
    %v4411 = vlaneseq
    %v4412 = vshrl.u32 %v4411, 7
    %v4413 = vsub.s32 %v4410, %v4412
    %v4414 = vrot.slane %v4235, %v4413
    %v4416 = vunpack.c.l.s4 1966171168
    %v4417 = vunpack.c.0.s8 %v4416
    %v4418 = vlaneseq
    %v4419 = vshrl.u32 %v4418, 7
    %v4420 = vsub.s32 %v4417, %v4419
    %v4421 = vrot.slane %v4407, %v4420
    %v4422 = vcombine.high %v4414, %v4414
    %v4424 = vunpack.c.l.s4 1966171168
    %v4425 = vunpack.c.0.s8 %v4424
    %v4426 = vlaneseq
    %v4427 = vshrl.u32 %v4426, 7
    %v4428 = vsub.s32 %v4425, %v4427
    %v4429 = vrot.slane %v4414, %v4428
    %v4431 = vunpack.c.l.s4 1966171168
    %v4432 = vunpack.c.0.s8 %v4431
    %v4433 = vlaneseq
    %v4434 = vshrl.u32 %v4433, 7
    %v4435 = vsub.s32 %v4432, %v4434
    %v4436 = vrot.slane %v4421, %v4435
    %v4438 = vunpack.c.l.s4 1966171168
    %v4439 = vunpack.c.0.s8 %v4438
    %v4440 = vlaneseq
    %v4441 = vshrl.u32 %v4440, 7
    %v4442 = vsub.s32 %v4439, %v4441
    %v4443 = vrot.slane %v4422, %v4442
    %v4444 = vcombine.high %v4429, %v4429
    %v4445 = vcombine.high %v4443, %v4443
    %v4446 = vcombine.high %v4236, %v4236
    %v4448 = vunpack.c.l.s4 1966171168
    %v4449 = vunpack.c.0.s8 %v4448
    %v4450 = vlaneseq
    %v4451 = vshrl.u32 %v4450, 7
    %v4452 = vsub.s32 %v4449, %v4451
    %v4453 = vrot.slane %v4236, %v4452
    %v4455 = vunpack.c.l.s4 1966171168
    %v4456 = vunpack.c.0.s8 %v4455
    %v4457 = vlaneseq
    %v4458 = vshrl.u32 %v4457, 7
    %v4459 = vsub.s32 %v4456, %v4458
    %v4460 = vrot.slane %v4446, %v4459
    %v4461 = vcombine.high %v4453, %v4453
    %v4463 = vunpack.c.l.s4 1966171168
    %v4464 = vunpack.c.0.s8 %v4463
    %v4465 = vlaneseq
    %v4466 = vshrl.u32 %v4465, 7
    %v4467 = vsub.s32 %v4464, %v4466
    %v4468 = vrot.slane %v4453, %v4467
    %v4470 = vunpack.c.l.s4 1966171168
    %v4471 = vunpack.c.0.s8 %v4470
    %v4472 = vlaneseq
    %v4473 = vshrl.u32 %v4472, 7
    %v4474 = vsub.s32 %v4471, %v4473
    %v4475 = vrot.slane %v4460, %v4474
    %v4477 = vunpack.c.l.s4 1966171168
    %v4478 = vunpack.c.0.s8 %v4477
    %v4479 = vlaneseq
    %v4480 = vshrl.u32 %v4479, 7
    %v4481 = vsub.s32 %v4478, %v4480
    %v4482 = vrot.slane %v4461, %v4481
    %v4483 = vcombine.high %v4468, %v4468
    %v4484 = vcombine.high %v4482, %v4482
    %v4485 = vcombine.high %v4237, %v4237
    %v4487 = vunpack.c.l.s4 1966171168
    %v4488 = vunpack.c.0.s8 %v4487
    %v4489 = vlaneseq
    %v4490 = vshrl.u32 %v4489, 7
    %v4491 = vsub.s32 %v4488, %v4490
    %v4492 = vrot.slane %v4237, %v4491
    %v4494 = vunpack.c.l.s4 1966171168
    %v4495 = vunpack.c.0.s8 %v4494
    %v4496 = vlaneseq
    %v4497 = vshrl.u32 %v4496, 7
    %v4498 = vsub.s32 %v4495, %v4497
    %v4499 = vrot.slane %v4485, %v4498
    %v4500 = vcombine.high %v4492, %v4492
    %v4502 = vunpack.c.l.s4 1966171168
    %v4503 = vunpack.c.0.s8 %v4502
    %v4504 = vlaneseq
    %v4505 = vshrl.u32 %v4504, 7
    %v4506 = vsub.s32 %v4503, %v4505
    %v4507 = vrot.slane %v4492, %v4506
    %v4509 = vunpack.c.l.s4 1966171168
    %v4510 = vunpack.c.0.s8 %v4509
    %v4511 = vlaneseq
    %v4512 = vshrl.u32 %v4511, 7
    %v4513 = vsub.s32 %v4510, %v4512
    %v4514 = vrot.slane %v4499, %v4513
    %v4516 = vunpack.c.l.s4 1966171168
    %v4517 = vunpack.c.0.s8 %v4516
    %v4518 = vlaneseq
    %v4519 = vshrl.u32 %v4518, 7
    %v4520 = vsub.s32 %v4517, %v4519
    %v4521 = vrot.slane %v4500, %v4520
    %v4522 = vcombine.high %v4507, %v4507
    %v4523 = vcombine.high %v4521, %v4521
    %v4524 = vcombine.high %v4238, %v4238
    %v4526 = vunpack.c.l.s4 1966171168
    %v4527 = vunpack.c.0.s8 %v4526
    %v4528 = vlaneseq
    %v4529 = vshrl.u32 %v4528, 7
    %v4530 = vsub.s32 %v4527, %v4529
    %v4531 = vrot.slane %v4238, %v4530
    %v4533 = vunpack.c.l.s4 1966171168
    %v4534 = vunpack.c.0.s8 %v4533
    %v4535 = vlaneseq
    %v4536 = vshrl.u32 %v4535, 7
    %v4537 = vsub.s32 %v4534, %v4536
    %v4538 = vrot.slane %v4524, %v4537
    %v4539 = vcombine.high %v4531, %v4531
    %v4541 = vunpack.c.l.s4 1966171168
    %v4542 = vunpack.c.0.s8 %v4541
    %v4543 = vlaneseq
    %v4544 = vshrl.u32 %v4543, 7
    %v4545 = vsub.s32 %v4542, %v4544
    %v4546 = vrot.slane %v4531, %v4545
    %v4548 = vunpack.c.l.s4 1966171168
    %v4549 = vunpack.c.0.s8 %v4548
    %v4550 = vlaneseq
    %v4551 = vshrl.u32 %v4550, 7
    %v4552 = vsub.s32 %v4549, %v4551
    %v4553 = vrot.slane %v4538, %v4552
    %v4555 = vunpack.c.l.s4 1966171168
    %v4556 = vunpack.c.0.s8 %v4555
    %v4557 = vlaneseq
    %v4558 = vshrl.u32 %v4557, 7
    %v4559 = vsub.s32 %v4556, %v4558
    %v4560 = vrot.slane %v4539, %v4559
    %v4561 = vcombine.high %v4546, %v4546
    %v4562 = vcombine.high %v4560, %v4560
    %v4563 = vcombine.high %v4239, %v4239
    %v4565 = vunpack.c.l.s4 1966171168
    %v4566 = vunpack.c.0.s8 %v4565
    %v4567 = vlaneseq
    %v4568 = vshrl.u32 %v4567, 7
    %v4569 = vsub.s32 %v4566, %v4568
    %v4570 = vrot.slane %v4239, %v4569
    %v4572 = vunpack.c.l.s4 1966171168
    %v4573 = vunpack.c.0.s8 %v4572
    %v4574 = vlaneseq
    %v4575 = vshrl.u32 %v4574, 7
    %v4576 = vsub.s32 %v4573, %v4575
    %v4577 = vrot.slane %v4563, %v4576
    %v4578 = vcombine.high %v4570, %v4570
    %v4580 = vunpack.c.l.s4 1966171168
    %v4581 = vunpack.c.0.s8 %v4580
    %v4582 = vlaneseq
    %v4583 = vshrl.u32 %v4582, 7
    %v4584 = vsub.s32 %v4581, %v4583
    %v4585 = vrot.slane %v4570, %v4584
    %v4587 = vunpack.c.l.s4 1966171168
    %v4588 = vunpack.c.0.s8 %v4587
    %v4589 = vlaneseq
    %v4590 = vshrl.u32 %v4589, 7
    %v4591 = vsub.s32 %v4588, %v4590
    %v4592 = vrot.slane %v4577, %v4591
    %v4594 = vunpack.c.l.s4 1966171168
    %v4595 = vunpack.c.0.s8 %v4594
    %v4596 = vlaneseq
    %v4597 = vshrl.u32 %v4596, 7
    %v4598 = vsub.s32 %v4595, %v4597
    %v4599 = vrot.slane %v4578, %v4598
    %v4600 = vcombine.high %v4585, %v4585
    %v4601 = vcombine.high %v4599, %v4599
    %v4602 = vcombine.high %v4240, %v4240
    %v4604 = vunpack.c.l.s4 1966171168
    %v4605 = vunpack.c.0.s8 %v4604
    %v4606 = vlaneseq
    %v4607 = vshrl.u32 %v4606, 7
    %v4608 = vsub.s32 %v4605, %v4607
    %v4609 = vrot.slane %v4240, %v4608
    %v4611 = vunpack.c.l.s4 1966171168
    %v4612 = vunpack.c.0.s8 %v4611
    %v4613 = vlaneseq
    %v4614 = vshrl.u32 %v4613, 7
    %v4615 = vsub.s32 %v4612, %v4614
    %v4616 = vrot.slane %v4602, %v4615
    %v4617 = vcombine.high %v4609, %v4609
    %v4619 = vunpack.c.l.s4 1966171168
    %v4620 = vunpack.c.0.s8 %v4619
    %v4621 = vlaneseq
    %v4622 = vshrl.u32 %v4621, 7
    %v4623 = vsub.s32 %v4620, %v4622
    %v4624 = vrot.slane %v4609, %v4623
    %v4626 = vunpack.c.l.s4 1966171168
    %v4627 = vunpack.c.0.s8 %v4626
    %v4628 = vlaneseq
    %v4629 = vshrl.u32 %v4628, 7
    %v4630 = vsub.s32 %v4627, %v4629
    %v4631 = vrot.slane %v4616, %v4630
    %v4633 = vunpack.c.l.s4 1966171168
    %v4634 = vunpack.c.0.s8 %v4633
    %v4635 = vlaneseq
    %v4636 = vshrl.u32 %v4635, 7
    %v4637 = vsub.s32 %v4634, %v4636
    %v4638 = vrot.slane %v4617, %v4637
    %v4639 = vcombine.high %v4624, %v4624
    %v4640 = vcombine.high %v4638, %v4638
    %v4641 = vld [vmem:[%s3] sm:$0xff]
    %v4642 = vld [vmem:[%s3 + $0x8] sm:$0xff]
    %v4643 = vld [vmem:[%s3 + $0x10] sm:$0xff]
    %v4644 = vld [vmem:[%s3 + $0x18] sm:$0xff]
    %v4645 = vld [vmem:[%s3 + $0x20] sm:$0xff]
    %v4646 = vld [vmem:[%s3 + $0x28] sm:$0xff]
    %v4647 = vld [vmem:[%s3 + $0x30] sm:$0xff]
    %v4648 = vld [vmem:[%s3 + $0x38] sm:$0xff]
    %v4649 = vld [vmem:[%s3 + $0x40] sm:$0xff]
    %v4650 = vld [vmem:[%s4] sm:$0x1]
    %v4652 = vlaneseq
    %v4653 = vshrl.u32 %v4652, 7
    %v4654 = vsub.s32 0, %v4653
    %v4655 = vrot.slane %v4650, %v4654
    %v4657 = vcombine.low %v4273, %v4287
    %v4658 = vcombine.low %v4288, %v4289
    %v4659 = vcombine.low %v4280, %v4312
    %v4660 = vcombine.low %v4326, %v4327
    %v4662 = vunpack.c.l.s4 1966171168
    %v4663 = vunpack.c.0.s8 %v4662
    %v4664 = vlaneseq
    %v4665 = vshrl.u32 %v4664, 7
    %v4666 = vsub.s32 %v4663, %v4665
    %v4667 = vrot.slane %v4657, %v4666
    %v4669 = vunpack.c.l.s4 1966171168
    %v4670 = vunpack.c.0.s8 %v4669
    %v4671 = vlaneseq
    %v4672 = vshrl.u32 %v4671, 7
    %v4673 = vsub.s32 %v4670, %v4672
    %v4674 = vrot.slane %v4658, %v4673
    %v4676 = vunpack.c.l.s4 1966171168
    %v4677 = vunpack.c.0.s8 %v4676
    %v4678 = vlaneseq
    %v4679 = vshrl.u32 %v4678, 7
    %v4680 = vsub.s32 %v4677, %v4679
    %v4681 = vrot.slane %v4659, %v4680
    %v4683 = vunpack.c.l.s4 1966171168
    %v4684 = vunpack.c.0.s8 %v4683
    %v4685 = vlaneseq
    %v4686 = vshrl.u32 %v4685, 7
    %v4687 = vsub.s32 %v4684, %v4686
    %v4688 = vrot.slane %v4660, %v4687
    %v4689 = vcombine.low %v4667, %v4674
    %v4690 = vcombine.low %v4681, %v4688
    %v4692 = vunpack.c.l.s4 1966171168
    %v4693 = vunpack.c.0.s8 %v4692
    %v4694 = vlaneseq
    %v4695 = vshrl.u32 %v4694, 7
    %v4696 = vsub.s32 %v4693, %v4695
    %v4697 = vrot.slane %v4689, %v4696
    %v4699 = vunpack.c.l.s4 1966171168
    %v4700 = vunpack.c.0.s8 %v4699
    %v4701 = vlaneseq
    %v4702 = vshrl.u32 %v4701, 7
    %v4703 = vsub.s32 %v4700, %v4702
    %v4704 = vrot.slane %v4690, %v4703
    %v4705 = vcombine.low %v4697, %v4704
    %v4706 = vcombine.low %v4328, %v4319
    %v4707 = vcombine.low %v4351, %v4365
    %v4708 = vcombine.low %v4366, %v4367
    %v4709 = vcombine.low %v4358, %v4390
    %v4711 = vunpack.c.l.s4 1966171168
    %v4712 = vunpack.c.0.s8 %v4711
    %v4713 = vlaneseq
    %v4714 = vshrl.u32 %v4713, 7
    %v4715 = vsub.s32 %v4712, %v4714
    %v4716 = vrot.slane %v4706, %v4715
    %v4718 = vunpack.c.l.s4 1966171168
    %v4719 = vunpack.c.0.s8 %v4718
    %v4720 = vlaneseq
    %v4721 = vshrl.u32 %v4720, 7
    %v4722 = vsub.s32 %v4719, %v4721
    %v4723 = vrot.slane %v4707, %v4722
    %v4725 = vunpack.c.l.s4 1966171168
    %v4726 = vunpack.c.0.s8 %v4725
    %v4727 = vlaneseq
    %v4728 = vshrl.u32 %v4727, 7
    %v4729 = vsub.s32 %v4726, %v4728
    %v4730 = vrot.slane %v4708, %v4729
    %v4732 = vunpack.c.l.s4 1966171168
    %v4733 = vunpack.c.0.s8 %v4732
    %v4734 = vlaneseq
    %v4735 = vshrl.u32 %v4734, 7
    %v4736 = vsub.s32 %v4733, %v4735
    %v4737 = vrot.slane %v4709, %v4736
    %v4738 = vcombine.low %v4716, %v4723
    %v4739 = vcombine.low %v4730, %v4737
    %v4741 = vunpack.c.l.s4 1966171168
    %v4742 = vunpack.c.0.s8 %v4741
    %v4743 = vlaneseq
    %v4744 = vshrl.u32 %v4743, 7
    %v4745 = vsub.s32 %v4742, %v4744
    %v4746 = vrot.slane %v4738, %v4745
    %v4748 = vunpack.c.l.s4 1966171168
    %v4749 = vunpack.c.0.s8 %v4748
    %v4750 = vlaneseq
    %v4751 = vshrl.u32 %v4750, 7
    %v4752 = vsub.s32 %v4749, %v4751
    %v4753 = vrot.slane %v4739, %v4752
    %v4754 = vcombine.low %v4746, %v4753
    %v4755 = vcombine.low %v4404, %v4405
    %v4756 = vcombine.low %v4406, %v4397
    %v4757 = vcombine.low %v4429, %v4443
    %v4758 = vcombine.low %v4444, %v4445
    %v4760 = vunpack.c.l.s4 1966171168
    %v4761 = vunpack.c.0.s8 %v4760
    %v4762 = vlaneseq
    %v4763 = vshrl.u32 %v4762, 7
    %v4764 = vsub.s32 %v4761, %v4763
    %v4765 = vrot.slane %v4755, %v4764
    %v4767 = vunpack.c.l.s4 1966171168
    %v4768 = vunpack.c.0.s8 %v4767
    %v4769 = vlaneseq
    %v4770 = vshrl.u32 %v4769, 7
    %v4771 = vsub.s32 %v4768, %v4770
    %v4772 = vrot.slane %v4756, %v4771
    %v4774 = vunpack.c.l.s4 1966171168
    %v4775 = vunpack.c.0.s8 %v4774
    %v4776 = vlaneseq
    %v4777 = vshrl.u32 %v4776, 7
    %v4778 = vsub.s32 %v4775, %v4777
    %v4779 = vrot.slane %v4757, %v4778
    %v4781 = vunpack.c.l.s4 1966171168
    %v4782 = vunpack.c.0.s8 %v4781
    %v4783 = vlaneseq
    %v4784 = vshrl.u32 %v4783, 7
    %v4785 = vsub.s32 %v4782, %v4784
    %v4786 = vrot.slane %v4758, %v4785
    %v4787 = vcombine.low %v4765, %v4772
    %v4788 = vcombine.low %v4779, %v4786
    %v4790 = vunpack.c.l.s4 1966171168
    %v4791 = vunpack.c.0.s8 %v4790
    %v4792 = vlaneseq
    %v4793 = vshrl.u32 %v4792, 7
    %v4794 = vsub.s32 %v4791, %v4793
    %v4795 = vrot.slane %v4787, %v4794
    %v4797 = vunpack.c.l.s4 1966171168
    %v4798 = vunpack.c.0.s8 %v4797
    %v4799 = vlaneseq
    %v4800 = vshrl.u32 %v4799, 7
    %v4801 = vsub.s32 %v4798, %v4800
    %v4802 = vrot.slane %v4788, %v4801
    %v4803 = vcombine.low %v4795, %v4802
    %v4804 = vcombine.low %v4436, %v4468
    %v4805 = vcombine.low %v4482, %v4483
    %v4806 = vcombine.low %v4484, %v4475
    %v4807 = vcombine.low %v4507, %v4521
    %v4809 = vunpack.c.l.s4 1966171168
    %v4810 = vunpack.c.0.s8 %v4809
    %v4811 = vlaneseq
    %v4812 = vshrl.u32 %v4811, 7
    %v4813 = vsub.s32 %v4810, %v4812
    %v4814 = vrot.slane %v4804, %v4813
    %v4816 = vunpack.c.l.s4 1966171168
    %v4817 = vunpack.c.0.s8 %v4816
    %v4818 = vlaneseq
    %v4819 = vshrl.u32 %v4818, 7
    %v4820 = vsub.s32 %v4817, %v4819
    %v4821 = vrot.slane %v4805, %v4820
    %v4823 = vunpack.c.l.s4 1966171168
    %v4824 = vunpack.c.0.s8 %v4823
    %v4825 = vlaneseq
    %v4826 = vshrl.u32 %v4825, 7
    %v4827 = vsub.s32 %v4824, %v4826
    %v4828 = vrot.slane %v4806, %v4827
    %v4830 = vunpack.c.l.s4 1966171168
    %v4831 = vunpack.c.0.s8 %v4830
    %v4832 = vlaneseq
    %v4833 = vshrl.u32 %v4832, 7
    %v4834 = vsub.s32 %v4831, %v4833
    %v4835 = vrot.slane %v4807, %v4834
    %v4836 = vcombine.low %v4814, %v4821
    %v4837 = vcombine.low %v4828, %v4835
    %v4839 = vunpack.c.l.s4 1966171168
    %v4840 = vunpack.c.0.s8 %v4839
    %v4841 = vlaneseq
    %v4842 = vshrl.u32 %v4841, 7
    %v4843 = vsub.s32 %v4840, %v4842
    %v4844 = vrot.slane %v4836, %v4843
    %v4846 = vunpack.c.l.s4 1966171168
    %v4847 = vunpack.c.0.s8 %v4846
    %v4848 = vlaneseq
    %v4849 = vshrl.u32 %v4848, 7
    %v4850 = vsub.s32 %v4847, %v4849
    %v4851 = vrot.slane %v4837, %v4850
    %v4852 = vcombine.low %v4844, %v4851
    %v4853 = vcombine.low %v4522, %v4523
    %v4854 = vcombine.low %v4514, %v4546
    %v4855 = vcombine.low %v4560, %v4561
    %v4856 = vcombine.low %v4562, %v4553
    %v4858 = vunpack.c.l.s4 1966171168
    %v4859 = vunpack.c.0.s8 %v4858
    %v4860 = vlaneseq
    %v4861 = vshrl.u32 %v4860, 7
    %v4862 = vsub.s32 %v4859, %v4861
    %v4863 = vrot.slane %v4853, %v4862
    %v4865 = vunpack.c.l.s4 1966171168
    %v4866 = vunpack.c.0.s8 %v4865
    %v4867 = vlaneseq
    %v4868 = vshrl.u32 %v4867, 7
    %v4869 = vsub.s32 %v4866, %v4868
    %v4870 = vrot.slane %v4854, %v4869
    %v4872 = vunpack.c.l.s4 1966171168
    %v4873 = vunpack.c.0.s8 %v4872
    %v4874 = vlaneseq
    %v4875 = vshrl.u32 %v4874, 7
    %v4876 = vsub.s32 %v4873, %v4875
    %v4877 = vrot.slane %v4855, %v4876
    %v4879 = vunpack.c.l.s4 1966171168
    %v4880 = vunpack.c.0.s8 %v4879
    %v4881 = vlaneseq
    %v4882 = vshrl.u32 %v4881, 7
    %v4883 = vsub.s32 %v4880, %v4882
    %v4884 = vrot.slane %v4856, %v4883
    %v4885 = vcombine.low %v4863, %v4870
    %v4886 = vcombine.low %v4877, %v4884
    %v4888 = vunpack.c.l.s4 1966171168
    %v4889 = vunpack.c.0.s8 %v4888
    %v4890 = vlaneseq
    %v4891 = vshrl.u32 %v4890, 7
    %v4892 = vsub.s32 %v4889, %v4891
    %v4893 = vrot.slane %v4885, %v4892
    %v4895 = vunpack.c.l.s4 1966171168
    %v4896 = vunpack.c.0.s8 %v4895
    %v4897 = vlaneseq
    %v4898 = vshrl.u32 %v4897, 7
    %v4899 = vsub.s32 %v4896, %v4898
    %v4900 = vrot.slane %v4886, %v4899
    %v4901 = vcombine.low %v4893, %v4900
    %v4902 = vcombine.low %v4585, %v4599
    %v4903 = vcombine.low %v4600, %v4601
    %v4904 = vcombine.low %v4592, %v4624
    %v4905 = vcombine.low %v4638, %v4639
    %v4907 = vunpack.c.l.s4 1966171168
    %v4908 = vunpack.c.0.s8 %v4907
    %v4909 = vlaneseq
    %v4910 = vshrl.u32 %v4909, 7
    %v4911 = vsub.s32 %v4908, %v4910
    %v4912 = vrot.slane %v4902, %v4911
    %v4914 = vunpack.c.l.s4 1966171168
    %v4915 = vunpack.c.0.s8 %v4914
    %v4916 = vlaneseq
    %v4917 = vshrl.u32 %v4916, 7
    %v4918 = vsub.s32 %v4915, %v4917
    %v4919 = vrot.slane %v4903, %v4918
    %v4921 = vunpack.c.l.s4 1966171168
    %v4922 = vunpack.c.0.s8 %v4921
    %v4923 = vlaneseq
    %v4924 = vshrl.u32 %v4923, 7
    %v4925 = vsub.s32 %v4922, %v4924
    %v4926 = vrot.slane %v4904, %v4925
    %v4928 = vunpack.c.l.s4 1966171168
    %v4929 = vunpack.c.0.s8 %v4928
    %v4930 = vlaneseq
    %v4931 = vshrl.u32 %v4930, 7
    %v4932 = vsub.s32 %v4929, %v4931
    %v4933 = vrot.slane %v4905, %v4932
    %v4934 = vcombine.low %v4912, %v4919
    %v4935 = vcombine.low %v4926, %v4933
    %v4937 = vunpack.c.l.s4 1966171168
    %v4938 = vunpack.c.0.s8 %v4937
    %v4939 = vlaneseq
    %v4940 = vshrl.u32 %v4939, 7
    %v4941 = vsub.s32 %v4938, %v4940
    %v4942 = vrot.slane %v4934, %v4941
    %v4944 = vunpack.c.l.s4 1966171168
    %v4945 = vunpack.c.0.s8 %v4944
    %v4946 = vlaneseq
    %v4947 = vshrl.u32 %v4946, 7
    %v4948 = vsub.s32 %v4945, %v4947
    %v4949 = vrot.slane %v4935, %v4948
    %v4950 = vcombine.low %v4942, %v4949
    %v4951 = vcombine.low %v4640, %v4631
    %v4953 = vunpack.c.l.s4 1966171168
    %v4954 = vunpack.c.0.s8 %v4953
    %v4955 = vlaneseq
    %v4956 = vshrl.u32 %v4955, 7
    %v4957 = vsub.s32 %v4954, %v4956
    %v4958 = vrot.slane %v4951, %v4957
    %v4960 = vunpack.c.l.s4 1966171168
    %v4961 = vunpack.c.0.s8 %v4960
    %v4962 = vlaneseq
    %v4963 = vshrl.u32 %v4962, 7
    %v4964 = vsub.s32 %v4961, %v4963
    %v4965 = vrot.slane %v4958, %v4964
    %vm4966 = vcmask 588800
    %v4967 = vsel %vm4966, %v4705, 0
    %v4969 = vsel %vm4966, %v4754, 0
    %v4971 = vsel %vm4966, %v4803, 0
    %v4973 = vsel %vm4966, %v4852, 0
    %v4975 = vsel %vm4966, %v4901, 0
    %v4977 = vsel %vm4966, %v4950, 0
    %v4979 = vsel %vm4966, %v4965, 0
    %4981 = vmatprep.subr.mxu0 0.0
    %4982 = vmatpush1.msra.mxu0 %v4641
    %4983 = vmatprep.subr.mxu0 0.0
    %4984 = vmatpush1.msra.mxu0 %v4642
    %4985 = vmatprep.subr.mxu0 0.0
    %4986 = vmatpush1.msra.mxu0 %v4643
    %4987 = vmatprep.subr.mxu0 0.0
    %4988 = vmatpush1.msra.mxu0 %v4644
    %4989 = vmatprep.subr.mxu0 0.0
    %4990 = vmatpush1.msra.mxu0 %v4645
    %4991 = vmatprep.subr.mxu0 0.0
    %4992 = vmatpush1.msra.mxu0 %v4646
    %4993 = vmatprep.subr.mxu0 0.0
    %4994 = vmatpush1.msra.mxu0 %v4647
    %4995 = vmatprep.subr.mxu0 0.0
    %4996 = vmatpush1.msra.mxu0 %v4648
    %4997 = vmatprep.subr.mxu0 0.0
    %4998 = vmatpush1.msra.mxu0 %v4649
    %4999 = vmatprep.subr.mxu0 0.0
    %5000 = vmatpush1.msra.mxu0 0.0
    %5001 = vmatprep.subr.mxu0 0.0
    %5002 = vmatpush1.msra.mxu0 0.0
    %5003 = vmatprep.subr.mxu0 0.0
    %5004 = vmatpush1.msra.mxu0 0.0
    %5005 = vmatprep.subr.mxu0 0.0
    %5006 = vmatpush1.msra.mxu0 0.0
    %5007 = vmatprep.subr.mxu0 0.0
    %5008 = vmatpush1.msra.mxu0 0.0
    %5009 = vmatprep.subr.mxu0 0.0
    %5010 = vmatpush1.msra.mxu0 0.0
    %5011 = vmatprep.subr.mxu0 0.0
    %5012 = vmatpush1.msra.mxu0 0.0
    %5013 = vmatprep.subr.mxu0 0.0
    %5014 = vmatpush1.msra.mxu0 0.0
    %5015 = vmatprep.subr.mxu0 0.0
    %5016 = vmatpush1.msra.mxu0 0.0
    %5017 = vmatprep.subr.mxu0 0.0
    %5018 = vmatpush1.msra.mxu0 0.0
    %5019 = vmatprep.subr.mxu0 0.0
    %5020 = vmatpush1.msra.mxu0 0.0
    %5021 = vmatprep.subr.mxu0 0.0
    %5022 = vmatpush1.msra.mxu0 0.0
    %5023 = vmatprep.subr.mxu0 0.0
    %5024 = vmatpush1.msra.mxu0 0.0
    %5025 = vmatprep.subr.mxu0 0.0
    %5026 = vmatpush1.msra.mxu0 0.0
    %5027 = vmatprep.subr.mxu0 0.0
    %5028 = vmatpush1.msra.mxu0 0.0
    %5029 = vmatprep.subr.mxu0 0.0
    %5030 = vmatpush1.msra.mxu0 0.0
    %5031 = vmatprep.subr.mxu0 0.0
    %5032 = vmatpush1.msra.mxu0 0.0
    %5033 = vmatprep.subr.mxu0 0.0
    %5034 = vmatpush1.msra.mxu0 0.0
    %5035 = vmatprep.subr.mxu0 0.0
    %5036 = vmatpush1.msra.mxu0 0.0
    %5037 = vmatprep.subr.mxu0 0.0
    %5038 = vmatpush1.msra.mxu0 0.0
    %5039 = vmatprep.subr.mxu0 0.0
    %5040 = vmatpush1.msra.mxu0 0.0
    %5041 = vmatprep.subr.mxu0 0.0
    %5042 = vmatpush1.msra.mxu0 0.0
    %5043 = vmatprep.subr.mxu0 0.0
    %5044 = vmatpush1.msra.mxu0 0.0
    %5045 = vmatprep.mubr.f32.mxu0 0.0
    %5046 = vmatmul.mubr.f32.gmra.mrb[0].mxu0 %v4967
    %v5047 = vpop.f32.mrb[0].mxu0
    %v5048 = vadd.f32 %v4655, %v5047
    %v5049 = vpop.f32.mrb[0].mxu0
    %5050 = vmatprep.mubr.f32.mxu0 0.0
    %5051 = vmatmul.mubr.f32.gmra.mrb[0].mxu0 %v4969
    %v5052 = vpop.f32.mrb[0].mxu0
    %v5053 = vadd.f32 %v4655, %v5052
    %v5054 = vpop.f32.mrb[0].mxu0
    %5055 = vmatprep.mubr.f32.mxu0 0.0
    %5056 = vmatmul.mubr.f32.gmra.mrb[0].mxu0 %v4971
    %v5057 = vpop.f32.mrb[0].mxu0
    %v5058 = vadd.f32 %v4655, %v5057
    %v5059 = vpop.f32.mrb[0].mxu0
    %5060 = vmatprep.mubr.f32.mxu0 0.0
    %5061 = vmatmul.mubr.f32.gmra.mrb[0].mxu0 %v4973
    %v5062 = vpop.f32.mrb[0].mxu0
    %v5063 = vadd.f32 %v4655, %v5062
    %v5064 = vpop.f32.mrb[0].mxu0
    %5065 = vmatprep.mubr.f32.mxu0 0.0
    %5066 = vmatmul.mubr.f32.gmra.mrb[0].mxu0 %v4975
    %v5067 = vpop.f32.mrb[0].mxu0
    %v5068 = vadd.f32 %v4655, %v5067
    %v5069 = vpop.f32.mrb[0].mxu0
    %5070 = vmatprep.mubr.f32.mxu0 0.0
    %5071 = vmatmul.mubr.f32.gmra.mrb[0].mxu0 %v4977
    %v5072 = vpop.f32.mrb[0].mxu0
    %v5073 = vadd.f32 %v4655, %v5072
    %v5074 = vpop.f32.mrb[0].mxu0
    %5075 = vmatprep.mubr.f32.mxu0 0.0
    %5076 = vmatmul.mubr.f32.gmra.mrb[0].mxu0 %v4979
    %v5077 = vpop.f32.mrb[0].mxu0
    %v5078 = vadd.f32 %v4655, %v5077
    %v5079 = vpop.f32.mrb[0].mxu0
    %5080 = vdwg.mxu0
    %v5081 = vmax.f32 %v5048, 0.0
    %v5082 = vmax.f32 %v5053, 0.0
    %v5083 = vmax.f32 %v5058, 0.0
    %v5084 = vmax.f32 %v5063, 0.0
    %v5085 = vmax.f32 %v5068, 0.0
    %v5086 = vmax.f32 %v5073, 0.0
    %v5087 = vmax.f32 %v5078, 0.0
    %v5095 = vcombine.high %v5081, %v5081
    %v5097 = vunpack.c.l.s4 1966171168
    %v5098 = vunpack.c.0.s8 %v5097
    %v5099 = vlaneseq
    %v5100 = vshrl.u32 %v5099, 7
    %v5101 = vsub.s32 %v5098, %v5100
    %v5102 = vrot.slane %v5081, %v5101
    %v5104 = vunpack.c.l.s4 1966171168
    %v5105 = vunpack.c.0.s8 %v5104
    %v5106 = vlaneseq
    %v5107 = vshrl.u32 %v5106, 7
    %v5108 = vsub.s32 %v5105, %v5107
    %v5109 = vrot.slane %v5095, %v5108
    %v5110 = vcombine.high %v5102, %v5102
    %v5111 = vcombine.high %v5109, %v5109
    %v5113 = vunpack.c.l.s4 1966171168
    %v5114 = vunpack.c.0.s8 %v5113
    %v5115 = vlaneseq
    %v5116 = vshrl.u32 %v5115, 7
    %v5117 = vsub.s32 %v5114, %v5116
    %v5118 = vrot.slane %v5102, %v5117
    %v5120 = vunpack.c.l.s4 1966171168
    %v5121 = vunpack.c.0.s8 %v5120
    %v5122 = vlaneseq
    %v5123 = vshrl.u32 %v5122, 7
    %v5124 = vsub.s32 %v5121, %v5123
    %v5125 = vrot.slane %v5109, %v5124
    %v5127 = vunpack.c.l.s4 1966171168
    %v5128 = vunpack.c.0.s8 %v5127
    %v5129 = vlaneseq
    %v5130 = vshrl.u32 %v5129, 7
    %v5131 = vsub.s32 %v5128, %v5130
    %v5132 = vrot.slane %v5110, %v5131
    %v5134 = vunpack.c.l.s4 1966171168
    %v5135 = vunpack.c.0.s8 %v5134
    %v5136 = vlaneseq
    %v5137 = vshrl.u32 %v5136, 7
    %v5138 = vsub.s32 %v5135, %v5137
    %v5139 = vrot.slane %v5111, %v5138
    %v5140 = vcombine.high %v5118, %v5118
    %v5141 = vcombine.high %v5125, %v5125
    %v5142 = vcombine.high %v5132, %v5132
    %v5143 = vcombine.high %v5139, %v5139
    %v5144 = vcombine.high %v5082, %v5082
    %v5146 = vunpack.c.l.s4 1966171168
    %v5147 = vunpack.c.0.s8 %v5146
    %v5148 = vlaneseq
    %v5149 = vshrl.u32 %v5148, 7
    %v5150 = vsub.s32 %v5147, %v5149
    %v5151 = vrot.slane %v5082, %v5150
    %v5153 = vunpack.c.l.s4 1966171168
    %v5154 = vunpack.c.0.s8 %v5153
    %v5155 = vlaneseq
    %v5156 = vshrl.u32 %v5155, 7
    %v5157 = vsub.s32 %v5154, %v5156
    %v5158 = vrot.slane %v5144, %v5157
    %v5159 = vcombine.high %v5151, %v5151
    %v5160 = vcombine.high %v5158, %v5158
    %v5162 = vunpack.c.l.s4 1966171168
    %v5163 = vunpack.c.0.s8 %v5162
    %v5164 = vlaneseq
    %v5165 = vshrl.u32 %v5164, 7
    %v5166 = vsub.s32 %v5163, %v5165
    %v5167 = vrot.slane %v5151, %v5166
    %v5169 = vunpack.c.l.s4 1966171168
    %v5170 = vunpack.c.0.s8 %v5169
    %v5171 = vlaneseq
    %v5172 = vshrl.u32 %v5171, 7
    %v5173 = vsub.s32 %v5170, %v5172
    %v5174 = vrot.slane %v5158, %v5173
    %v5176 = vunpack.c.l.s4 1966171168
    %v5177 = vunpack.c.0.s8 %v5176
    %v5178 = vlaneseq
    %v5179 = vshrl.u32 %v5178, 7
    %v5180 = vsub.s32 %v5177, %v5179
    %v5181 = vrot.slane %v5159, %v5180
    %v5183 = vunpack.c.l.s4 1966171168
    %v5184 = vunpack.c.0.s8 %v5183
    %v5185 = vlaneseq
    %v5186 = vshrl.u32 %v5185, 7
    %v5187 = vsub.s32 %v5184, %v5186
    %v5188 = vrot.slane %v5160, %v5187
    %v5189 = vcombine.high %v5167, %v5167
    %v5190 = vcombine.high %v5174, %v5174
    %v5191 = vcombine.high %v5181, %v5181
    %v5192 = vcombine.high %v5188, %v5188
    %v5193 = vcombine.high %v5083, %v5083
    %v5195 = vunpack.c.l.s4 1966171168
    %v5196 = vunpack.c.0.s8 %v5195
    %v5197 = vlaneseq
    %v5198 = vshrl.u32 %v5197, 7
    %v5199 = vsub.s32 %v5196, %v5198
    %v5200 = vrot.slane %v5083, %v5199
    %v5202 = vunpack.c.l.s4 1966171168
    %v5203 = vunpack.c.0.s8 %v5202
    %v5204 = vlaneseq
    %v5205 = vshrl.u32 %v5204, 7
    %v5206 = vsub.s32 %v5203, %v5205
    %v5207 = vrot.slane %v5193, %v5206
    %v5208 = vcombine.high %v5200, %v5200
    %v5209 = vcombine.high %v5207, %v5207
    %v5211 = vunpack.c.l.s4 1966171168
    %v5212 = vunpack.c.0.s8 %v5211
    %v5213 = vlaneseq
    %v5214 = vshrl.u32 %v5213, 7
    %v5215 = vsub.s32 %v5212, %v5214
    %v5216 = vrot.slane %v5200, %v5215
    %v5218 = vunpack.c.l.s4 1966171168
    %v5219 = vunpack.c.0.s8 %v5218
    %v5220 = vlaneseq
    %v5221 = vshrl.u32 %v5220, 7
    %v5222 = vsub.s32 %v5219, %v5221
    %v5223 = vrot.slane %v5207, %v5222
    %v5225 = vunpack.c.l.s4 1966171168
    %v5226 = vunpack.c.0.s8 %v5225
    %v5227 = vlaneseq
    %v5228 = vshrl.u32 %v5227, 7
    %v5229 = vsub.s32 %v5226, %v5228
    %v5230 = vrot.slane %v5208, %v5229
    %v5232 = vunpack.c.l.s4 1966171168
    %v5233 = vunpack.c.0.s8 %v5232
    %v5234 = vlaneseq
    %v5235 = vshrl.u32 %v5234, 7
    %v5236 = vsub.s32 %v5233, %v5235
    %v5237 = vrot.slane %v5209, %v5236
    %v5238 = vcombine.high %v5216, %v5216
    %v5239 = vcombine.high %v5223, %v5223
    %v5240 = vcombine.high %v5230, %v5230
    %v5241 = vcombine.high %v5237, %v5237
    %v5242 = vcombine.high %v5084, %v5084
    %v5244 = vunpack.c.l.s4 1966171168
    %v5245 = vunpack.c.0.s8 %v5244
    %v5246 = vlaneseq
    %v5247 = vshrl.u32 %v5246, 7
    %v5248 = vsub.s32 %v5245, %v5247
    %v5249 = vrot.slane %v5084, %v5248
    %v5251 = vunpack.c.l.s4 1966171168
    %v5252 = vunpack.c.0.s8 %v5251
    %v5253 = vlaneseq
    %v5254 = vshrl.u32 %v5253, 7
    %v5255 = vsub.s32 %v5252, %v5254
    %v5256 = vrot.slane %v5242, %v5255
    %v5257 = vcombine.high %v5249, %v5249
    %v5258 = vcombine.high %v5256, %v5256
    %v5260 = vunpack.c.l.s4 1966171168
    %v5261 = vunpack.c.0.s8 %v5260
    %v5262 = vlaneseq
    %v5263 = vshrl.u32 %v5262, 7
    %v5264 = vsub.s32 %v5261, %v5263
    %v5265 = vrot.slane %v5249, %v5264
    %v5267 = vunpack.c.l.s4 1966171168
    %v5268 = vunpack.c.0.s8 %v5267
    %v5269 = vlaneseq
    %v5270 = vshrl.u32 %v5269, 7
    %v5271 = vsub.s32 %v5268, %v5270
    %v5272 = vrot.slane %v5256, %v5271
    %v5274 = vunpack.c.l.s4 1966171168
    %v5275 = vunpack.c.0.s8 %v5274
    %v5276 = vlaneseq
    %v5277 = vshrl.u32 %v5276, 7
    %v5278 = vsub.s32 %v5275, %v5277
    %v5279 = vrot.slane %v5257, %v5278
    %v5281 = vunpack.c.l.s4 1966171168
    %v5282 = vunpack.c.0.s8 %v5281
    %v5283 = vlaneseq
    %v5284 = vshrl.u32 %v5283, 7
    %v5285 = vsub.s32 %v5282, %v5284
    %v5286 = vrot.slane %v5258, %v5285
    %v5287 = vcombine.high %v5265, %v5265
    %v5288 = vcombine.high %v5272, %v5272
    %v5289 = vcombine.high %v5279, %v5279
    %v5290 = vcombine.high %v5286, %v5286
    %v5291 = vcombine.high %v5085, %v5085
    %v5293 = vunpack.c.l.s4 1966171168
    %v5294 = vunpack.c.0.s8 %v5293
    %v5295 = vlaneseq
    %v5296 = vshrl.u32 %v5295, 7
    %v5297 = vsub.s32 %v5294, %v5296
    %v5298 = vrot.slane %v5085, %v5297
    %v5300 = vunpack.c.l.s4 1966171168
    %v5301 = vunpack.c.0.s8 %v5300
    %v5302 = vlaneseq
    %v5303 = vshrl.u32 %v5302, 7
    %v5304 = vsub.s32 %v5301, %v5303
    %v5305 = vrot.slane %v5291, %v5304
    %v5306 = vcombine.high %v5298, %v5298
    %v5307 = vcombine.high %v5305, %v5305
    %v5309 = vunpack.c.l.s4 1966171168
    %v5310 = vunpack.c.0.s8 %v5309
    %v5311 = vlaneseq
    %v5312 = vshrl.u32 %v5311, 7
    %v5313 = vsub.s32 %v5310, %v5312
    %v5314 = vrot.slane %v5298, %v5313
    %v5316 = vunpack.c.l.s4 1966171168
    %v5317 = vunpack.c.0.s8 %v5316
    %v5318 = vlaneseq
    %v5319 = vshrl.u32 %v5318, 7
    %v5320 = vsub.s32 %v5317, %v5319
    %v5321 = vrot.slane %v5305, %v5320
    %v5323 = vunpack.c.l.s4 1966171168
    %v5324 = vunpack.c.0.s8 %v5323
    %v5325 = vlaneseq
    %v5326 = vshrl.u32 %v5325, 7
    %v5327 = vsub.s32 %v5324, %v5326
    %v5328 = vrot.slane %v5306, %v5327
    %v5330 = vunpack.c.l.s4 1966171168
    %v5331 = vunpack.c.0.s8 %v5330
    %v5332 = vlaneseq
    %v5333 = vshrl.u32 %v5332, 7
    %v5334 = vsub.s32 %v5331, %v5333
    %v5335 = vrot.slane %v5307, %v5334
    %v5336 = vcombine.high %v5314, %v5314
    %v5337 = vcombine.high %v5321, %v5321
    %v5338 = vcombine.high %v5328, %v5328
    %v5339 = vcombine.high %v5335, %v5335
    %v5340 = vcombine.high %v5086, %v5086
    %v5342 = vunpack.c.l.s4 1966171168
    %v5343 = vunpack.c.0.s8 %v5342
    %v5344 = vlaneseq
    %v5345 = vshrl.u32 %v5344, 7
    %v5346 = vsub.s32 %v5343, %v5345
    %v5347 = vrot.slane %v5086, %v5346
    %v5349 = vunpack.c.l.s4 1966171168
    %v5350 = vunpack.c.0.s8 %v5349
    %v5351 = vlaneseq
    %v5352 = vshrl.u32 %v5351, 7
    %v5353 = vsub.s32 %v5350, %v5352
    %v5354 = vrot.slane %v5340, %v5353
    %v5355 = vcombine.high %v5347, %v5347
    %v5356 = vcombine.high %v5354, %v5354
    %v5358 = vunpack.c.l.s4 1966171168
    %v5359 = vunpack.c.0.s8 %v5358
    %v5360 = vlaneseq
    %v5361 = vshrl.u32 %v5360, 7
    %v5362 = vsub.s32 %v5359, %v5361
    %v5363 = vrot.slane %v5347, %v5362
    %v5365 = vunpack.c.l.s4 1966171168
    %v5366 = vunpack.c.0.s8 %v5365
    %v5367 = vlaneseq
    %v5368 = vshrl.u32 %v5367, 7
    %v5369 = vsub.s32 %v5366, %v5368
    %v5370 = vrot.slane %v5354, %v5369
    %v5372 = vunpack.c.l.s4 1966171168
    %v5373 = vunpack.c.0.s8 %v5372
    %v5374 = vlaneseq
    %v5375 = vshrl.u32 %v5374, 7
    %v5376 = vsub.s32 %v5373, %v5375
    %v5377 = vrot.slane %v5355, %v5376
    %v5379 = vunpack.c.l.s4 1966171168
    %v5380 = vunpack.c.0.s8 %v5379
    %v5381 = vlaneseq
    %v5382 = vshrl.u32 %v5381, 7
    %v5383 = vsub.s32 %v5380, %v5382
    %v5384 = vrot.slane %v5356, %v5383
    %v5385 = vcombine.high %v5363, %v5363
    %v5386 = vcombine.high %v5370, %v5370
    %v5387 = vcombine.high %v5377, %v5377
    %v5388 = vcombine.high %v5384, %v5384
    %v5390 = vunpack.c.l.s4 1966171168
    %v5391 = vunpack.c.0.s8 %v5390
    %v5392 = vlaneseq
    %v5393 = vshrl.u32 %v5392, 7
    %v5394 = vsub.s32 %v5391, %v5393
    %v5395 = vrot.slane %v5087, %v5394
    %v5396 = vcombine.high %v5395, %v5395
    %v5398 = vunpack.c.l.s4 1966171168
    %v5399 = vunpack.c.0.s8 %v5398
    %v5400 = vlaneseq
    %v5401 = vshrl.u32 %v5400, 7
    %v5402 = vsub.s32 %v5399, %v5401
    %v5403 = vrot.slane %v5395, %v5402
    %v5405 = vunpack.c.l.s4 1966171168
    %v5406 = vunpack.c.0.s8 %v5405
    %v5407 = vlaneseq
    %v5408 = vshrl.u32 %v5407, 7
    %v5409 = vsub.s32 %v5406, %v5408
    %v5410 = vrot.slane %v5396, %v5409
    %v5411 = vcombine.low %v5118, %v5139
    %v5412 = vcombine.low %v5189, %v5192
    %v5414 = vunpack.c.l.s4 1966171168
    %v5415 = vunpack.c.0.s8 %v5414
    %v5416 = vlaneseq
    %v5417 = vshrl.u32 %v5416, 7
    %v5418 = vsub.s32 %v5415, %v5417
    %v5419 = vrot.slane %v5411, %v5418
    %v5421 = vunpack.c.l.s4 1966171168
    %v5422 = vunpack.c.0.s8 %v5421
    %v5423 = vlaneseq
    %v5424 = vshrl.u32 %v5423, 7
    %v5425 = vsub.s32 %v5422, %v5424
    %v5426 = vrot.slane %v5412, %v5425
    %v5428 = vunpack.c.l.s4 1966171168
    %v5429 = vunpack.c.0.s8 %v5428
    %v5430 = vlaneseq
    %v5431 = vshrl.u32 %v5430, 7
    %v5432 = vsub.s32 %v5429, %v5431
    %v5433 = vrot.slane %v5223, %v5432
    %v5434 = vcombine.low %v5419, %v5426
    %v5436 = vunpack.c.l.s4 1966171168
    %v5437 = vunpack.c.0.s8 %v5436
    %v5438 = vlaneseq
    %v5439 = vshrl.u32 %v5438, 7
    %v5440 = vsub.s32 %v5437, %v5439
    %v5441 = vrot.slane %v5434, %v5440
    %v5443 = vunpack.c.l.s4 1966171168
    %v5444 = vunpack.c.0.s8 %v5443
    %v5445 = vlaneseq
    %v5446 = vshrl.u32 %v5445, 7
    %v5447 = vsub.s32 %v5444, %v5446
    %v5448 = vrot.slane %v5433, %v5447
    %v5449 = vcombine.low %v5441, %v5448
    %v5450 = vcombine.low %v5279, %v5288
    %v5451 = vcombine.low %v5338, %v5363
    %v5453 = vunpack.c.l.s4 1966171168
    %v5454 = vunpack.c.0.s8 %v5453
    %v5455 = vlaneseq
    %v5456 = vshrl.u32 %v5455, 7
    %v5457 = vsub.s32 %v5454, %v5456
    %v5458 = vrot.slane %v5450, %v5457
    %v5460 = vunpack.c.l.s4 1966171168
    %v5461 = vunpack.c.0.s8 %v5460
    %v5462 = vlaneseq
    %v5463 = vshrl.u32 %v5462, 7
    %v5464 = vsub.s32 %v5461, %v5463
    %v5465 = vrot.slane %v5451, %v5464
    %v5467 = vunpack.c.l.s4 1966171168
    %v5468 = vunpack.c.0.s8 %v5467
    %v5469 = vlaneseq
    %v5470 = vshrl.u32 %v5469, 7
    %v5471 = vsub.s32 %v5468, %v5470
    %v5472 = vrot.slane %v5384, %v5471
    %v5473 = vcombine.low %v5458, %v5465
    %v5475 = vunpack.c.l.s4 1966171168
    %v5476 = vunpack.c.0.s8 %v5475
    %v5477 = vlaneseq
    %v5478 = vshrl.u32 %v5477, 7
    %v5479 = vsub.s32 %v5476, %v5478
    %v5480 = vrot.slane %v5473, %v5479
    %v5482 = vunpack.c.l.s4 1966171168
    %v5483 = vunpack.c.0.s8 %v5482
    %v5484 = vlaneseq
    %v5485 = vshrl.u32 %v5484, 7
    %v5486 = vsub.s32 %v5483, %v5485
    %v5487 = vrot.slane %v5472, %v5486
    %v5488 = vcombine.low %v5480, %v5487
    %v5491 = vcombine.low %v5132, %v5141
    %v5492 = vcombine.low %v5191, %v5216
    %v5494 = vunpack.c.l.s4 1966171168
    %v5495 = vunpack.c.0.s8 %v5494
    %v5496 = vlaneseq
    %v5497 = vshrl.u32 %v5496, 7
    %v5498 = vsub.s32 %v5495, %v5497
    %v5499 = vrot.slane %v5491, %v5498
    %v5501 = vunpack.c.l.s4 1966171168
    %v5502 = vunpack.c.0.s8 %v5501
    %v5503 = vlaneseq
    %v5504 = vshrl.u32 %v5503, 7
    %v5505 = vsub.s32 %v5502, %v5504
    %v5506 = vrot.slane %v5492, %v5505
    %v5508 = vunpack.c.l.s4 1966171168
    %v5509 = vunpack.c.0.s8 %v5508
    %v5510 = vlaneseq
    %v5511 = vshrl.u32 %v5510, 7
    %v5512 = vsub.s32 %v5509, %v5511
    %v5513 = vrot.slane %v5237, %v5512
    %v5514 = vcombine.low %v5499, %v5506
    %v5516 = vunpack.c.l.s4 1966171168
    %v5517 = vunpack.c.0.s8 %v5516
    %v5518 = vlaneseq
    %v5519 = vshrl.u32 %v5518, 7
    %v5520 = vsub.s32 %v5517, %v5519
    %v5521 = vrot.slane %v5514, %v5520
    %v5523 = vunpack.c.l.s4 1966171168
    %v5524 = vunpack.c.0.s8 %v5523
    %v5525 = vlaneseq
    %v5526 = vshrl.u32 %v5525, 7
    %v5527 = vsub.s32 %v5524, %v5526
    %v5528 = vrot.slane %v5513, %v5527
    %v5529 = vcombine.low %v5521, %v5528
    %v5530 = vcombine.low %v5287, %v5290
    %v5531 = vcombine.low %v5321, %v5377
    %v5533 = vunpack.c.l.s4 1966171168
    %v5534 = vunpack.c.0.s8 %v5533
    %v5535 = vlaneseq
    %v5536 = vshrl.u32 %v5535, 7
    %v5537 = vsub.s32 %v5534, %v5536
    %v5538 = vrot.slane %v5530, %v5537
    %v5540 = vunpack.c.l.s4 1966171168
    %v5541 = vunpack.c.0.s8 %v5540
    %v5542 = vlaneseq
    %v5543 = vshrl.u32 %v5542, 7
    %v5544 = vsub.s32 %v5541, %v5543
    %v5545 = vrot.slane %v5531, %v5544
    %v5547 = vunpack.c.l.s4 1966171168
    %v5548 = vunpack.c.0.s8 %v5547
    %v5549 = vlaneseq
    %v5550 = vshrl.u32 %v5549, 7
    %v5551 = vsub.s32 %v5548, %v5550
    %v5552 = vrot.slane %v5386, %v5551
    %v5553 = vcombine.low %v5538, %v5545
    %v5555 = vunpack.c.l.s4 1966171168
    %v5556 = vunpack.c.0.s8 %v5555
    %v5557 = vlaneseq
    %v5558 = vshrl.u32 %v5557, 7
    %v5559 = vsub.s32 %v5556, %v5558
    %v5560 = vrot.slane %v5553, %v5559
    %v5562 = vunpack.c.l.s4 1966171168
    %v5563 = vunpack.c.0.s8 %v5562
    %v5564 = vlaneseq
    %v5565 = vshrl.u32 %v5564, 7
    %v5566 = vsub.s32 %v5563, %v5565
    %v5567 = vrot.slane %v5552, %v5566
    %v5568 = vcombine.low %v5560, %v5567
    %5569 = vrot.lane.b32.xlu0 %v5529, 8
    %v5570 = vpop.permute.xlu0 %5569
    %5571 = vrot.lane.b32.xlu0 %v5568, 8
    %v5572 = vpop.permute.xlu0 %5571
    %v5575 = vcombine.low %v5140, %v5143
    %v5576 = vcombine.low %v5174, %v5230
    %v5578 = vunpack.c.l.s4 1966171168
    %v5579 = vunpack.c.0.s8 %v5578
    %v5580 = vlaneseq
    %v5581 = vshrl.u32 %v5580, 7
    %v5582 = vsub.s32 %v5579, %v5581
    %v5583 = vrot.slane %v5575, %v5582
    %v5585 = vunpack.c.l.s4 1966171168
    %v5586 = vunpack.c.0.s8 %v5585
    %v5587 = vlaneseq
    %v5588 = vshrl.u32 %v5587, 7
    %v5589 = vsub.s32 %v5586, %v5588
    %v5590 = vrot.slane %v5576, %v5589
    %v5592 = vunpack.c.l.s4 1966171168
    %v5593 = vunpack.c.0.s8 %v5592
    %v5594 = vlaneseq
    %v5595 = vshrl.u32 %v5594, 7
    %v5596 = vsub.s32 %v5593, %v5595
    %v5597 = vrot.slane %v5239, %v5596
    %v5598 = vcombine.low %v5583, %v5590
    %v5600 = vunpack.c.l.s4 1966171168
    %v5601 = vunpack.c.0.s8 %v5600
    %v5602 = vlaneseq
    %v5603 = vshrl.u32 %v5602, 7
    %v5604 = vsub.s32 %v5601, %v5603
    %v5605 = vrot.slane %v5598, %v5604
    %v5607 = vunpack.c.l.s4 1966171168
    %v5608 = vunpack.c.0.s8 %v5607
    %v5609 = vlaneseq
    %v5610 = vshrl.u32 %v5609, 7
    %v5611 = vsub.s32 %v5608, %v5610
    %v5612 = vrot.slane %v5597, %v5611
    %v5613 = vcombine.low %v5605, %v5612
    %v5614 = vcombine.low %v5289, %v5314
    %v5615 = vcombine.low %v5335, %v5385
    %v5617 = vunpack.c.l.s4 1966171168
    %v5618 = vunpack.c.0.s8 %v5617
    %v5619 = vlaneseq
    %v5620 = vshrl.u32 %v5619, 7
    %v5621 = vsub.s32 %v5618, %v5620
    %v5622 = vrot.slane %v5614, %v5621
    %v5624 = vunpack.c.l.s4 1966171168
    %v5625 = vunpack.c.0.s8 %v5624
    %v5626 = vlaneseq
    %v5627 = vshrl.u32 %v5626, 7
    %v5628 = vsub.s32 %v5625, %v5627
    %v5629 = vrot.slane %v5615, %v5628
    %v5631 = vunpack.c.l.s4 1966171168
    %v5632 = vunpack.c.0.s8 %v5631
    %v5633 = vlaneseq
    %v5634 = vshrl.u32 %v5633, 7
    %v5635 = vsub.s32 %v5632, %v5634
    %v5636 = vrot.slane %v5388, %v5635
    %v5637 = vcombine.low %v5622, %v5629
    %v5639 = vunpack.c.l.s4 1966171168
    %v5640 = vunpack.c.0.s8 %v5639
    %v5641 = vlaneseq
    %v5642 = vshrl.u32 %v5641, 7
    %v5643 = vsub.s32 %v5640, %v5642
    %v5644 = vrot.slane %v5637, %v5643
    %v5646 = vunpack.c.l.s4 1966171168
    %v5647 = vunpack.c.0.s8 %v5646
    %v5648 = vlaneseq
    %v5649 = vshrl.u32 %v5648, 7
    %v5650 = vsub.s32 %v5647, %v5649
    %v5651 = vrot.slane %v5636, %v5650
    %v5652 = vcombine.low %v5644, %v5651
    %5653 = vrot.lane.b32.xlu0 %v5613, 16
    %v5654 = vpop.permute.xlu0 %5653
    %5655 = vrot.lane.b32.xlu0 %v5652, 16
    %v5656 = vpop.permute.xlu0 %5655
    %v5659 = vcombine.low %v5142, %v5167
    %v5660 = vcombine.low %v5188, %v5238
    %v5662 = vunpack.c.l.s4 1966171168
    %v5663 = vunpack.c.0.s8 %v5662
    %v5664 = vlaneseq
    %v5665 = vshrl.u32 %v5664, 7
    %v5666 = vsub.s32 %v5663, %v5665
    %v5667 = vrot.slane %v5659, %v5666
    %v5669 = vunpack.c.l.s4 1966171168
    %v5670 = vunpack.c.0.s8 %v5669
    %v5671 = vlaneseq
    %v5672 = vshrl.u32 %v5671, 7
    %v5673 = vsub.s32 %v5670, %v5672
    %v5674 = vrot.slane %v5660, %v5673
    %v5676 = vunpack.c.l.s4 1966171168
    %v5677 = vunpack.c.0.s8 %v5676
    %v5678 = vlaneseq
    %v5679 = vshrl.u32 %v5678, 7
    %v5680 = vsub.s32 %v5677, %v5679
    %v5681 = vrot.slane %v5241, %v5680
    %v5682 = vcombine.low %v5667, %v5674
    %v5684 = vunpack.c.l.s4 1966171168
    %v5685 = vunpack.c.0.s8 %v5684
    %v5686 = vlaneseq
    %v5687 = vshrl.u32 %v5686, 7
    %v5688 = vsub.s32 %v5685, %v5687
    %v5689 = vrot.slane %v5682, %v5688
    %v5691 = vunpack.c.l.s4 1966171168
    %v5692 = vunpack.c.0.s8 %v5691
    %v5693 = vlaneseq
    %v5694 = vshrl.u32 %v5693, 7
    %v5695 = vsub.s32 %v5692, %v5694
    %v5696 = vrot.slane %v5681, %v5695
    %v5697 = vcombine.low %v5689, %v5696
    %v5698 = vcombine.low %v5272, %v5328
    %v5699 = vcombine.low %v5337, %v5387
    %v5701 = vunpack.c.l.s4 1966171168
    %v5702 = vunpack.c.0.s8 %v5701
    %v5703 = vlaneseq
    %v5704 = vshrl.u32 %v5703, 7
    %v5705 = vsub.s32 %v5702, %v5704
    %v5706 = vrot.slane %v5698, %v5705
    %v5708 = vunpack.c.l.s4 1966171168
    %v5709 = vunpack.c.0.s8 %v5708
    %v5710 = vlaneseq
    %v5711 = vshrl.u32 %v5710, 7
    %v5712 = vsub.s32 %v5709, %v5711
    %v5713 = vrot.slane %v5699, %v5712
    %v5715 = vunpack.c.l.s4 1966171168
    %v5716 = vunpack.c.0.s8 %v5715
    %v5717 = vlaneseq
    %v5718 = vshrl.u32 %v5717, 7
    %v5719 = vsub.s32 %v5716, %v5718
    %v5720 = vrot.slane %v5403, %v5719
    %v5721 = vcombine.low %v5706, %v5713
    %v5723 = vunpack.c.l.s4 1966171168
    %v5724 = vunpack.c.0.s8 %v5723
    %v5725 = vlaneseq
    %v5726 = vshrl.u32 %v5725, 7
    %v5727 = vsub.s32 %v5724, %v5726
    %v5728 = vrot.slane %v5721, %v5727
    %v5730 = vunpack.c.l.s4 1966171168
    %v5731 = vunpack.c.0.s8 %v5730
    %v5732 = vlaneseq
    %v5733 = vshrl.u32 %v5732, 7
    %v5734 = vsub.s32 %v5731, %v5733
    %v5735 = vrot.slane %v5720, %v5734
    %v5736 = vcombine.low %v5728, %v5735
    %5737 = vrot.lane.b32.xlu0 %v5697, 24
    %v5738 = vpop.permute.xlu0 %5737
    %5739 = vrot.lane.b32.xlu0 %v5736, 24
    %v5740 = vpop.permute.xlu0 %5739
    %v5743 = vcombine.low %v5125, %v5181
    %v5744 = vcombine.low %v5190, %v5240
    %v5746 = vunpack.c.l.s4 1966171168
    %v5747 = vunpack.c.0.s8 %v5746
    %v5748 = vlaneseq
    %v5749 = vshrl.u32 %v5748, 7
    %v5750 = vsub.s32 %v5747, %v5749
    %v5751 = vrot.slane %v5743, %v5750
    %v5753 = vunpack.c.l.s4 1966171168
    %v5754 = vunpack.c.0.s8 %v5753
    %v5755 = vlaneseq
    %v5756 = vshrl.u32 %v5755, 7
    %v5757 = vsub.s32 %v5754, %v5756
    %v5758 = vrot.slane %v5744, %v5757
    %v5760 = vunpack.c.l.s4 1966171168
    %v5761 = vunpack.c.0.s8 %v5760
    %v5762 = vlaneseq
    %v5763 = vshrl.u32 %v5762, 7
    %v5764 = vsub.s32 %v5761, %v5763
    %v5765 = vrot.slane %v5265, %v5764
    %v5766 = vcombine.low %v5751, %v5758
    %v5768 = vunpack.c.l.s4 1966171168
    %v5769 = vunpack.c.0.s8 %v5768
    %v5770 = vlaneseq
    %v5771 = vshrl.u32 %v5770, 7
    %v5772 = vsub.s32 %v5769, %v5771
    %v5773 = vrot.slane %v5766, %v5772
    %v5775 = vunpack.c.l.s4 1966171168
    %v5776 = vunpack.c.0.s8 %v5775
    %v5777 = vlaneseq
    %v5778 = vshrl.u32 %v5777, 7
    %v5779 = vsub.s32 %v5776, %v5778
    %v5780 = vrot.slane %v5765, %v5779
    %v5781 = vcombine.low %v5773, %v5780
    %v5782 = vcombine.low %v5286, %v5336
    %v5783 = vcombine.low %v5339, %v5370
    %v5785 = vunpack.c.l.s4 1966171168
    %v5786 = vunpack.c.0.s8 %v5785
    %v5787 = vlaneseq
    %v5788 = vshrl.u32 %v5787, 7
    %v5789 = vsub.s32 %v5786, %v5788
    %v5790 = vrot.slane %v5782, %v5789
    %v5792 = vunpack.c.l.s4 1966171168
    %v5793 = vunpack.c.0.s8 %v5792
    %v5794 = vlaneseq
    %v5795 = vshrl.u32 %v5794, 7
    %v5796 = vsub.s32 %v5793, %v5795
    %v5797 = vrot.slane %v5783, %v5796
    %v5799 = vunpack.c.l.s4 1966171168
    %v5800 = vunpack.c.0.s8 %v5799
    %v5801 = vlaneseq
    %v5802 = vshrl.u32 %v5801, 7
    %v5803 = vsub.s32 %v5800, %v5802
    %v5804 = vrot.slane %v5410, %v5803
    %v5805 = vcombine.low %v5790, %v5797
    %v5807 = vunpack.c.l.s4 1966171168
    %v5808 = vunpack.c.0.s8 %v5807
    %v5809 = vlaneseq
    %v5810 = vshrl.u32 %v5809, 7
    %v5811 = vsub.s32 %v5808, %v5810
    %v5812 = vrot.slane %v5805, %v5811
    %v5814 = vunpack.c.l.s4 1966171168
    %v5815 = vunpack.c.0.s8 %v5814
    %v5816 = vlaneseq
    %v5817 = vshrl.u32 %v5816, 7
    %v5818 = vsub.s32 %v5815, %v5817
    %v5819 = vrot.slane %v5804, %v5818
    %v5820 = vcombine.low %v5812, %v5819
    %5821 = vrot.lane.b32.xlu0 %v5781, 32
    %v5822 = vpop.permute.xlu0 %5821
    %5823 = vrot.lane.b32.xlu0 %v5820, 32
    %v5824 = vpop.permute.xlu0 %5823
    %v5827 = vsel %vm4157, %v5449, %v5570
    %v5828 = vsel %vm4157, %v5488, %v5572
    %v5829 = vsel %vm239, %v5827, %v5654
    %v5830 = vsel %vm239, %v5828, %v5656
    %v5831 = vsel %vm4178, %v5829, %v5738
    %v5832 = vsel %vm4178, %v5830, %v5740
    %v5833 = vsel %vm254, %v5831, %v5822
    %v5834 = vsel %vm254, %v5832, %v5824
    %v5837 = vrot.slane %v5834, 7
    %vm5838 = vcmask 1041409
    %v5839 = vsel %vm5838, %v5837, %v5833
    %v5841 = vrot.slane %v5833, 1
    %v5842 = vsel %vm5838, %v5834, %v5841
    %5843 = vrot.lane.b32.xlu0 %v5842, 40
    %v5844 = vpop.permute.xlu0 %5843
    %v5846 = vrot.slane %v5833, 2
    %v5847 = vrot.slane %v5834, 1
    %v5848 = vsel %vm5838, %v5847, %v5846
    %5849 = vrot.lane.b32.xlu0 %v5848, 80
    %v5850 = vpop.permute.xlu0 %5849
    %v5852 = vrot.slane %v5833, 3
    %v5853 = vrot.slane %v5834, 2
    %v5854 = vsel %vm5838, %v5853, %v5852
    %5855 = vrot.lane.b32.xlu0 %v5854, 120
    %v5856 = vpop.permute.xlu0 %5855
    %v5858 = vrot.slane %v5833, 4
    %v5859 = vrot.slane %v5834, 3
    %v5860 = vsel %vm5838, %v5859, %v5858
    %5861 = vrot.lane.b32.xlu0 %v5860, 32
    %v5862 = vpop.permute.xlu0 %5861
    %v5864 = vsel %vm4199, %v5839, %v5844
    %vm5865 = vcmask 654336
    %v5866 = vsel %vm5865, %v5864, %v5850
    %vm5867 = vcmask 982016
    %v5868 = vsel %vm5867, %v5866, %v5856
    %v5869 = vsel %vm254, %v5856, %v5862
    %v5870 = vld [vmem:[%s5] sm:$0xff]
    %v5871 = vld [vmem:[%s5 + $0x8] sm:$0xff]
    %v5872 = vld [vmem:[%s5 + $0x10] sm:$0xff]
    %v5873 = vld [vmem:[%s5 + $0x18] sm:$0xff]
    %v5874 = vld [vmem:[%s5 + $0x20] sm:$0xff]
    %v5875 = vld [vmem:[%s5 + $0x28] sm:$0xff]
    %v5876 = vld [vmem:[%s5 + $0x30] sm:$0xff]
    %v5877 = vld [vmem:[%s5 + $0x38] sm:$0xff]
    %v5878 = vld [vmem:[%s5 + $0x40] sm:$0xff]
    %v5879 = vld [vmem:[%s5 + $0x48] sm:$0xff]
    %v5880 = vld [vmem:[%s5 + $0x50] sm:$0xff]
    %v5881 = vld [vmem:[%s5 + $0x58] sm:$0xff]
    %v5882 = vld [vmem:[%s5 + $0x60] sm:$0xff]
    %v5883 = vld [vmem:[%s5 + $0x68] sm:$0xff]
    %v5884 = vld [vmem:[%s5 + $0x70] sm:$0xff]
    %v5885 = vld [vmem:[%s5 + $0x78] sm:$0xff]
    %v5886 = vld [vmem:[%s5 + $0x80] sm:$0xff]
    %v5887 = vld [vmem:[%s5 + $0x88] sm:$0xff]
    %v5888 = vld [vmem:[%s5 + $0x90] sm:$0xff]
    %v5889 = vld [vmem:[%s5 + $0x98] sm:$0xff]
    %v5890 = vld [vmem:[%s5 + $0xa0] sm:$0xff]
    %v5891 = vld [vmem:[%s5 + $0xa8] sm:$0xff]
    %v5892 = vld [vmem:[%s5 + $0xb0] sm:$0xff]
    %v5893 = vld [vmem:[%s5 + $0xb8] sm:$0xff]
    %v5894 = vld [vmem:[%s5 + $0xc0] sm:$0xff]
    %v5895 = vld [vmem:[%s6] sm:$0x1]
    %v5897 = vlaneseq
    %v5898 = vshrl.u32 %v5897, 7
    %v5899 = vsub.s32 0, %v5898
    %v5900 = vrot.slane %v5895, %v5899
    %v5903 = vsel %vm4966, %v5869, 0
    %5905 = vmatprep.subr.mxu0 0.0
    %5906 = vmatpush1.msra.mxu0 %v5870
    %5907 = vmatprep.subr.mxu0 0.0
    %5908 = vmatpush1.msra.mxu0 %v5871
    %5909 = vmatprep.subr.mxu0 0.0
    %5910 = vmatpush1.msra.mxu0 %v5872
    %5911 = vmatprep.subr.mxu0 0.0
    %5912 = vmatpush1.msra.mxu0 %v5873
    %5913 = vmatprep.subr.mxu0 0.0
    %5914 = vmatpush1.msra.mxu0 %v5874
    %5915 = vmatprep.subr.mxu0 0.0
    %5916 = vmatpush1.msra.mxu0 %v5875
    %5917 = vmatprep.subr.mxu0 0.0
    %5918 = vmatpush1.msra.mxu0 %v5876
    %5919 = vmatprep.subr.mxu0 0.0
    %5920 = vmatpush1.msra.mxu0 %v5877
    %5921 = vmatprep.subr.mxu0 0.0
    %5922 = vmatpush1.msra.mxu0 %v5878
    %5923 = vmatprep.subr.mxu0 0.0
    %5924 = vmatpush1.msra.mxu0 %v5879
    %5925 = vmatprep.subr.mxu0 0.0
    %5926 = vmatpush1.msra.mxu0 %v5880
    %5927 = vmatprep.subr.mxu0 0.0
    %5928 = vmatpush1.msra.mxu0 %v5881
    %5929 = vmatprep.subr.mxu0 0.0
    %5930 = vmatpush1.msra.mxu0 %v5882
    %5931 = vmatprep.subr.mxu0 0.0
    %5932 = vmatpush1.msra.mxu0 %v5883
    %5933 = vmatprep.subr.mxu0 0.0
    %5934 = vmatpush1.msra.mxu0 %v5884
    %5935 = vmatprep.subr.mxu0 0.0
    %5936 = vmatpush1.msra.mxu0 %v5885
    %5937 = vmatprep.subr.mxu0 0.0
    %5938 = vmatpush1.msra.mxu0 %v5886
    %5939 = vmatprep.subr.mxu0 0.0
    %5940 = vmatpush1.msra.mxu0 %v5887
    %5941 = vmatprep.subr.mxu0 0.0
    %5942 = vmatpush1.msra.mxu0 %v5888
    %5943 = vmatprep.subr.mxu0 0.0
    %5944 = vmatpush1.msra.mxu0 %v5889
    %5945 = vmatprep.subr.mxu0 0.0
    %5946 = vmatpush1.msra.mxu0 %v5890
    %5947 = vmatprep.subr.mxu0 0.0
    %5948 = vmatpush1.msra.mxu0 %v5891
    %5949 = vmatprep.subr.mxu0 0.0
    %5950 = vmatpush1.msra.mxu0 %v5892
    %5951 = vmatprep.subr.mxu0 0.0
    %5952 = vmatpush1.msra.mxu0 %v5893
    %5953 = vmatprep.subr.mxu0 0.0
    %5954 = vmatpush1.msra.mxu0 %v5894
    %5955 = vmatprep.subr.mxu0 0.0
    %5956 = vmatpush1.msra.mxu0 0.0
    %5957 = vmatprep.subr.mxu0 0.0
    %5958 = vmatpush1.msra.mxu0 0.0
    %5959 = vmatprep.subr.mxu0 0.0
    %5960 = vmatpush1.msra.mxu0 0.0
    %5961 = vmatprep.subr.mxu0 0.0
    %5962 = vmatpush1.msra.mxu0 0.0
    %5963 = vmatprep.subr.mxu0 0.0
    %5964 = vmatpush1.msra.mxu0 0.0
    %5965 = vmatprep.subr.mxu0 0.0
    %5966 = vmatpush1.msra.mxu0 0.0
    %5967 = vmatprep.subr.mxu0 0.0
    %5968 = vmatpush1.msra.mxu0 0.0
    %5969 = vmatprep.mubr.f32.mxu0 %v5903
    %5970 = vmatmul.mubr.f32.gmra.mrb[0].mxu0 %v5868
    %v5971 = vpop.f32.mrb[0].mxu0
    %v5972 = vadd.f32 %v5900, %v5971
    %v5973 = vpop.f32.mrb[0].mxu0
    %5974 = vdwg.mxu0
    %vm5975 = vcmask 254976
    %v5976 = vsel %vm5975, %v5972, 0.0
    %5977 = vadd.xlane.f32.xlu0 %v5976
    %v5978 = vpop.xlane.xlu0 %5977
    %v5979 = vrcp.pop 32.0
    %v5980 = vmul.f32 %v5978, %v5979
    %v5981 = vsub.f32 %v5972, %v5980
    %v5982 = vmul.f32 %v5981, %v5981
    %v5983 = vsel %vm5975, %v5982, 0.0
    %5984 = vadd.xlane.f32.xlu0 %v5983
    %v5985 = vpop.xlane.xlu0 %5984
    %v5986 = vmul.f32 %v5985, %v5979
    %v5987 = vadd.f32 %v5986, 1e-05
    %v5988 = vrsqrt.pop %v5987
    %v5989 = vmul.f32 %v5981, %v5988
    %v5990 = vld [vmem:[%s7] sm:$0x1]
    %v5992 = vlaneseq
    %v5993 = vshrl.u32 %v5992, 7
    %v5994 = vsub.s32 0, %v5993
    %v5995 = vrot.slane %v5990, %v5994
    %v5997 = vmul.f32 %v5989, %v5995
    %v5998 = vld [vmem:[%s8] sm:$0x1]
    %v6000 = vlaneseq
    %v6001 = vshrl.u32 %v6000, 7
    %v6002 = vsub.s32 0, %v6001
    %v6003 = vrot.slane %v5998, %v6002
    %v6005 = vadd.f32 %v5997, %v6003
    %v6006 = vtanh.pop %v6005
    %6007 = vst.msk [vmem:[#allocation2] sm:$0x3] %vm5975, %v6006
    // Predicated region
    $region38: #{pixel_encoder_forward.1} parent=1 // pred_check
      _
    $region39: #{pixel_encoder_forward.1} parent=1 // pred_check_branch
      %6009 = sbr.rel (0) target = $region41
    $region40: #{pixel_encoder_forward.1} parent=1 // pred_region
      %s6011 = ssub.s32 32, 32
      %6012 = vsyncadd [#allocation3], %s6011
      %s6014 = sshll.u32 [#allocation2], 4
      %s6015 = int_to_ptr.vmem [resolvable:$true] %s6014
      %6017 = dma.vmem_to_hbm [thread:$0]  %s6015, 32, %s9, [#allocation3]
    $region41: #{pixel_encoder_forward.1} parent=1 // pred_fallthru
      _
    // Predicated region
    $region42: #{pixel_encoder_forward.1} parent=1 // pred_check
      _
    $region43: #{pixel_encoder_forward.1} parent=1 // pred_check_branch
      %6019 = sbr.rel (0) target = $region45
    $region44: #{pixel_encoder_forward.1} parent=1 // pred_region
      %6020 = dma.done [#allocation3], 32
    $region45: #{pixel_encoder_forward.1} parent=1 // pred_fallthru
      _
    %6021 = vsyncpa [#allocation3], 1

</llo_original>
